<compile_context>
chip_gen: v7x
topology: tpu7x:2x2x1
jax: 0.10.0
libtpu: 0.0.40
codegen_flags: <defaults>
</compile_context>

<pallas_src>
import jax
import jax.numpy as jnp
import numpy as np
from jax.experimental import pallas as pl
from jax.experimental.pallas import tpu as pltpu


# ---------------------------------------------------------------------------
# The single fused kernel
# ---------------------------------------------------------------------------
def _fused_cnn_kernel(x_ref, w1_ref, b1_ref, s1e_ref, s1o_ref,
                      w2_ref, b2_ref, s2e_ref, s2o_ref,
                      g1_ref, c1_ref, g2_ref, c2_ref, o_ref):
    f32 = jnp.float32
    x = x_ref[...]                                      # (28, B*28)

    # ---- conv1 (1->10, k=5): 5 banded matmuls over the kernel rows --------
    y1 = jnp.dot(x[0:24, :], w1_ref[0], preferred_element_type=f32)
    for kh in range(1, 5):
        y1 = y1 + jnp.dot(x[kh:kh + 24, :], w1_ref[kh],
                          preferred_element_type=f32)
    y1 = y1 + b1_ref[...]                               # (24, 2*B*128)

    # ---- fused 2x2 max-pool + ReLU epilogue --------------------------------
    r = jnp.maximum(jnp.dot(s1e_ref[...], y1, preferred_element_type=f32),
                    jnp.dot(s1o_ref[...], y1, preferred_element_type=f32))
    h1 = r.shape[1] // 2
    a1 = jnp.maximum(jnp.maximum(r[:, :h1], r[:, h1:]), 0.0)     # (12, B*128)

    # ---- conv2 (10->20, k=5) ------------------------------------------------
    y2 = jnp.dot(a1[0:8, :], w2_ref[0], preferred_element_type=f32)
    for kh in range(1, 5):
        y2 = y2 + jnp.dot(a1[kh:kh + 8, :], w2_ref[kh],
                          preferred_element_type=f32)
    y2 = y2 + b2_ref[...]                               # (8, 2*B*128)

    r2 = jnp.maximum(jnp.dot(s2e_ref[...], y2, preferred_element_type=f32),
                     jnp.dot(s2o_ref[...], y2, preferred_element_type=f32))
    h2 = r2.shape[1] // 2
    a2 = jnp.maximum(jnp.maximum(r2[:, :h2], r2[:, h2:]), 0.0)   # (4, B*128)

    # ---- fc1 + ReLU + Dropout(eval) + fc2 ----------------------------------
    h = c1_ref[...]                                     # (1, B*50)
    for hp in range(4):
        h = h + jnp.dot(a2[hp:hp + 1, :], g1_ref[hp],
                        preferred_element_type=f32)
    h = jnp.maximum(h, 0.0)
    # TODO(synk): Dropout(p=0.5) is the identity in eval mode; train-mode
    # masking (PRNG + 1/(1-p) scaling) is omitted.
    o_ref[...] = (jnp.dot(h, g2_ref[...], preferred_element_type=f32)
                  + c2_ref[...])                        # (1, B*10)


# ---------------------------------------------------------------------------
# One-time weight preprocessing (outside the per-forward path)
# ---------------------------------------------------------------------------
def prepare_inputs(p, B):
    """Fold the conv/fc weights into the slab layouts the fused kernel consumes.

    Activation slab layout: rows = image row, columns =
        dw * (B*128) + b * 128 + (w_half * C + c)        (zero-padded to 128)
    where dw is the W-parity used by the 2x2 max-pool.
    """
    f32 = jnp.float32

    def banded(w, win, in_block, out_block):
        # w: (cout, cin, K, K). Returns (K, B*in_block, 2*B*out_block) with
        # rows = b*in_block + w_in*cin + cin_idx,
        # cols = dw*(B*out_block) + b*out_block + (w_half*cout + cout_idx).
        cout, cin, K, _ = w.shape
        wout = win - K + 1
        whalf = wout // 2
        w_in = jnp.arange(win)[:, None, None]
        dw = jnp.arange(2)[None, :, None]
        w2 = jnp.arange(whalf)[None, None, :]
        kw = w_in - (2 * w2 + dw)                                  # (win,2,whalf)
        valid = ((kw >= 0) & (kw < K)).astype(f32)
        kwc = jnp.clip(kw, 0, K - 1)
        wt = jnp.transpose(w.astype(f32), (2, 1, 0, 3))            # (K,cin,cout,K)
        g = wt[:, :, :, kwc] * valid[None, None, None]             # (K,cin,cout,win,2,whalf)
        g = jnp.transpose(g, (0, 3, 1, 4, 5, 2))                   # (K,win,cin,2,whalf,cout)
        eye = jnp.eye(B, dtype=f32)
        full = (eye[None, :, None, None, None, :, None, None]
                * g[:, None, :, :, :, None, :, :])                 # (K,B,win,cin,2,B,whalf,cout)
        full = full.reshape(K, B, win * cin, 2, B, whalf * cout)
        full = jnp.pad(full, ((0, 0), (0, 0), (0, in_block - win * cin),
                              (0, 0), (0, 0), (0, out_block - whalf * cout)))
        return full.reshape(K, B * in_block, 2 * B * out_block)

    def bias_row(b, whalf, out_block):
        v = jnp.tile(b.astype(f32), (whalf,))
        v = jnp.pad(v, (0, out_block - v.shape[0]))
        return jnp.tile(v, (2 * B,)).reshape(1, -1)

    # conv1: 28x28x1 -> 24x24x10
    w1 = banded(p["conv1_w"], win=28, in_block=28, out_block=128)   # (5, 56, 512)
    b1 = bias_row(p["conv1_b"], whalf=12, out_block=128)            # (1, 512)
    # conv2: 12x12x10 -> 8x8x20 (input lives in 128-wide per-batch blocks)
    w2 = banded(p["conv2_w"], win=12, in_block=128, out_block=128)  # (5, 256, 512)
    b2 = bias_row(p["conv2_b"], whalf=4, out_block=128)             # (1, 512)

    # even/odd row-selection matrices for the H-direction of the 2x2 pools
    s1e = jnp.eye(24, dtype=f32)[0::2]                              # (12, 24)
    s1o = jnp.eye(24, dtype=f32)[1::2]
    s2e = jnp.eye(8, dtype=f32)[0::2]                               # (4, 8)
    s2o = jnp.eye(8, dtype=f32)[1::2]

    # fc1 rearranged to consume rows = pooled-h, cols = b*128 + w*20 + c
    fc1 = p["fc1_w"].astype(f32).reshape(50, 20, 4, 4)              # (n, c, h, w)
    g = jnp.transpose(fc1, (2, 3, 1, 0))                            # (h, w, c, n)
    eye = jnp.eye(B, dtype=f32)
    g1 = eye[None, :, None, None, :, None] * g[:, None, :, :, None, :]  # (4,B,4,20,B,50)
    g1 = g1.reshape(4, B, 80, B * 50)
    g1 = jnp.pad(g1, ((0, 0), (0, 0), (0, 128 - 80), (0, 0)))
    g1 = g1.reshape(4, B * 128, B * 50)                             # (4, 256, 100)
    c1 = jnp.tile(p["fc1_b"].astype(f32), (B,)).reshape(1, B * 50)  # (1, 100)

    # fc2: batch-block-diagonal
    g2 = jnp.kron(eye, p["fc2_w"].astype(f32).T)                    # (100, 20)
    c2 = jnp.tile(p["fc2_b"].astype(f32), (B,)).reshape(1, B * 10)  # (1, 20)

    return dict(w1=w1, b1=b1, s1e=s1e, s1o=s1o, w2=w2, b2=b2,
                s2e=s2e, s2o=s2o, g1=g1, c1=c1, g2=g2, c2=c2)


# ---------------------------------------------------------------------------
# Forward pass: one fused pallas_call (+ trivial input/output layout plumbing)
# ---------------------------------------------------------------------------
def cnn_forward(x, prep):
    """x: (B, 1, 28, 28) NCHW; prep: dict from prepare_inputs (same B)."""
    B, _, H, W = x.shape
    x0 = jnp.transpose(x[:, 0, :, :], (1, 0, 2)).reshape(H, B * W)  # (28, B*28)

    vmem = pl.BlockSpec(memory_space=pltpu.MemorySpace.VMEM)
    operands = (x0, prep["w1"], prep["b1"], prep["s1e"], prep["s1o"],
                prep["w2"], prep["b2"], prep["s2e"], prep["s2o"],
                prep["g1"], prep["c1"], prep["g2"], prep["c2"])
    out = pl.pallas_call(
        _fused_cnn_kernel,
        out_shape=jax.ShapeDtypeStruct((1, prep["c2"].shape[1]), jnp.float32),
        in_specs=[vmem] * len(operands),
        out_specs=vmem,
    )(*operands)
    return out.reshape(B, -1)                                       # (B, 10)


# ---------------------------------------------------------------------------
# Parameters + pure-JAX reference (check only; not on the optimized path)
# ---------------------------------------------------------------------------
def init_params(key):
    ks = jax.random.split(key, 8)
    return {
        "conv1_w": 0.1 * jax.random.normal(ks[0], (10, 1, 5, 5), jnp.float32),
        "conv1_b": 0.1 * jax.random.normal(ks[1], (10,), jnp.float32),
        "conv2_w": 0.1 * jax.random.normal(ks[2], (20, 10, 5, 5), jnp.float32),
        "conv2_b": 0.1 * jax.random.normal(ks[3], (20,), jnp.float32),
        "fc1_w": 0.1 * jax.random.normal(ks[4], (50, 320), jnp.float32),
        "fc1_b": 0.1 * jax.random.normal(ks[5], (50,), jnp.float32),
        "fc2_w": 0.1 * jax.random.normal(ks[6], (10, 50), jnp.float32),
        "fc2_b": 0.1 * jax.random.normal(ks[7], (10,), jnp.float32),
    }


def _im2col_ref(x, k):
    B, C, H, W = x.shape
    OH, OW = H - k + 1, W - k + 1
    cols = []
    for ci in range(C):
        for kh in range(k):
            for kw in range(k):
                cols.append(x[:, ci, kh:kh + OH, kw:kw + OW].reshape(B, OH * OW))
    return jnp.stack(cols, axis=-1)


def cnn_reference(x, p):
    B = x.shape[0]

    def conv(xin, w, b):
        cout, cin, k, _ = w.shape
        OH, OW = xin.shape[2] - k + 1, xin.shape[3] - k + 1
        pat = _im2col_ref(xin, k)
        wm = jnp.transpose(w, (1, 2, 3, 0)).reshape(cin * k * k, cout)
        y = pat @ wm + b.reshape(1, 1, cout)
        return jnp.transpose(y.reshape(B, OH, OW, cout), (0, 3, 1, 2))

    def pool_relu(y):
        Bc, C, H, W = y.shape
        y = y.reshape(Bc, C, H // 2, 2, W // 2, 2).max(axis=(3, 5))
        return jnp.maximum(y, 0.0)

    y = pool_relu(conv(x, p["conv1_w"], p["conv1_b"]))
    y = pool_relu(conv(y, p["conv2_w"], p["conv2_b"]))
    flat = y.reshape(B, 320)
    h = jnp.maximum(flat @ p["fc1_w"].T + p["fc1_b"], 0.0)
    return h @ p["fc2_w"].T + p["fc2_b"]


if __name__ == "__main__":
    key = jax.random.PRNGKey(0)
    k_param, k_x = jax.random.split(key)
    params = init_params(k_param)
    B = 2
    # Input must be (B, 1, 28, 28) so the flatten hits 320 = 20*4*4.
    x = jax.random.normal(k_x, (B, 1, 28, 28), jnp.float32)

    prep = prepare_inputs(params, B)         # one-time weight preprocessing
    fwd = jax.jit(cnn_forward)
    out = jax.block_until_ready(fwd(x, prep))
    ref = cnn_reference(x, params)

    assert out.shape == (B, 10)
    np.testing.assert_allclose(np.asarray(out), np.asarray(ref),
                               rtol=5e-4, atol=5e-4)
    print("KERNEL_OK")
</pallas_src>

<mosaic_0001>
module attributes {stable_mosaic.version = 11 : i64} {
  func.func @_fused_cnn_kernel(%arg0: memref<28x56xf32, #tpu.memory_space<vmem>>, %arg1: memref<5x56x512xf32, #tpu.memory_space<vmem>>, %arg2: memref<1x512xf32, #tpu.memory_space<vmem>>, %arg3: memref<12x24xf32, #tpu.memory_space<vmem>>, %arg4: memref<12x24xf32, #tpu.memory_space<vmem>>, %arg5: memref<5x256x512xf32, #tpu.memory_space<vmem>>, %arg6: memref<1x512xf32, #tpu.memory_space<vmem>>, %arg7: memref<4x8xf32, #tpu.memory_space<vmem>>, %arg8: memref<4x8xf32, #tpu.memory_space<vmem>>, %arg9: memref<4x256x100xf32, #tpu.memory_space<vmem>>, %arg10: memref<1x100xf32, #tpu.memory_space<vmem>>, %arg11: memref<100x20xf32, #tpu.memory_space<vmem>>, %arg12: memref<1x20xf32, #tpu.memory_space<vmem>>, %arg13: memref<1x20xf32, #tpu.memory_space<vmem>>) attributes {dimension_semantics = [], scalar_prefetch = 0 : i64, scratch_operands = 0 : i64, tpu.core_type = #tpu.core_type<tc>} {
    %c0 = arith.constant 0 : index
    %c0_0 = arith.constant 0 : index
    %0 = vector.load %arg0[%c0, %c0_0] : memref<28x56xf32, #tpu.memory_space<vmem>>, vector<28x56xf32>
    %1 = vector.extract_strided_slice %0 {offsets = [0, 0], sizes = [24, 56], strides = [1, 1]} : vector<28x56xf32> to vector<24x56xf32>
    %c0_1 = arith.constant 0 : index
    %c0_2 = arith.constant 0 : index
    %c0_3 = arith.constant 0 : index
    %2 = vector.load %arg1[%c0_1, %c0_2, %c0_3] : memref<5x56x512xf32, #tpu.memory_space<vmem>>, vector<1x56x512xf32>
    %3 = vector.shape_cast %2 : vector<1x56x512xf32> to vector<56x512xf32>
    %cst = arith.constant dense<0.000000e+00> : vector<24x512xf32>
    %4 = tpu.matmul %1, %3, %cst {dimension_numbers = #tpu.dot_dimension_numbers<[1], [0], [0], [1], [0, 0, 1, 1], [], []>} : vector<24x56xf32>, vector<56x512xf32>, vector<24x512xf32> -> vector<24x512xf32>
    %5 = vector.extract_strided_slice %0 {offsets = [1, 0], sizes = [24, 56], strides = [1, 1]} : vector<28x56xf32> to vector<24x56xf32>
    %c1 = arith.constant 1 : index
    %c0_4 = arith.constant 0 : index
    %c0_5 = arith.constant 0 : index
    %6 = vector.load %arg1[%c1, %c0_4, %c0_5] : memref<5x56x512xf32, #tpu.memory_space<vmem>>, vector<1x56x512xf32>
    %7 = vector.shape_cast %6 : vector<1x56x512xf32> to vector<56x512xf32>
    %cst_6 = arith.constant dense<0.000000e+00> : vector<24x512xf32>
    %8 = tpu.matmul %5, %7, %cst_6 {dimension_numbers = #tpu.dot_dimension_numbers<[1], [0], [0], [1], [0, 0, 1, 1], [], []>} : vector<24x56xf32>, vector<56x512xf32>, vector<24x512xf32> -> vector<24x512xf32>
    %9 = arith.addf %4, %8 : vector<24x512xf32>
    %10 = vector.extract_strided_slice %0 {offsets = [2, 0], sizes = [24, 56], strides = [1, 1]} : vector<28x56xf32> to vector<24x56xf32>
    %c2 = arith.constant 2 : index
    %c0_7 = arith.constant 0 : index
    %c0_8 = arith.constant 0 : index
    %11 = vector.load %arg1[%c2, %c0_7, %c0_8] : memref<5x56x512xf32, #tpu.memory_space<vmem>>, vector<1x56x512xf32>
    %12 = vector.shape_cast %11 : vector<1x56x512xf32> to vector<56x512xf32>
    %cst_9 = arith.constant dense<0.000000e+00> : vector<24x512xf32>
    %13 = tpu.matmul %10, %12, %cst_9 {dimension_numbers = #tpu.dot_dimension_numbers<[1], [0], [0], [1], [0, 0, 1, 1], [], []>} : vector<24x56xf32>, vector<56x512xf32>, vector<24x512xf32> -> vector<24x512xf32>
    %14 = arith.addf %9, %13 : vector<24x512xf32>
    %15 = vector.extract_strided_slice %0 {offsets = [3, 0], sizes = [24, 56], strides = [1, 1]} : vector<28x56xf32> to vector<24x56xf32>
    %c3 = arith.constant 3 : index
    %c0_10 = arith.constant 0 : index
    %c0_11 = arith.constant 0 : index
    %16 = vector.load %arg1[%c3, %c0_10, %c0_11] : memref<5x56x512xf32, #tpu.memory_space<vmem>>, vector<1x56x512xf32>
    %17 = vector.shape_cast %16 : vector<1x56x512xf32> to vector<56x512xf32>
    %cst_12 = arith.constant dense<0.000000e+00> : vector<24x512xf32>
    %18 = tpu.matmul %15, %17, %cst_12 {dimension_numbers = #tpu.dot_dimension_numbers<[1], [0], [0], [1], [0, 0, 1, 1], [], []>} : vector<24x56xf32>, vector<56x512xf32>, vector<24x512xf32> -> vector<24x512xf32>
    %19 = arith.addf %14, %18 : vector<24x512xf32>
    %20 = vector.extract_strided_slice %0 {offsets = [4, 0], sizes = [24, 56], strides = [1, 1]} : vector<28x56xf32> to vector<24x56xf32>
    %c4 = arith.constant 4 : index
    %c0_13 = arith.constant 0 : index
    %c0_14 = arith.constant 0 : index
    %21 = vector.load %arg1[%c4, %c0_13, %c0_14] : memref<5x56x512xf32, #tpu.memory_space<vmem>>, vector<1x56x512xf32>
    %22 = vector.shape_cast %21 : vector<1x56x512xf32> to vector<56x512xf32>
    %cst_15 = arith.constant dense<0.000000e+00> : vector<24x512xf32>
    %23 = tpu.matmul %20, %22, %cst_15 {dimension_numbers = #tpu.dot_dimension_numbers<[1], [0], [0], [1], [0, 0, 1, 1], [], []>} : vector<24x56xf32>, vector<56x512xf32>, vector<24x512xf32> -> vector<24x512xf32>
    %24 = arith.addf %19, %23 : vector<24x512xf32>
    %c0_16 = arith.constant 0 : index
    %c0_17 = arith.constant 0 : index
    %25 = vector.load %arg2[%c0_16, %c0_17] : memref<1x512xf32, #tpu.memory_space<vmem>>, vector<1x512xf32>
    %26 = vector.broadcast %25 : vector<1x512xf32> to vector<24x512xf32>
    %27 = arith.addf %24, %26 : vector<24x512xf32>
    %c0_18 = arith.constant 0 : index
    %c0_19 = arith.constant 0 : index
    %28 = vector.load %arg3[%c0_18, %c0_19] : memref<12x24xf32, #tpu.memory_space<vmem>>, vector<12x24xf32>
    %cst_20 = arith.constant dense<0.000000e+00> : vector<12x512xf32>
    %29 = tpu.matmul %28, %27, %cst_20 {dimension_numbers = #tpu.dot_dimension_numbers<[1], [0], [0], [1], [0, 0, 1, 1], [], []>} : vector<12x24xf32>, vector<24x512xf32>, vector<12x512xf32> -> vector<12x512xf32>
    %c0_21 = arith.constant 0 : index
    %c0_22 = arith.constant 0 : index
    %30 = vector.load %arg4[%c0_21, %c0_22] : memref<12x24xf32, #tpu.memory_space<vmem>>, vector<12x24xf32>
    %cst_23 = arith.constant dense<0.000000e+00> : vector<12x512xf32>
    %31 = tpu.matmul %30, %27, %cst_23 {dimension_numbers = #tpu.dot_dimension_numbers<[1], [0], [0], [1], [0, 0, 1, 1], [], []>} : vector<12x24xf32>, vector<24x512xf32>, vector<12x512xf32> -> vector<12x512xf32>
    %32 = arith.maximumf %29, %31 : vector<12x512xf32>
    %33 = vector.extract_strided_slice %32 {offsets = [0, 0], sizes = [12, 256], strides = [1, 1]} : vector<12x512xf32> to vector<12x256xf32>
    %34 = vector.extract_strided_slice %32 {offsets = [0, 256], sizes = [12, 256], strides = [1, 1]} : vector<12x512xf32> to vector<12x256xf32>
    %35 = arith.maximumf %33, %34 : vector<12x256xf32>
    %cst_24 = arith.constant 0.000000e+00 : f32
    %36 = vector.broadcast %cst_24 : f32 to vector<12x256xf32>
    %37 = arith.maximumf %35, %36 : vector<12x256xf32>
    %38 = vector.extract_strided_slice %37 {offsets = [0, 0], sizes = [8, 256], strides = [1, 1]} : vector<12x256xf32> to vector<8x256xf32>
    %c0_25 = arith.constant 0 : index
    %c0_26 = arith.constant 0 : index
    %c0_27 = arith.constant 0 : index
    %39 = vector.load %arg5[%c0_25, %c0_26, %c0_27] : memref<5x256x512xf32, #tpu.memory_space<vmem>>, vector<1x256x512xf32>
    %40 = vector.shape_cast %39 : vector<1x256x512xf32> to vector<256x512xf32>
    %cst_28 = arith.constant dense<0.000000e+00> : vector<8x512xf32>
    %41 = tpu.matmul %38, %40, %cst_28 {dimension_numbers = #tpu.dot_dimension_numbers<[1], [0], [0], [1], [0, 0, 1, 1], [], []>} : vector<8x256xf32>, vector<256x512xf32>, vector<8x512xf32> -> vector<8x512xf32>
    %42 = vector.extract_strided_slice %37 {offsets = [1, 0], sizes = [8, 256], strides = [1, 1]} : vector<12x256xf32> to vector<8x256xf32>
    %c1_29 = arith.constant 1 : index
    %c0_30 = arith.constant 0 : index
    %c0_31 = arith.constant 0 : index
    %43 = vector.load %arg5[%c1_29, %c0_30, %c0_31] : memref<5x256x512xf32, #tpu.memory_space<vmem>>, vector<1x256x512xf32>
    %44 = vector.shape_cast %43 : vector<1x256x512xf32> to vector<256x512xf32>
    %cst_32 = arith.constant dense<0.000000e+00> : vector<8x512xf32>
    %45 = tpu.matmul %42, %44, %cst_32 {dimension_numbers = #tpu.dot_dimension_numbers<[1], [0], [0], [1], [0, 0, 1, 1], [], []>} : vector<8x256xf32>, vector<256x512xf32>, vector<8x512xf32> -> vector<8x512xf32>
    %46 = arith.addf %41, %45 : vector<8x512xf32>
    %47 = vector.extract_strided_slice %37 {offsets = [2, 0], sizes = [8, 256], strides = [1, 1]} : vector<12x256xf32> to vector<8x256xf32>
    %c2_33 = arith.constant 2 : index
    %c0_34 = arith.constant 0 : index
    %c0_35 = arith.constant 0 : index
    %48 = vector.load %arg5[%c2_33, %c0_34, %c0_35] : memref<5x256x512xf32, #tpu.memory_space<vmem>>, vector<1x256x512xf32>
    %49 = vector.shape_cast %48 : vector<1x256x512xf32> to vector<256x512xf32>
    %cst_36 = arith.constant dense<0.000000e+00> : vector<8x512xf32>
    %50 = tpu.matmul %47, %49, %cst_36 {dimension_numbers = #tpu.dot_dimension_numbers<[1], [0], [0], [1], [0, 0, 1, 1], [], []>} : vector<8x256xf32>, vector<256x512xf32>, vector<8x512xf32> -> vector<8x512xf32>
    %51 = arith.addf %46, %50 : vector<8x512xf32>
    %52 = vector.extract_strided_slice %37 {offsets = [3, 0], sizes = [8, 256], strides = [1, 1]} : vector<12x256xf32> to vector<8x256xf32>
    %c3_37 = arith.constant 3 : index
    %c0_38 = arith.constant 0 : index
    %c0_39 = arith.constant 0 : index
    %53 = vector.load %arg5[%c3_37, %c0_38, %c0_39] : memref<5x256x512xf32, #tpu.memory_space<vmem>>, vector<1x256x512xf32>
    %54 = vector.shape_cast %53 : vector<1x256x512xf32> to vector<256x512xf32>
    %cst_40 = arith.constant dense<0.000000e+00> : vector<8x512xf32>
    %55 = tpu.matmul %52, %54, %cst_40 {dimension_numbers = #tpu.dot_dimension_numbers<[1], [0], [0], [1], [0, 0, 1, 1], [], []>} : vector<8x256xf32>, vector<256x512xf32>, vector<8x512xf32> -> vector<8x512xf32>
    %56 = arith.addf %51, %55 : vector<8x512xf32>
    %57 = vector.extract_strided_slice %37 {offsets = [4, 0], sizes = [8, 256], strides = [1, 1]} : vector<12x256xf32> to vector<8x256xf32>
    %c4_41 = arith.constant 4 : index
    %c0_42 = arith.constant 0 : index
    %c0_43 = arith.constant 0 : index
    %58 = vector.load %arg5[%c4_41, %c0_42, %c0_43] : memref<5x256x512xf32, #tpu.memory_space<vmem>>, vector<1x256x512xf32>
    %59 = vector.shape_cast %58 : vector<1x256x512xf32> to vector<256x512xf32>
    %cst_44 = arith.constant dense<0.000000e+00> : vector<8x512xf32>
    %60 = tpu.matmul %57, %59, %cst_44 {dimension_numbers = #tpu.dot_dimension_numbers<[1], [0], [0], [1], [0, 0, 1, 1], [], []>} : vector<8x256xf32>, vector<256x512xf32>, vector<8x512xf32> -> vector<8x512xf32>
    %61 = arith.addf %56, %60 : vector<8x512xf32>
    %c0_45 = arith.constant 0 : index
    %c0_46 = arith.constant 0 : index
    %62 = vector.load %arg6[%c0_45, %c0_46] : memref<1x512xf32, #tpu.memory_space<vmem>>, vector<1x512xf32>
    %63 = vector.broadcast %62 : vector<1x512xf32> to vector<8x512xf32>
    %64 = arith.addf %61, %63 : vector<8x512xf32>
    %c0_47 = arith.constant 0 : index
    %c0_48 = arith.constant 0 : index
    %65 = vector.load %arg7[%c0_47, %c0_48] : memref<4x8xf32, #tpu.memory_space<vmem>>, vector<4x8xf32>
    %cst_49 = arith.constant dense<0.000000e+00> : vector<4x512xf32>
    %66 = tpu.matmul %65, %64, %cst_49 {dimension_numbers = #tpu.dot_dimension_numbers<[1], [0], [0], [1], [0, 0, 1, 1], [], []>} : vector<4x8xf32>, vector<8x512xf32>, vector<4x512xf32> -> vector<4x512xf32>
    %c0_50 = arith.constant 0 : index
    %c0_51 = arith.constant 0 : index
    %67 = vector.load %arg8[%c0_50, %c0_51] : memref<4x8xf32, #tpu.memory_space<vmem>>, vector<4x8xf32>
    %cst_52 = arith.constant dense<0.000000e+00> : vector<4x512xf32>
    %68 = tpu.matmul %67, %64, %cst_52 {dimension_numbers = #tpu.dot_dimension_numbers<[1], [0], [0], [1], [0, 0, 1, 1], [], []>} : vector<4x8xf32>, vector<8x512xf32>, vector<4x512xf32> -> vector<4x512xf32>
    %69 = arith.maximumf %66, %68 : vector<4x512xf32>
    %70 = vector.extract_strided_slice %69 {offsets = [0, 0], sizes = [4, 256], strides = [1, 1]} : vector<4x512xf32> to vector<4x256xf32>
    %71 = vector.extract_strided_slice %69 {offsets = [0, 256], sizes = [4, 256], strides = [1, 1]} : vector<4x512xf32> to vector<4x256xf32>
    %72 = arith.maximumf %70, %71 : vector<4x256xf32>
    %cst_53 = arith.constant 0.000000e+00 : f32
    %73 = vector.broadcast %cst_53 : f32 to vector<4x256xf32>
    %74 = arith.maximumf %72, %73 : vector<4x256xf32>
    %c0_54 = arith.constant 0 : index
    %c0_55 = arith.constant 0 : index
    %75 = vector.load %arg10[%c0_54, %c0_55] : memref<1x100xf32, #tpu.memory_space<vmem>>, vector<1x100xf32>
    %76 = vector.extract_strided_slice %74 {offsets = [0, 0], sizes = [1, 256], strides = [1, 1]} : vector<4x256xf32> to vector<1x256xf32>
    %c0_56 = arith.constant 0 : index
    %c0_57 = arith.constant 0 : index
    %c0_58 = arith.constant 0 : index
    %77 = vector.load %arg9[%c0_56, %c0_57, %c0_58] : memref<4x256x100xf32, #tpu.memory_space<vmem>>, vector<1x256x100xf32>
    %78 = vector.shape_cast %77 : vector<1x256x100xf32> to vector<256x100xf32>
    %cst_59 = arith.constant dense<0.000000e+00> : vector<1x100xf32>
    %79 = tpu.matmul %76, %78, %cst_59 {dimension_numbers = #tpu.dot_dimension_numbers<[1], [0], [0], [1], [0, 0, 1, 1], [], []>} : vector<1x256xf32>, vector<256x100xf32>, vector<1x100xf32> -> vector<1x100xf32>
    %80 = arith.addf %75, %79 : vector<1x100xf32>
    %81 = vector.extract_strided_slice %74 {offsets = [1, 0], sizes = [1, 256], strides = [1, 1]} : vector<4x256xf32> to vector<1x256xf32>
    %c1_60 = arith.constant 1 : index
    %c0_61 = arith.constant 0 : index
    %c0_62 = arith.constant 0 : index
    %82 = vector.load %arg9[%c1_60, %c0_61, %c0_62] : memref<4x256x100xf32, #tpu.memory_space<vmem>>, vector<1x256x100xf32>
    %83 = vector.shape_cast %82 : vector<1x256x100xf32> to vector<256x100xf32>
    %cst_63 = arith.constant dense<0.000000e+00> : vector<1x100xf32>
    %84 = tpu.matmul %81, %83, %cst_63 {dimension_numbers = #tpu.dot_dimension_numbers<[1], [0], [0], [1], [0, 0, 1, 1], [], []>} : vector<1x256xf32>, vector<256x100xf32>, vector<1x100xf32> -> vector<1x100xf32>
    %85 = arith.addf %80, %84 : vector<1x100xf32>
    %86 = vector.extract_strided_slice %74 {offsets = [2, 0], sizes = [1, 256], strides = [1, 1]} : vector<4x256xf32> to vector<1x256xf32>
    %c2_64 = arith.constant 2 : index
    %c0_65 = arith.constant 0 : index
    %c0_66 = arith.constant 0 : index
    %87 = vector.load %arg9[%c2_64, %c0_65, %c0_66] : memref<4x256x100xf32, #tpu.memory_space<vmem>>, vector<1x256x100xf32>
    %88 = vector.shape_cast %87 : vector<1x256x100xf32> to vector<256x100xf32>
    %cst_67 = arith.constant dense<0.000000e+00> : vector<1x100xf32>
    %89 = tpu.matmul %86, %88, %cst_67 {dimension_numbers = #tpu.dot_dimension_numbers<[1], [0], [0], [1], [0, 0, 1, 1], [], []>} : vector<1x256xf32>, vector<256x100xf32>, vector<1x100xf32> -> vector<1x100xf32>
    %90 = arith.addf %85, %89 : vector<1x100xf32>
    %91 = vector.extract_strided_slice %74 {offsets = [3, 0], sizes = [1, 256], strides = [1, 1]} : vector<4x256xf32> to vector<1x256xf32>
    %c3_68 = arith.constant 3 : index
    %c0_69 = arith.constant 0 : index
    %c0_70 = arith.constant 0 : index
    %92 = vector.load %arg9[%c3_68, %c0_69, %c0_70] : memref<4x256x100xf32, #tpu.memory_space<vmem>>, vector<1x256x100xf32>
    %93 = vector.shape_cast %92 : vector<1x256x100xf32> to vector<256x100xf32>
    %cst_71 = arith.constant dense<0.000000e+00> : vector<1x100xf32>
    %94 = tpu.matmul %91, %93, %cst_71 {dimension_numbers = #tpu.dot_dimension_numbers<[1], [0], [0], [1], [0, 0, 1, 1], [], []>} : vector<1x256xf32>, vector<256x100xf32>, vector<1x100xf32> -> vector<1x100xf32>
    %95 = arith.addf %90, %94 : vector<1x100xf32>
    %cst_72 = arith.constant 0.000000e+00 : f32
    %96 = vector.broadcast %cst_72 : f32 to vector<1x100xf32>
    %97 = arith.maximumf %95, %96 : vector<1x100xf32>
    %c0_73 = arith.constant 0 : index
    %c0_74 = arith.constant 0 : index
    %98 = vector.load %arg11[%c0_73, %c0_74] : memref<100x20xf32, #tpu.memory_space<vmem>>, vector<100x20xf32>
    %cst_75 = arith.constant dense<0.000000e+00> : vector<1x20xf32>
    %99 = tpu.matmul %97, %98, %cst_75 {dimension_numbers = #tpu.dot_dimension_numbers<[1], [0], [0], [1], [0, 0, 1, 1], [], []>} : vector<1x100xf32>, vector<100x20xf32>, vector<1x20xf32> -> vector<1x20xf32>
    %c0_76 = arith.constant 0 : index
    %c0_77 = arith.constant 0 : index
    %100 = vector.load %arg12[%c0_76, %c0_77] : memref<1x20xf32, #tpu.memory_space<vmem>>, vector<1x20xf32>
    %101 = arith.addf %99, %100 : vector<1x20xf32>
    %c0_78 = arith.constant 0 : index
    %c0_79 = arith.constant 0 : index
    %102 = vector.load %arg13[%c0_78, %c0_79] : memref<1x20xf32, #tpu.memory_space<vmem>>, vector<1x20xf32>
    tpu.vector_store %arg13[%c0_78, %c0_79], %101 {strides = array<i32>} : memref<1x20xf32, #tpu.memory_space<vmem>>, vector<1x20xf32>,
    return
  }
}

</mosaic_0001>

<llo_original>
// kernel: cnn_forward.1
$region0: #{cnn_forward.1}
  #allocation0 [shape = 'u32[]', space=smem, size = 0x4, offset = 0x4, fixed_abs, tag = 'smem constant byte address 0x4 - core index']
  #allocation1 [shape = 'u32[144,128]{1,0:T(1,128)}', space=vmem, size = 0x12000, scoped, tag = 'internal scratch']
  %s0 = inlined_call_operand.vmem [shape: f32[28,56], index: 0, kind: input, shape index: {}]
  %s1 = inlined_call_operand.hbm [shape: f32[5,56,512], index: 1, kind: input, shape index: {}]
  %s2 = inlined_call_operand.hbm [shape: f32[1,512], index: 2, kind: input, shape index: {}]
  %s3 = inlined_call_operand.hbm [shape: f32[12,24], index: 3, kind: input, shape index: {}]
  %s4 = inlined_call_operand.hbm [shape: f32[12,24], index: 4, kind: input, shape index: {}]
  %s5 = inlined_call_operand.hbm [shape: f32[5,256,512], index: 5, kind: input, shape index: {}]
  %s6 = inlined_call_operand.hbm [shape: f32[1,512], index: 6, kind: input, shape index: {}]
  %s7 = inlined_call_operand.hbm [shape: f32[4,8], index: 7, kind: input, shape index: {}]
  %s8 = inlined_call_operand.hbm [shape: f32[4,8], index: 8, kind: input, shape index: {}]
  %s9 = inlined_call_operand.vmem [shape: f32[4,256,100], index: 9, kind: input, shape index: {}]
  %s10 = inlined_call_operand.hbm [shape: f32[1,100], index: 10, kind: input, shape index: {}]
  %s11 = inlined_call_operand.vmem [shape: f32[100,20], index: 11, kind: input, shape index: {}]
  %s12 = inlined_call_operand.hbm [shape: f32[1,20], index: 12, kind: input, shape index: {}]
  %s13 = inlined_call_operand.vmem [shape: f32[1,20], index: 13, kind: output, shape index: {}]
  %s14 = sld [smem:[#allocation0]]
  $region102: #{cnn_forward.1} parent=0
    _
  %s16 = ssub.s32 1, %s14
  %s17 = scalar_select 0, %s16, %s14
  $region1: #{cnn_forward.1} parent=0
    #allocation2 [shape = 'u8[573440]{0}', space=vmem, size = 0x8c000, scoped, tag = 'input window, operand 1, single buffered']
    #allocation3 [shape = 's32[1]{0}', space=sflag, size = 0x4, scoped, tag = 'scoped memory for cnn_forward.1']
    #allocation4 [shape = 'u8[2048]{0}', space=vmem, size = 0x800, scoped, tag = 'input window, operand 2, single buffered']
    #allocation5 [shape = 's32[1]{0}', space=sflag, size = 0x4, scoped, tag = 'scoped memory for cnn_forward.1']
    #allocation6 [shape = 'u8[8192]{0}', space=vmem, size = 0x2000, scoped, tag = 'input window, operand 3, single buffered']
    #allocation7 [shape = 'u8[8192]{0}', space=vmem, size = 0x2000, scoped, tag = 'input window, operand 4, single buffered']
    #allocation8 [shape = 's32[1]{0}', space=sflag, size = 0x4, scoped, tag = 'scoped memory for cnn_forward.1']
    #allocation9 [shape = 'u8[2621440]{0}', space=vmem, size = 0x280000, scoped, tag = 'input window, operand 5, single buffered']
    #allocation10 [shape = 'u8[2048]{0}', space=vmem, size = 0x800, scoped, tag = 'input window, operand 6, single buffered']
    #allocation11 [shape = 's32[1]{0}', space=sflag, size = 0x4, scoped, tag = 'scoped memory for cnn_forward.1']
    #allocation12 [shape = 'u8[2048]{0}', space=vmem, size = 0x800, scoped, tag = 'input window, operand 7, single buffered']
    #allocation13 [shape = 'u8[2048]{0}', space=vmem, size = 0x800, scoped, tag = 'input window, operand 8, single buffered']
    #allocation14 [shape = 's32[1]{0}', space=sflag, size = 0x4, scoped, tag = 'scoped memory for cnn_forward.1']
    #allocation15 [shape = 'u8[512]{0}', space=vmem, size = 0x400, scoped, tag = 'input window, operand 10, single buffered']
    #allocation16 [shape = 'u8[512]{0}', space=vmem, size = 0x400, scoped, tag = 'input window, operand 12, single buffered']
    #allocation17 [shape = 's32[1]{0}', space=sflag, size = 0x4, scoped, tag = 'scoped memory for cnn_forward.1']
    %18 = vsyncpa [#allocation3], 0
    %19 = vsyncpa [#allocation5], 0
    %20 = vsyncpa [#allocation8], 0
    %21 = vsyncpa [#allocation11], 0
    %22 = vsyncpa [#allocation14], 0
    %23 = vsyncpa [#allocation17], 0
    // Predicated region
    $region2: #{cnn_forward.1} parent=1 // pred_check
      _
    $region3: #{cnn_forward.1} parent=1 // pred_check_branch
      %25 = sbr.rel (0) target = $region5
    $region4: #{cnn_forward.1} parent=1 // pred_region
      _
    $region5: #{cnn_forward.1} parent=1 // pred_fallthru
      _
    // Predicated region
    $region6: #{cnn_forward.1} parent=1 // pred_check
      _
    $region7: #{cnn_forward.1} parent=1 // pred_check_branch
      %27 = sbr.rel (0) target = $region9
    $region8: #{cnn_forward.1} parent=1 // pred_region
      %s29 = ssub.s32 17920, 17920
      %30 = vsyncadd [#allocation3], %s29
      %s31 = sshll.u32 [#allocation2], 4
      %s32 = int_to_ptr.vmem [resolvable:$true] %s31
      %37 = dma.hbm_to_vmem [thread:$0]  %s1, 17920, %s32, [#allocation3], 512, 512, 32
    $region9: #{cnn_forward.1} parent=1 // pred_fallthru
      _
    // Predicated region
    $region10: #{cnn_forward.1} parent=1 // pred_check
      _
    $region11: #{cnn_forward.1} parent=1 // pred_check_branch
      %39 = sbr.rel (0) target = $region13
    $region12: #{cnn_forward.1} parent=1 // pred_region
      %s41 = ssub.s32 64, 64
      %42 = vsyncadd [#allocation5], %s41
      %s44 = sshll.u32 [#allocation4], 4
      %s45 = int_to_ptr.vmem [resolvable:$true] %s44
      %47 = dma.hbm_to_vmem [thread:$0]  %s2, 64, %s45, [#allocation5]
    $region13: #{cnn_forward.1} parent=1 // pred_fallthru
      _
    // Predicated region
    $region14: #{cnn_forward.1} parent=1 // pred_check
      _
    $region15: #{cnn_forward.1} parent=1 // pred_check_branch
      %49 = sbr.rel (0) target = $region17
    $region16: #{cnn_forward.1} parent=1 // pred_region
      %s51 = ssub.s32 256, 256
      %52 = vsyncadd [#allocation5], %s51
      %s53 = sshll.u32 [#allocation6], 4
      %s54 = int_to_ptr.vmem [resolvable:$true] %s53
      %59 = dma.hbm_to_vmem [thread:$0]  %s3, 256, %s54, [#allocation5], 128, 128, 8
    $region17: #{cnn_forward.1} parent=1 // pred_fallthru
      _
    // Predicated region
    $region18: #{cnn_forward.1} parent=1 // pred_check
      _
    $region19: #{cnn_forward.1} parent=1 // pred_check_branch
      %61 = sbr.rel (0) target = $region21
    $region20: #{cnn_forward.1} parent=1 // pred_region
      %s63 = ssub.s32 256, 256
      %64 = vsyncadd [#allocation8], %s63
      %s65 = sshll.u32 [#allocation7], 4
      %s66 = int_to_ptr.vmem [resolvable:$true] %s65
      %71 = dma.hbm_to_vmem [thread:$0]  %s4, 256, %s66, [#allocation8], 128, 128, 8
    $region21: #{cnn_forward.1} parent=1 // pred_fallthru
      _
    // Predicated region
    $region22: #{cnn_forward.1} parent=1 // pred_check
      _
    $region23: #{cnn_forward.1} parent=1 // pred_check_branch
      %73 = sbr.rel (0) target = $region25
    $region24: #{cnn_forward.1} parent=1 // pred_region
      %s75 = ssub.s32 81920, 81920
      %76 = vsyncadd [#allocation8], %s75
      %s77 = sshll.u32 [#allocation9], 4
      %s78 = int_to_ptr.vmem [resolvable:$true] %s77
      %83 = dma.hbm_to_vmem [thread:$0]  %s5, 81920, %s78, [#allocation8], 512, 512, 32
    $region25: #{cnn_forward.1} parent=1 // pred_fallthru
      _
    // Predicated region
    $region26: #{cnn_forward.1} parent=1 // pred_check
      _
    $region27: #{cnn_forward.1} parent=1 // pred_check_branch
      %85 = sbr.rel (0) target = $region29
    $region28: #{cnn_forward.1} parent=1 // pred_region
      %s87 = ssub.s32 64, 64
      %88 = vsyncadd [#allocation11], %s87
      %s90 = sshll.u32 [#allocation10], 4
      %s91 = int_to_ptr.vmem [resolvable:$true] %s90
      %93 = dma.hbm_to_vmem [thread:$0]  %s6, 64, %s91, [#allocation11]
    $region29: #{cnn_forward.1} parent=1 // pred_fallthru
      _
    // Predicated region
    $region30: #{cnn_forward.1} parent=1 // pred_check
      _
    $region31: #{cnn_forward.1} parent=1 // pred_check_branch
      %95 = sbr.rel (0) target = $region33
    $region32: #{cnn_forward.1} parent=1 // pred_region
      %s97 = ssub.s32 64, 64
      %98 = vsyncadd [#allocation11], %s97
      %s100 = sshll.u32 [#allocation12], 4
      %s101 = int_to_ptr.vmem [resolvable:$true] %s100
      %103 = dma.hbm_to_vmem [thread:$0]  %s7, 64, %s101, [#allocation11]
    $region33: #{cnn_forward.1} parent=1 // pred_fallthru
      _
    // Predicated region
    $region34: #{cnn_forward.1} parent=1 // pred_check
      _
    $region35: #{cnn_forward.1} parent=1 // pred_check_branch
      %105 = sbr.rel (0) target = $region37
    $region36: #{cnn_forward.1} parent=1 // pred_region
      %s107 = ssub.s32 64, 64
      %108 = vsyncadd [#allocation14], %s107
      %s110 = sshll.u32 [#allocation13], 4
      %s111 = int_to_ptr.vmem [resolvable:$true] %s110
      %113 = dma.hbm_to_vmem [thread:$0]  %s8, 64, %s111, [#allocation14]
    $region37: #{cnn_forward.1} parent=1 // pred_fallthru
      _
    // Predicated region
    $region38: #{cnn_forward.1} parent=1 // pred_check
      _
    $region39: #{cnn_forward.1} parent=1 // pred_check_branch
      %115 = sbr.rel (0) target = $region41
    $region40: #{cnn_forward.1} parent=1 // pred_region
      _
    $region41: #{cnn_forward.1} parent=1 // pred_fallthru
      _
    // Predicated region
    $region42: #{cnn_forward.1} parent=1 // pred_check
      _
    $region43: #{cnn_forward.1} parent=1 // pred_check_branch
      %117 = sbr.rel (0) target = $region45
    $region44: #{cnn_forward.1} parent=1 // pred_region
      %s119 = ssub.s32 16, 16
      %120 = vsyncadd [#allocation14], %s119
      %s122 = sshll.u32 [#allocation15], 4
      %s123 = int_to_ptr.vmem [resolvable:$true] %s122
      %125 = dma.hbm_to_vmem [thread:$0]  %s10, 16, %s123, [#allocation14]
    $region45: #{cnn_forward.1} parent=1 // pred_fallthru
      _
    // Predicated region
    $region46: #{cnn_forward.1} parent=1 // pred_check
      _
    $region47: #{cnn_forward.1} parent=1 // pred_check_branch
      %127 = sbr.rel (0) target = $region49
    $region48: #{cnn_forward.1} parent=1 // pred_region
      _
    $region49: #{cnn_forward.1} parent=1 // pred_fallthru
      _
    // Predicated region
    $region50: #{cnn_forward.1} parent=1 // pred_check
      _
    $region51: #{cnn_forward.1} parent=1 // pred_check_branch
      %129 = sbr.rel (0) target = $region53
    $region52: #{cnn_forward.1} parent=1 // pred_region
      %s131 = ssub.s32 16, 16
      %132 = vsyncadd [#allocation17], %s131
      %s134 = sshll.u32 [#allocation16], 4
      %s135 = int_to_ptr.vmem [resolvable:$true] %s134
      %137 = dma.hbm_to_vmem [thread:$0]  %s12, 16, %s135, [#allocation17]
    $region53: #{cnn_forward.1} parent=1 // pred_fallthru
      _
    // Predicated region
    $region54: #{cnn_forward.1} parent=1 // pred_check
      _
    $region55: #{cnn_forward.1} parent=1 // pred_check_branch
      %139 = sbr.rel (0) target = $region57
    $region56: #{cnn_forward.1} parent=1 // pred_region
      %140 = dma.done [#allocation3], 17920
    $region57: #{cnn_forward.1} parent=1 // pred_fallthru
      _
    // Predicated region
    $region58: #{cnn_forward.1} parent=1 // pred_check
      _
    $region59: #{cnn_forward.1} parent=1 // pred_check_branch
      %142 = sbr.rel (0) target = $region61
    $region60: #{cnn_forward.1} parent=1 // pred_region
      %143 = dma.done [#allocation5], 64
    $region61: #{cnn_forward.1} parent=1 // pred_fallthru
      _
    // Predicated region
    $region62: #{cnn_forward.1} parent=1 // pred_check
      _
    $region63: #{cnn_forward.1} parent=1 // pred_check_branch
      %145 = sbr.rel (0) target = $region65
    $region64: #{cnn_forward.1} parent=1 // pred_region
      %146 = dma.done [#allocation5], 256
    $region65: #{cnn_forward.1} parent=1 // pred_fallthru
      _
    // Predicated region
    $region66: #{cnn_forward.1} parent=1 // pred_check
      _
    $region67: #{cnn_forward.1} parent=1 // pred_check_branch
      %148 = sbr.rel (0) target = $region69
    $region68: #{cnn_forward.1} parent=1 // pred_region
      %149 = dma.done [#allocation8], 256
    $region69: #{cnn_forward.1} parent=1 // pred_fallthru
      _
    // Predicated region
    $region70: #{cnn_forward.1} parent=1 // pred_check
      _
    $region71: #{cnn_forward.1} parent=1 // pred_check_branch
      %151 = sbr.rel (0) target = $region73
    $region72: #{cnn_forward.1} parent=1 // pred_region
      %152 = dma.done [#allocation8], 81920
    $region73: #{cnn_forward.1} parent=1 // pred_fallthru
      _
    // Predicated region
    $region74: #{cnn_forward.1} parent=1 // pred_check
      _
    $region75: #{cnn_forward.1} parent=1 // pred_check_branch
      %154 = sbr.rel (0) target = $region77
    $region76: #{cnn_forward.1} parent=1 // pred_region
      %155 = dma.done [#allocation11], 64
    $region77: #{cnn_forward.1} parent=1 // pred_fallthru
      _
    // Predicated region
    $region78: #{cnn_forward.1} parent=1 // pred_check
      _
    $region79: #{cnn_forward.1} parent=1 // pred_check_branch
      %157 = sbr.rel (0) target = $region81
    $region80: #{cnn_forward.1} parent=1 // pred_region
      %158 = dma.done [#allocation11], 64
    $region81: #{cnn_forward.1} parent=1 // pred_fallthru
      _
    // Predicated region
    $region82: #{cnn_forward.1} parent=1 // pred_check
      _
    $region83: #{cnn_forward.1} parent=1 // pred_check_branch
      %160 = sbr.rel (0) target = $region85
    $region84: #{cnn_forward.1} parent=1 // pred_region
      %161 = dma.done [#allocation14], 64
    $region85: #{cnn_forward.1} parent=1 // pred_fallthru
      _
    // Predicated region
    $region86: #{cnn_forward.1} parent=1 // pred_check
      _
    $region87: #{cnn_forward.1} parent=1 // pred_check_branch
      %163 = sbr.rel (0) target = $region89
    $region88: #{cnn_forward.1} parent=1 // pred_region
      %164 = dma.done [#allocation14], 16
    $region89: #{cnn_forward.1} parent=1 // pred_fallthru
      _
    // Predicated region
    $region90: #{cnn_forward.1} parent=1 // pred_check
      _
    $region91: #{cnn_forward.1} parent=1 // pred_check_branch
      %166 = sbr.rel (0) target = $region93
    $region92: #{cnn_forward.1} parent=1 // pred_region
      %167 = dma.done [#allocation17], 16
    $region93: #{cnn_forward.1} parent=1 // pred_fallthru
      _
    %v168 = vld [vmem:[%s0] sm:$0xff]
    %v169 = vld [vmem:[%s0 + $0x8] sm:$0xff]
    %v170 = vld [vmem:[%s0 + $0x10] sm:$0xff]
    %v171 = vld [vmem:[%s0 + $0x18] sm:$0xf]
    %v172 = vld [vmem:[#allocation2] sm:$0xff]
    %v173 = vld [vmem:[#allocation2 + $0x8] sm:$0xff]
    %v174 = vld [vmem:[#allocation2 + $0x10] sm:$0xff]
    %v175 = vld [vmem:[#allocation2 + $0x18] sm:$0xff]
    %v176 = vld [vmem:[#allocation2 + $0x20] sm:$0xff]
    %v177 = vld [vmem:[#allocation2 + $0x28] sm:$0xff]
    %v178 = vld [vmem:[#allocation2 + $0x30] sm:$0xff]
    %v179 = vld [vmem:[#allocation2 + $0x38] sm:$0xff]
    %v180 = vld [vmem:[#allocation2 + $0x40] sm:$0xff]
    %v181 = vld [vmem:[#allocation2 + $0x48] sm:$0xff]
    %v182 = vld [vmem:[#allocation2 + $0x50] sm:$0xff]
    %v183 = vld [vmem:[#allocation2 + $0x58] sm:$0xff]
    %v184 = vld [vmem:[#allocation2 + $0x60] sm:$0xff]
    %v185 = vld [vmem:[#allocation2 + $0x68] sm:$0xff]
    %v186 = vld [vmem:[#allocation2 + $0x70] sm:$0xff]
    %v187 = vld [vmem:[#allocation2 + $0x78] sm:$0xff]
    %v188 = vld [vmem:[#allocation2 + $0x80] sm:$0xff]
    %v189 = vld [vmem:[#allocation2 + $0x88] sm:$0xff]
    %v190 = vld [vmem:[#allocation2 + $0x90] sm:$0xff]
    %v191 = vld [vmem:[#allocation2 + $0x98] sm:$0xff]
    %v192 = vld [vmem:[#allocation2 + $0xa0] sm:$0xff]
    %v193 = vld [vmem:[#allocation2 + $0xa8] sm:$0xff]
    %v194 = vld [vmem:[#allocation2 + $0xb0] sm:$0xff]
    %v195 = vld [vmem:[#allocation2 + $0xb8] sm:$0xff]
    %v196 = vld [vmem:[#allocation2 + $0xc0] sm:$0xff]
    %v197 = vld [vmem:[#allocation2 + $0xc8] sm:$0xff]
    %v198 = vld [vmem:[#allocation2 + $0xd0] sm:$0xff]
    %v199 = vld [vmem:[#allocation2 + $0xd8] sm:$0xff]
    %s200 = scalar_lea.vmem [#allocation2], 224
    %v201 = vld [vmem:[%s200] sm:$0xff]
    %v202 = vld [vmem:[%s200 + $0x8] sm:$0xff]
    %v203 = vld [vmem:[%s200 + $0x10] sm:$0xff]
    %v204 = vld [vmem:[%s200 + $0x18] sm:$0xff]
    %v205 = vld [vmem:[%s200 + $0x20] sm:$0xff]
    %v206 = vld [vmem:[%s200 + $0x28] sm:$0xff]
    %v207 = vld [vmem:[%s200 + $0x30] sm:$0xff]
    %v208 = vld [vmem:[%s200 + $0x38] sm:$0xff]
    %v209 = vld [vmem:[%s200 + $0x40] sm:$0xff]
    %v210 = vld [vmem:[%s200 + $0x48] sm:$0xff]
    %v211 = vld [vmem:[%s200 + $0x50] sm:$0xff]
    %v212 = vld [vmem:[%s200 + $0x58] sm:$0xff]
    %v213 = vld [vmem:[%s200 + $0x60] sm:$0xff]
    %v214 = vld [vmem:[%s200 + $0x68] sm:$0xff]
    %v215 = vld [vmem:[%s200 + $0x70] sm:$0xff]
    %v216 = vld [vmem:[%s200 + $0x78] sm:$0xff]
    %v217 = vld [vmem:[%s200 + $0x80] sm:$0xff]
    %v218 = vld [vmem:[%s200 + $0x88] sm:$0xff]
    %v219 = vld [vmem:[%s200 + $0x90] sm:$0xff]
    %v220 = vld [vmem:[%s200 + $0x98] sm:$0xff]
    %v221 = vld [vmem:[%s200 + $0xa0] sm:$0xff]
    %v222 = vld [vmem:[%s200 + $0xa8] sm:$0xff]
    %v223 = vld [vmem:[%s200 + $0xb0] sm:$0xff]
    %v224 = vld [vmem:[%s200 + $0xb8] sm:$0xff]
    %v225 = vld [vmem:[%s200 + $0xc0] sm:$0xff]
    %v226 = vld [vmem:[%s200 + $0xc8] sm:$0xff]
    %v227 = vld [vmem:[%s200 + $0xd0] sm:$0xff]
    %v228 = vld [vmem:[%s200 + $0xd8] sm:$0xff]
    %vm233 = vcmask 1046528
    %v234 = vrot.slane %v168, 1
    %v235 = vrot.slane %v169, 1
    %v236 = vsel %vm233, %v234, %v235
    %v237 = vrot.slane %v170, 1
    %v238 = vsel %vm233, %v235, %v237
    %v239 = vrot.slane %v171, 1
    %v240 = vsel %vm233, %v237, %v239
    %vm241 = vcmask 457728
    %v242 = vsel %vm241, %v236, 0
    %v244 = vsel %vm241, %v238, 0
    %v246 = vsel %vm241, %v240, 0
    %248 = vmatprep.subr.mxu0 %v202
    %249 = vmatpush1.msra.mxu0 %v201
    %250 = vmatprep.subr.mxu0 %v206
    %251 = vmatpush1.msra.mxu0 %v205
    %252 = vmatprep.subr.mxu0 %v210
    %253 = vmatpush1.msra.mxu0 %v209
    %254 = vmatprep.subr.mxu0 %v214
    %255 = vmatpush1.msra.mxu0 %v213
    %256 = vmatprep.subr.mxu0 %v218
    %257 = vmatpush1.msra.mxu0 %v217
    %258 = vmatprep.subr.mxu0 %v222
    %259 = vmatpush1.msra.mxu0 %v221
    %260 = vmatprep.subr.mxu0 %v226
    %261 = vmatpush1.msra.mxu0 %v225
    %262 = vmatprep.subr.mxu0 0.0
    %263 = vmatpush1.msra.mxu0 0.0
    %264 = vmatprep.subr.mxu0 0.0
    %265 = vmatpush1.msra.mxu0 0.0
    %266 = vmatprep.subr.mxu0 0.0
    %267 = vmatpush1.msra.mxu0 0.0
    %268 = vmatprep.subr.mxu0 0.0
    %269 = vmatpush1.msra.mxu0 0.0
    %270 = vmatprep.subr.mxu0 0.0
    %271 = vmatpush1.msra.mxu0 0.0
    %272 = vmatprep.subr.mxu0 0.0
    %273 = vmatpush1.msra.mxu0 0.0
    %274 = vmatprep.subr.mxu0 0.0
    %275 = vmatpush1.msra.mxu0 0.0
    %276 = vmatprep.subr.mxu0 0.0
    %277 = vmatpush1.msra.mxu0 0.0
    %278 = vmatprep.subr.mxu0 0.0
    %279 = vmatpush1.msra.mxu0 0.0
    %280 = vmatprep.subr.mxu0 0.0
    %281 = vmatpush1.msra.mxu0 0.0
    %282 = vmatprep.subr.mxu0 0.0
    %283 = vmatpush1.msra.mxu0 0.0
    %284 = vmatprep.subr.mxu0 0.0
    %285 = vmatpush1.msra.mxu0 0.0
    %286 = vmatprep.subr.mxu0 0.0
    %287 = vmatpush1.msra.mxu0 0.0
    %288 = vmatprep.subr.mxu0 0.0
    %289 = vmatpush1.msra.mxu0 0.0
    %290 = vmatprep.subr.mxu0 0.0
    %291 = vmatpush1.msra.mxu0 0.0
    %292 = vmatprep.subr.mxu0 0.0
    %293 = vmatpush1.msra.mxu0 0.0
    %294 = vmatprep.subr.mxu0 0.0
    %295 = vmatpush1.msra.mxu0 0.0
    %296 = vmatprep.subr.mxu0 0.0
    %297 = vmatpush1.msra.mxu0 0.0
    %298 = vmatprep.subr.mxu0 0.0
    %299 = vmatpush1.msra.mxu0 0.0
    %300 = vmatprep.subr.mxu0 0.0
    %301 = vmatpush1.msra.mxu0 0.0
    %302 = vmatprep.subr.mxu0 0.0
    %303 = vmatpush1.msra.mxu0 0.0
    %304 = vmatprep.subr.mxu0 0.0
    %305 = vmatpush1.msra.mxu0 0.0
    %306 = vmatprep.subr.mxu0 0.0
    %307 = vmatpush1.msra.mxu0 0.0
    %308 = vmatprep.subr.mxu0 0.0
    %309 = vmatpush1.msra.mxu0 0.0
    %310 = vmatprep.subr.mxu0 0.0
    %311 = vmatpush1.msra.mxu0 0.0
    %312 = vmatprep.mubr.f32.mxu0 0.0
    %313 = vmatmul.mubr.f32.gmra.mrb[0].mxu0 %v242
    %v314 = vpop.f32.mrb[0].mxu0
    %v315 = vadd.f32 0.0, %v314
    %v316 = vpop.f32.mrb[0].mxu0
    %v317 = vadd.f32 0.0, %v316
    %318 = vmatprep.mubr.f32.mxu0 0.0
    %319 = vmatmul.mubr.f32.gmra.mrb[0].mxu0 %v244
    %v320 = vpop.f32.mrb[0].mxu0
    %v321 = vadd.f32 0.0, %v320
    %v322 = vpop.f32.mrb[0].mxu0
    %v323 = vadd.f32 0.0, %v322
    %324 = vmatprep.mubr.f32.mxu0 0.0
    %325 = vmatmul.mubr.f32.gmra.mrb[0].mxu0 %v246
    %v326 = vpop.f32.mrb[0].mxu0
    %v327 = vadd.f32 0.0, %v326
    %v328 = vpop.f32.mrb[0].mxu0
    %v329 = vadd.f32 0.0, %v328
    %330 = vdwg.mxu0
    %331 = vmatprep.subr.mxu0 %v204
    %332 = vmatpush1.msra.mxu0 %v203
    %333 = vmatprep.subr.mxu0 %v208
    %334 = vmatpush1.msra.mxu0 %v207
    %335 = vmatprep.subr.mxu0 %v212
    %336 = vmatpush1.msra.mxu0 %v211
    %337 = vmatprep.subr.mxu0 %v216
    %338 = vmatpush1.msra.mxu0 %v215
    %339 = vmatprep.subr.mxu0 %v220
    %340 = vmatpush1.msra.mxu0 %v219
    %341 = vmatprep.subr.mxu0 %v224
    %342 = vmatpush1.msra.mxu0 %v223
    %343 = vmatprep.subr.mxu0 %v228
    %344 = vmatpush1.msra.mxu0 %v227
    %345 = vmatprep.subr.mxu0 0.0
    %346 = vmatpush1.msra.mxu0 0.0
    %347 = vmatprep.subr.mxu0 0.0
    %348 = vmatpush1.msra.mxu0 0.0
    %349 = vmatprep.subr.mxu0 0.0
    %350 = vmatpush1.msra.mxu0 0.0
    %351 = vmatprep.subr.mxu0 0.0
    %352 = vmatpush1.msra.mxu0 0.0
    %353 = vmatprep.subr.mxu0 0.0
    %354 = vmatpush1.msra.mxu0 0.0
    %355 = vmatprep.subr.mxu0 0.0
    %356 = vmatpush1.msra.mxu0 0.0
    %357 = vmatprep.subr.mxu0 0.0
    %358 = vmatpush1.msra.mxu0 0.0
    %359 = vmatprep.subr.mxu0 0.0
    %360 = vmatpush1.msra.mxu0 0.0
    %361 = vmatprep.subr.mxu0 0.0
    %362 = vmatpush1.msra.mxu0 0.0
    %363 = vmatprep.subr.mxu0 0.0
    %364 = vmatpush1.msra.mxu0 0.0
    %365 = vmatprep.subr.mxu0 0.0
    %366 = vmatpush1.msra.mxu0 0.0
    %367 = vmatprep.subr.mxu0 0.0
    %368 = vmatpush1.msra.mxu0 0.0
    %369 = vmatprep.subr.mxu0 0.0
    %370 = vmatpush1.msra.mxu0 0.0
    %371 = vmatprep.subr.mxu0 0.0
    %372 = vmatpush1.msra.mxu0 0.0
    %373 = vmatprep.subr.mxu0 0.0
    %374 = vmatpush1.msra.mxu0 0.0
    %375 = vmatprep.subr.mxu0 0.0
    %376 = vmatpush1.msra.mxu0 0.0
    %377 = vmatprep.subr.mxu0 0.0
    %378 = vmatpush1.msra.mxu0 0.0
    %379 = vmatprep.subr.mxu0 0.0
    %380 = vmatpush1.msra.mxu0 0.0
    %381 = vmatprep.subr.mxu0 0.0
    %382 = vmatpush1.msra.mxu0 0.0
    %383 = vmatprep.subr.mxu0 0.0
    %384 = vmatpush1.msra.mxu0 0.0
    %385 = vmatprep.subr.mxu0 0.0
    %386 = vmatpush1.msra.mxu0 0.0
    %387 = vmatprep.subr.mxu0 0.0
    %388 = vmatpush1.msra.mxu0 0.0
    %389 = vmatprep.subr.mxu0 0.0
    %390 = vmatpush1.msra.mxu0 0.0
    %391 = vmatprep.subr.mxu0 0.0
    %392 = vmatpush1.msra.mxu0 0.0
    %393 = vmatprep.subr.mxu0 0.0
    %394 = vmatpush1.msra.mxu0 0.0
    %395 = vmatprep.mubr.f32.mxu0 0.0
    %396 = vmatmul.mubr.f32.gmra.mrb[0].mxu0 %v242
    %v397 = vpop.f32.mrb[0].mxu0
    %v398 = vadd.f32 0.0, %v397
    %v399 = vpop.f32.mrb[0].mxu0
    %v400 = vadd.f32 0.0, %v399
    %401 = vmatprep.mubr.f32.mxu0 0.0
    %402 = vmatmul.mubr.f32.gmra.mrb[0].mxu0 %v244
    %v403 = vpop.f32.mrb[0].mxu0
    %v404 = vadd.f32 0.0, %v403
    %v405 = vpop.f32.mrb[0].mxu0
    %v406 = vadd.f32 0.0, %v405
    %407 = vmatprep.mubr.f32.mxu0 0.0
    %408 = vmatmul.mubr.f32.gmra.mrb[0].mxu0 %v246
    %v409 = vpop.f32.mrb[0].mxu0
    %v410 = vadd.f32 0.0, %v409
    %v411 = vpop.f32.mrb[0].mxu0
    %v412 = vadd.f32 0.0, %v411
    %413 = vdwg.mxu0
    %v414 = vsel %vm241, %v168, 0
    %v416 = vsel %vm241, %v169, 0
    %v418 = vsel %vm241, %v170, 0
    %420 = vmatprep.subr.mxu0 %v173
    %421 = vmatpush1.msra.mxu0 %v172
    %422 = vmatprep.subr.mxu0 %v177
    %423 = vmatpush1.msra.mxu0 %v176
    %424 = vmatprep.subr.mxu0 %v181
    %425 = vmatpush1.msra.mxu0 %v180
    %426 = vmatprep.subr.mxu0 %v185
    %427 = vmatpush1.msra.mxu0 %v184
    %428 = vmatprep.subr.mxu0 %v189
    %429 = vmatpush1.msra.mxu0 %v188
    %430 = vmatprep.subr.mxu0 %v193
    %431 = vmatpush1.msra.mxu0 %v192
    %432 = vmatprep.subr.mxu0 %v197
    %433 = vmatpush1.msra.mxu0 %v196
    %434 = vmatprep.subr.mxu0 0.0
    %435 = vmatpush1.msra.mxu0 0.0
    %436 = vmatprep.subr.mxu0 0.0
    %437 = vmatpush1.msra.mxu0 0.0
    %438 = vmatprep.subr.mxu0 0.0
    %439 = vmatpush1.msra.mxu0 0.0
    %440 = vmatprep.subr.mxu0 0.0
    %441 = vmatpush1.msra.mxu0 0.0
    %442 = vmatprep.subr.mxu0 0.0
    %443 = vmatpush1.msra.mxu0 0.0
    %444 = vmatprep.subr.mxu0 0.0
    %445 = vmatpush1.msra.mxu0 0.0
    %446 = vmatprep.subr.mxu0 0.0
    %447 = vmatpush1.msra.mxu0 0.0
    %448 = vmatprep.subr.mxu0 0.0
    %449 = vmatpush1.msra.mxu0 0.0
    %450 = vmatprep.subr.mxu0 0.0
    %451 = vmatpush1.msra.mxu0 0.0
    %452 = vmatprep.subr.mxu0 0.0
    %453 = vmatpush1.msra.mxu0 0.0
    %454 = vmatprep.subr.mxu0 0.0
    %455 = vmatpush1.msra.mxu0 0.0
    %456 = vmatprep.subr.mxu0 0.0
    %457 = vmatpush1.msra.mxu0 0.0
    %458 = vmatprep.subr.mxu0 0.0
    %459 = vmatpush1.msra.mxu0 0.0
    %460 = vmatprep.subr.mxu0 0.0
    %461 = vmatpush1.msra.mxu0 0.0
    %462 = vmatprep.subr.mxu0 0.0
    %463 = vmatpush1.msra.mxu0 0.0
    %464 = vmatprep.subr.mxu0 0.0
    %465 = vmatpush1.msra.mxu0 0.0
    %466 = vmatprep.subr.mxu0 0.0
    %467 = vmatpush1.msra.mxu0 0.0
    %468 = vmatprep.subr.mxu0 0.0
    %469 = vmatpush1.msra.mxu0 0.0
    %470 = vmatprep.subr.mxu0 0.0
    %471 = vmatpush1.msra.mxu0 0.0
    %472 = vmatprep.subr.mxu0 0.0
    %473 = vmatpush1.msra.mxu0 0.0
    %474 = vmatprep.subr.mxu0 0.0
    %475 = vmatpush1.msra.mxu0 0.0
    %476 = vmatprep.subr.mxu0 0.0
    %477 = vmatpush1.msra.mxu0 0.0
    %478 = vmatprep.subr.mxu0 0.0
    %479 = vmatpush1.msra.mxu0 0.0
    %480 = vmatprep.subr.mxu0 0.0
    %481 = vmatpush1.msra.mxu0 0.0
    %482 = vmatprep.subr.mxu0 0.0
    %483 = vmatpush1.msra.mxu0 0.0
    %484 = vmatprep.mubr.f32.mxu0 0.0
    %485 = vmatmul.mubr.f32.gmra.mrb[0].mxu0 %v414
    %v486 = vpop.f32.mrb[0].mxu0
    %v487 = vadd.f32 %v315, %v486
    %v488 = vpop.f32.mrb[0].mxu0
    %v489 = vadd.f32 %v317, %v488
    %490 = vmatprep.mubr.f32.mxu0 0.0
    %491 = vmatmul.mubr.f32.gmra.mrb[0].mxu0 %v416
    %v492 = vpop.f32.mrb[0].mxu0
    %v493 = vadd.f32 %v321, %v492
    %v494 = vpop.f32.mrb[0].mxu0
    %v495 = vadd.f32 %v323, %v494
    %496 = vmatprep.mubr.f32.mxu0 0.0
    %497 = vmatmul.mubr.f32.gmra.mrb[0].mxu0 %v418
    %v498 = vpop.f32.mrb[0].mxu0
    %v499 = vadd.f32 %v327, %v498
    %v500 = vpop.f32.mrb[0].mxu0
    %v501 = vadd.f32 %v329, %v500
    %502 = vdwg.mxu0
    %503 = vmatprep.subr.mxu0 %v175
    %504 = vmatpush1.msra.mxu0 %v174
    %505 = vmatprep.subr.mxu0 %v179
    %506 = vmatpush1.msra.mxu0 %v178
    %507 = vmatprep.subr.mxu0 %v183
    %508 = vmatpush1.msra.mxu0 %v182
    %509 = vmatprep.subr.mxu0 %v187
    %510 = vmatpush1.msra.mxu0 %v186
    %511 = vmatprep.subr.mxu0 %v191
    %512 = vmatpush1.msra.mxu0 %v190
    %513 = vmatprep.subr.mxu0 %v195
    %514 = vmatpush1.msra.mxu0 %v194
    %515 = vmatprep.subr.mxu0 %v199
    %516 = vmatpush1.msra.mxu0 %v198
    %517 = vmatprep.subr.mxu0 0.0
    %518 = vmatpush1.msra.mxu0 0.0
    %519 = vmatprep.subr.mxu0 0.0
    %520 = vmatpush1.msra.mxu0 0.0
    %521 = vmatprep.subr.mxu0 0.0
    %522 = vmatpush1.msra.mxu0 0.0
    %523 = vmatprep.subr.mxu0 0.0
    %524 = vmatpush1.msra.mxu0 0.0
    %525 = vmatprep.subr.mxu0 0.0
    %526 = vmatpush1.msra.mxu0 0.0
    %527 = vmatprep.subr.mxu0 0.0
    %528 = vmatpush1.msra.mxu0 0.0
    %529 = vmatprep.subr.mxu0 0.0
    %530 = vmatpush1.msra.mxu0 0.0
    %531 = vmatprep.subr.mxu0 0.0
    %532 = vmatpush1.msra.mxu0 0.0
    %533 = vmatprep.subr.mxu0 0.0
    %534 = vmatpush1.msra.mxu0 0.0
    %535 = vmatprep.subr.mxu0 0.0
    %536 = vmatpush1.msra.mxu0 0.0
    %537 = vmatprep.subr.mxu0 0.0
    %538 = vmatpush1.msra.mxu0 0.0
    %539 = vmatprep.subr.mxu0 0.0
    %540 = vmatpush1.msra.mxu0 0.0
    %541 = vmatprep.subr.mxu0 0.0
    %542 = vmatpush1.msra.mxu0 0.0
    %543 = vmatprep.subr.mxu0 0.0
    %544 = vmatpush1.msra.mxu0 0.0
    %545 = vmatprep.subr.mxu0 0.0
    %546 = vmatpush1.msra.mxu0 0.0
    %547 = vmatprep.subr.mxu0 0.0
    %548 = vmatpush1.msra.mxu0 0.0
    %549 = vmatprep.subr.mxu0 0.0
    %550 = vmatpush1.msra.mxu0 0.0
    %551 = vmatprep.subr.mxu0 0.0
    %552 = vmatpush1.msra.mxu0 0.0
    %553 = vmatprep.subr.mxu0 0.0
    %554 = vmatpush1.msra.mxu0 0.0
    %555 = vmatprep.subr.mxu0 0.0
    %556 = vmatpush1.msra.mxu0 0.0
    %557 = vmatprep.subr.mxu0 0.0
    %558 = vmatpush1.msra.mxu0 0.0
    %559 = vmatprep.subr.mxu0 0.0
    %560 = vmatpush1.msra.mxu0 0.0
    %561 = vmatprep.subr.mxu0 0.0
    %562 = vmatpush1.msra.mxu0 0.0
    %563 = vmatprep.subr.mxu0 0.0
    %564 = vmatpush1.msra.mxu0 0.0
    %565 = vmatprep.subr.mxu0 0.0
    %566 = vmatpush1.msra.mxu0 0.0
    %567 = vmatprep.mubr.f32.mxu0 0.0
    %568 = vmatmul.mubr.f32.gmra.mrb[0].mxu0 %v414
    %v569 = vpop.f32.mrb[0].mxu0
    %v570 = vadd.f32 %v398, %v569
    %v571 = vpop.f32.mrb[0].mxu0
    %v572 = vadd.f32 %v400, %v571
    %573 = vmatprep.mubr.f32.mxu0 0.0
    %574 = vmatmul.mubr.f32.gmra.mrb[0].mxu0 %v416
    %v575 = vpop.f32.mrb[0].mxu0
    %v576 = vadd.f32 %v404, %v575
    %v577 = vpop.f32.mrb[0].mxu0
    %v578 = vadd.f32 %v406, %v577
    %579 = vmatprep.mubr.f32.mxu0 0.0
    %580 = vmatmul.mubr.f32.gmra.mrb[0].mxu0 %v418
    %v581 = vpop.f32.mrb[0].mxu0
    %v582 = vadd.f32 %v410, %v581
    %v583 = vpop.f32.mrb[0].mxu0
    %v584 = vadd.f32 %v412, %v583
    %585 = vdwg.mxu0
    %s586 = scalar_lea.vmem [#allocation2], 448
    %v587 = vld [vmem:[%s586] sm:$0xff]
    %v588 = vld [vmem:[%s586 + $0x8] sm:$0xff]
    %v589 = vld [vmem:[%s586 + $0x10] sm:$0xff]
    %v590 = vld [vmem:[%s586 + $0x18] sm:$0xff]
    %v591 = vld [vmem:[%s586 + $0x20] sm:$0xff]
    %v592 = vld [vmem:[%s586 + $0x28] sm:$0xff]
    %v593 = vld [vmem:[%s586 + $0x30] sm:$0xff]
    %v594 = vld [vmem:[%s586 + $0x38] sm:$0xff]
    %v595 = vld [vmem:[%s586 + $0x40] sm:$0xff]
    %v596 = vld [vmem:[%s586 + $0x48] sm:$0xff]
    %v597 = vld [vmem:[%s586 + $0x50] sm:$0xff]
    %v598 = vld [vmem:[%s586 + $0x58] sm:$0xff]
    %v599 = vld [vmem:[%s586 + $0x60] sm:$0xff]
    %v600 = vld [vmem:[%s586 + $0x68] sm:$0xff]
    %v601 = vld [vmem:[%s586 + $0x70] sm:$0xff]
    %v602 = vld [vmem:[%s586 + $0x78] sm:$0xff]
    %v603 = vld [vmem:[%s586 + $0x80] sm:$0xff]
    %v604 = vld [vmem:[%s586 + $0x88] sm:$0xff]
    %v605 = vld [vmem:[%s586 + $0x90] sm:$0xff]
    %v606 = vld [vmem:[%s586 + $0x98] sm:$0xff]
    %v607 = vld [vmem:[%s586 + $0xa0] sm:$0xff]
    %v608 = vld [vmem:[%s586 + $0xa8] sm:$0xff]
    %v609 = vld [vmem:[%s586 + $0xb0] sm:$0xff]
    %v610 = vld [vmem:[%s586 + $0xb8] sm:$0xff]
    %v611 = vld [vmem:[%s586 + $0xc0] sm:$0xff]
    %v612 = vld [vmem:[%s586 + $0xc8] sm:$0xff]
    %v613 = vld [vmem:[%s586 + $0xd0] sm:$0xff]
    %v614 = vld [vmem:[%s586 + $0xd8] sm:$0xff]
    %vm615 = vcmask 1045504
    %v616 = vrot.slane %v168, 2
    %v617 = vrot.slane %v169, 2
    %v618 = vsel %vm615, %v616, %v617
    %v619 = vrot.slane %v170, 2
    %v620 = vsel %vm615, %v617, %v619
    %v621 = vrot.slane %v171, 2
    %v622 = vsel %vm615, %v619, %v621
    %v623 = vsel %vm241, %v618, 0
    %v625 = vsel %vm241, %v620, 0
    %v627 = vsel %vm241, %v622, 0
    %629 = vmatprep.subr.mxu0 %v588
    %630 = vmatpush1.msra.mxu0 %v587
    %631 = vmatprep.subr.mxu0 %v592
    %632 = vmatpush1.msra.mxu0 %v591
    %633 = vmatprep.subr.mxu0 %v596
    %634 = vmatpush1.msra.mxu0 %v595
    %635 = vmatprep.subr.mxu0 %v600
    %636 = vmatpush1.msra.mxu0 %v599
    %637 = vmatprep.subr.mxu0 %v604
    %638 = vmatpush1.msra.mxu0 %v603
    %639 = vmatprep.subr.mxu0 %v608
    %640 = vmatpush1.msra.mxu0 %v607
    %641 = vmatprep.subr.mxu0 %v612
    %642 = vmatpush1.msra.mxu0 %v611
    %643 = vmatprep.subr.mxu0 0.0
    %644 = vmatpush1.msra.mxu0 0.0
    %645 = vmatprep.subr.mxu0 0.0
    %646 = vmatpush1.msra.mxu0 0.0
    %647 = vmatprep.subr.mxu0 0.0
    %648 = vmatpush1.msra.mxu0 0.0
    %649 = vmatprep.subr.mxu0 0.0
    %650 = vmatpush1.msra.mxu0 0.0
    %651 = vmatprep.subr.mxu0 0.0
    %652 = vmatpush1.msra.mxu0 0.0
    %653 = vmatprep.subr.mxu0 0.0
    %654 = vmatpush1.msra.mxu0 0.0
    %655 = vmatprep.subr.mxu0 0.0
    %656 = vmatpush1.msra.mxu0 0.0
    %657 = vmatprep.subr.mxu0 0.0
    %658 = vmatpush1.msra.mxu0 0.0
    %659 = vmatprep.subr.mxu0 0.0
    %660 = vmatpush1.msra.mxu0 0.0
    %661 = vmatprep.subr.mxu0 0.0
    %662 = vmatpush1.msra.mxu0 0.0
    %663 = vmatprep.subr.mxu0 0.0
    %664 = vmatpush1.msra.mxu0 0.0
    %665 = vmatprep.subr.mxu0 0.0
    %666 = vmatpush1.msra.mxu0 0.0
    %667 = vmatprep.subr.mxu0 0.0
    %668 = vmatpush1.msra.mxu0 0.0
    %669 = vmatprep.subr.mxu0 0.0
    %670 = vmatpush1.msra.mxu0 0.0
    %671 = vmatprep.subr.mxu0 0.0
    %672 = vmatpush1.msra.mxu0 0.0
    %673 = vmatprep.subr.mxu0 0.0
    %674 = vmatpush1.msra.mxu0 0.0
    %675 = vmatprep.subr.mxu0 0.0
    %676 = vmatpush1.msra.mxu0 0.0
    %677 = vmatprep.subr.mxu0 0.0
    %678 = vmatpush1.msra.mxu0 0.0
    %679 = vmatprep.subr.mxu0 0.0
    %680 = vmatpush1.msra.mxu0 0.0
    %681 = vmatprep.subr.mxu0 0.0
    %682 = vmatpush1.msra.mxu0 0.0
    %683 = vmatprep.subr.mxu0 0.0
    %684 = vmatpush1.msra.mxu0 0.0
    %685 = vmatprep.subr.mxu0 0.0
    %686 = vmatpush1.msra.mxu0 0.0
    %687 = vmatprep.subr.mxu0 0.0
    %688 = vmatpush1.msra.mxu0 0.0
    %689 = vmatprep.subr.mxu0 0.0
    %690 = vmatpush1.msra.mxu0 0.0
    %691 = vmatprep.subr.mxu0 0.0
    %692 = vmatpush1.msra.mxu0 0.0
    %693 = vmatprep.mubr.f32.mxu0 0.0
    %694 = vmatmul.mubr.f32.gmra.mrb[0].mxu0 %v623
    %v695 = vpop.f32.mrb[0].mxu0
    %v696 = vadd.f32 0.0, %v695
    %v697 = vpop.f32.mrb[0].mxu0
    %v698 = vadd.f32 0.0, %v697
    %699 = vmatprep.mubr.f32.mxu0 0.0
    %700 = vmatmul.mubr.f32.gmra.mrb[0].mxu0 %v625
    %v701 = vpop.f32.mrb[0].mxu0
    %v702 = vadd.f32 0.0, %v701
    %v703 = vpop.f32.mrb[0].mxu0
    %v704 = vadd.f32 0.0, %v703
    %705 = vmatprep.mubr.f32.mxu0 0.0
    %706 = vmatmul.mubr.f32.gmra.mrb[0].mxu0 %v627
    %v707 = vpop.f32.mrb[0].mxu0
    %v708 = vadd.f32 0.0, %v707
    %v709 = vpop.f32.mrb[0].mxu0
    %v710 = vadd.f32 0.0, %v709
    %711 = vdwg.mxu0
    %712 = vmatprep.subr.mxu0 %v590
    %713 = vmatpush1.msra.mxu0 %v589
    %714 = vmatprep.subr.mxu0 %v594
    %715 = vmatpush1.msra.mxu0 %v593
    %716 = vmatprep.subr.mxu0 %v598
    %717 = vmatpush1.msra.mxu0 %v597
    %718 = vmatprep.subr.mxu0 %v602
    %719 = vmatpush1.msra.mxu0 %v601
    %720 = vmatprep.subr.mxu0 %v606
    %721 = vmatpush1.msra.mxu0 %v605
    %722 = vmatprep.subr.mxu0 %v610
    %723 = vmatpush1.msra.mxu0 %v609
    %724 = vmatprep.subr.mxu0 %v614
    %725 = vmatpush1.msra.mxu0 %v613
    %726 = vmatprep.subr.mxu0 0.0
    %727 = vmatpush1.msra.mxu0 0.0
    %728 = vmatprep.subr.mxu0 0.0
    %729 = vmatpush1.msra.mxu0 0.0
    %730 = vmatprep.subr.mxu0 0.0
    %731 = vmatpush1.msra.mxu0 0.0
    %732 = vmatprep.subr.mxu0 0.0
    %733 = vmatpush1.msra.mxu0 0.0
    %734 = vmatprep.subr.mxu0 0.0
    %735 = vmatpush1.msra.mxu0 0.0
    %736 = vmatprep.subr.mxu0 0.0
    %737 = vmatpush1.msra.mxu0 0.0
    %738 = vmatprep.subr.mxu0 0.0
    %739 = vmatpush1.msra.mxu0 0.0
    %740 = vmatprep.subr.mxu0 0.0
    %741 = vmatpush1.msra.mxu0 0.0
    %742 = vmatprep.subr.mxu0 0.0
    %743 = vmatpush1.msra.mxu0 0.0
    %744 = vmatprep.subr.mxu0 0.0
    %745 = vmatpush1.msra.mxu0 0.0
    %746 = vmatprep.subr.mxu0 0.0
    %747 = vmatpush1.msra.mxu0 0.0
    %748 = vmatprep.subr.mxu0 0.0
    %749 = vmatpush1.msra.mxu0 0.0
    %750 = vmatprep.subr.mxu0 0.0
    %751 = vmatpush1.msra.mxu0 0.0
    %752 = vmatprep.subr.mxu0 0.0
    %753 = vmatpush1.msra.mxu0 0.0
    %754 = vmatprep.subr.mxu0 0.0
    %755 = vmatpush1.msra.mxu0 0.0
    %756 = vmatprep.subr.mxu0 0.0
    %757 = vmatpush1.msra.mxu0 0.0
    %758 = vmatprep.subr.mxu0 0.0
    %759 = vmatpush1.msra.mxu0 0.0
    %760 = vmatprep.subr.mxu0 0.0
    %761 = vmatpush1.msra.mxu0 0.0
    %762 = vmatprep.subr.mxu0 0.0
    %763 = vmatpush1.msra.mxu0 0.0
    %764 = vmatprep.subr.mxu0 0.0
    %765 = vmatpush1.msra.mxu0 0.0
    %766 = vmatprep.subr.mxu0 0.0
    %767 = vmatpush1.msra.mxu0 0.0
    %768 = vmatprep.subr.mxu0 0.0
    %769 = vmatpush1.msra.mxu0 0.0
    %770 = vmatprep.subr.mxu0 0.0
    %771 = vmatpush1.msra.mxu0 0.0
    %772 = vmatprep.subr.mxu0 0.0
    %773 = vmatpush1.msra.mxu0 0.0
    %774 = vmatprep.subr.mxu0 0.0
    %775 = vmatpush1.msra.mxu0 0.0
    %776 = vmatprep.mubr.f32.mxu0 0.0
    %777 = vmatmul.mubr.f32.gmra.mrb[0].mxu0 %v623
    %v778 = vpop.f32.mrb[0].mxu0
    %v779 = vadd.f32 0.0, %v778
    %v780 = vpop.f32.mrb[0].mxu0
    %v781 = vadd.f32 0.0, %v780
    %782 = vmatprep.mubr.f32.mxu0 0.0
    %783 = vmatmul.mubr.f32.gmra.mrb[0].mxu0 %v625
    %v784 = vpop.f32.mrb[0].mxu0
    %v785 = vadd.f32 0.0, %v784
    %v786 = vpop.f32.mrb[0].mxu0
    %v787 = vadd.f32 0.0, %v786
    %788 = vmatprep.mubr.f32.mxu0 0.0
    %789 = vmatmul.mubr.f32.gmra.mrb[0].mxu0 %v627
    %v790 = vpop.f32.mrb[0].mxu0
    %v791 = vadd.f32 0.0, %v790
    %v792 = vpop.f32.mrb[0].mxu0
    %v793 = vadd.f32 0.0, %v792
    %794 = vdwg.mxu0
    %v795 = vadd.f32 %v487, %v696
    %v796 = vadd.f32 %v489, %v698
    %v797 = vadd.f32 %v570, %v779
    %v798 = vadd.f32 %v572, %v781
    %v799 = vadd.f32 %v493, %v702
    %v800 = vadd.f32 %v495, %v704
    %v801 = vadd.f32 %v576, %v785
    %v802 = vadd.f32 %v578, %v787
    %v803 = vadd.f32 %v499, %v708
    %v804 = vadd.f32 %v501, %v710
    %v805 = vadd.f32 %v582, %v791
    %v806 = vadd.f32 %v584, %v793
    %s807 = scalar_lea.vmem [#allocation2], 672
    %v808 = vld [vmem:[%s807] sm:$0xff]
    %v809 = vld [vmem:[%s807 + $0x8] sm:$0xff]
    %v810 = vld [vmem:[%s807 + $0x10] sm:$0xff]
    %v811 = vld [vmem:[%s807 + $0x18] sm:$0xff]
    %v812 = vld [vmem:[%s807 + $0x20] sm:$0xff]
    %v813 = vld [vmem:[%s807 + $0x28] sm:$0xff]
    %v814 = vld [vmem:[%s807 + $0x30] sm:$0xff]
    %v815 = vld [vmem:[%s807 + $0x38] sm:$0xff]
    %v816 = vld [vmem:[%s807 + $0x40] sm:$0xff]
    %v817 = vld [vmem:[%s807 + $0x48] sm:$0xff]
    %v818 = vld [vmem:[%s807 + $0x50] sm:$0xff]
    %v819 = vld [vmem:[%s807 + $0x58] sm:$0xff]
    %v820 = vld [vmem:[%s807 + $0x60] sm:$0xff]
    %v821 = vld [vmem:[%s807 + $0x68] sm:$0xff]
    %v822 = vld [vmem:[%s807 + $0x70] sm:$0xff]
    %v823 = vld [vmem:[%s807 + $0x78] sm:$0xff]
    %v824 = vld [vmem:[%s807 + $0x80] sm:$0xff]
    %v825 = vld [vmem:[%s807 + $0x88] sm:$0xff]
    %v826 = vld [vmem:[%s807 + $0x90] sm:$0xff]
    %v827 = vld [vmem:[%s807 + $0x98] sm:$0xff]
    %v828 = vld [vmem:[%s807 + $0xa0] sm:$0xff]
    %v829 = vld [vmem:[%s807 + $0xa8] sm:$0xff]
    %v830 = vld [vmem:[%s807 + $0xb0] sm:$0xff]
    %v831 = vld [vmem:[%s807 + $0xb8] sm:$0xff]
    %v832 = vld [vmem:[%s807 + $0xc0] sm:$0xff]
    %v833 = vld [vmem:[%s807 + $0xc8] sm:$0xff]
    %v834 = vld [vmem:[%s807 + $0xd0] sm:$0xff]
    %v835 = vld [vmem:[%s807 + $0xd8] sm:$0xff]
    %vm836 = vcmask 1044480
    %v837 = vrot.slane %v168, 3
    %v838 = vrot.slane %v169, 3
    %v839 = vsel %vm836, %v837, %v838
    %v840 = vrot.slane %v170, 3
    %v841 = vsel %vm836, %v838, %v840
    %v842 = vrot.slane %v171, 3
    %v843 = vsel %vm836, %v840, %v842
    %v844 = vsel %vm241, %v839, 0
    %v846 = vsel %vm241, %v841, 0
    %v848 = vsel %vm241, %v843, 0
    %850 = vmatprep.subr.mxu0 %v809
    %851 = vmatpush1.msra.mxu0 %v808
    %852 = vmatprep.subr.mxu0 %v813
    %853 = vmatpush1.msra.mxu0 %v812
    %854 = vmatprep.subr.mxu0 %v817
    %855 = vmatpush1.msra.mxu0 %v816
    %856 = vmatprep.subr.mxu0 %v821
    %857 = vmatpush1.msra.mxu0 %v820
    %858 = vmatprep.subr.mxu0 %v825
    %859 = vmatpush1.msra.mxu0 %v824
    %860 = vmatprep.subr.mxu0 %v829
    %861 = vmatpush1.msra.mxu0 %v828
    %862 = vmatprep.subr.mxu0 %v833
    %863 = vmatpush1.msra.mxu0 %v832
    %864 = vmatprep.subr.mxu0 0.0
    %865 = vmatpush1.msra.mxu0 0.0
    %866 = vmatprep.subr.mxu0 0.0
    %867 = vmatpush1.msra.mxu0 0.0
    %868 = vmatprep.subr.mxu0 0.0
    %869 = vmatpush1.msra.mxu0 0.0
    %870 = vmatprep.subr.mxu0 0.0
    %871 = vmatpush1.msra.mxu0 0.0
    %872 = vmatprep.subr.mxu0 0.0
    %873 = vmatpush1.msra.mxu0 0.0
    %874 = vmatprep.subr.mxu0 0.0
    %875 = vmatpush1.msra.mxu0 0.0
    %876 = vmatprep.subr.mxu0 0.0
    %877 = vmatpush1.msra.mxu0 0.0
    %878 = vmatprep.subr.mxu0 0.0
    %879 = vmatpush1.msra.mxu0 0.0
    %880 = vmatprep.subr.mxu0 0.0
    %881 = vmatpush1.msra.mxu0 0.0
    %882 = vmatprep.subr.mxu0 0.0
    %883 = vmatpush1.msra.mxu0 0.0
    %884 = vmatprep.subr.mxu0 0.0
    %885 = vmatpush1.msra.mxu0 0.0
    %886 = vmatprep.subr.mxu0 0.0
    %887 = vmatpush1.msra.mxu0 0.0
    %888 = vmatprep.subr.mxu0 0.0
    %889 = vmatpush1.msra.mxu0 0.0
    %890 = vmatprep.subr.mxu0 0.0
    %891 = vmatpush1.msra.mxu0 0.0
    %892 = vmatprep.subr.mxu0 0.0
    %893 = vmatpush1.msra.mxu0 0.0
    %894 = vmatprep.subr.mxu0 0.0
    %895 = vmatpush1.msra.mxu0 0.0
    %896 = vmatprep.subr.mxu0 0.0
    %897 = vmatpush1.msra.mxu0 0.0
    %898 = vmatprep.subr.mxu0 0.0
    %899 = vmatpush1.msra.mxu0 0.0
    %900 = vmatprep.subr.mxu0 0.0
    %901 = vmatpush1.msra.mxu0 0.0
    %902 = vmatprep.subr.mxu0 0.0
    %903 = vmatpush1.msra.mxu0 0.0
    %904 = vmatprep.subr.mxu0 0.0
    %905 = vmatpush1.msra.mxu0 0.0
    %906 = vmatprep.subr.mxu0 0.0
    %907 = vmatpush1.msra.mxu0 0.0
    %908 = vmatprep.subr.mxu0 0.0
    %909 = vmatpush1.msra.mxu0 0.0
    %910 = vmatprep.subr.mxu0 0.0
    %911 = vmatpush1.msra.mxu0 0.0
    %912 = vmatprep.subr.mxu0 0.0
    %913 = vmatpush1.msra.mxu0 0.0
    %914 = vmatprep.mubr.f32.mxu0 0.0
    %915 = vmatmul.mubr.f32.gmra.mrb[0].mxu0 %v844
    %v916 = vpop.f32.mrb[0].mxu0
    %v917 = vadd.f32 0.0, %v916
    %v918 = vpop.f32.mrb[0].mxu0
    %v919 = vadd.f32 0.0, %v918
    %920 = vmatprep.mubr.f32.mxu0 0.0
    %921 = vmatmul.mubr.f32.gmra.mrb[0].mxu0 %v846
    %v922 = vpop.f32.mrb[0].mxu0
    %v923 = vadd.f32 0.0, %v922
    %v924 = vpop.f32.mrb[0].mxu0
    %v925 = vadd.f32 0.0, %v924
    %926 = vmatprep.mubr.f32.mxu0 0.0
    %927 = vmatmul.mubr.f32.gmra.mrb[0].mxu0 %v848
    %v928 = vpop.f32.mrb[0].mxu0
    %v929 = vadd.f32 0.0, %v928
    %v930 = vpop.f32.mrb[0].mxu0
    %v931 = vadd.f32 0.0, %v930
    %932 = vdwg.mxu0
    %933 = vmatprep.subr.mxu0 %v811
    %934 = vmatpush1.msra.mxu0 %v810
    %935 = vmatprep.subr.mxu0 %v815
    %936 = vmatpush1.msra.mxu0 %v814
    %937 = vmatprep.subr.mxu0 %v819
    %938 = vmatpush1.msra.mxu0 %v818
    %939 = vmatprep.subr.mxu0 %v823
    %940 = vmatpush1.msra.mxu0 %v822
    %941 = vmatprep.subr.mxu0 %v827
    %942 = vmatpush1.msra.mxu0 %v826
    %943 = vmatprep.subr.mxu0 %v831
    %944 = vmatpush1.msra.mxu0 %v830
    %945 = vmatprep.subr.mxu0 %v835
    %946 = vmatpush1.msra.mxu0 %v834
    %947 = vmatprep.subr.mxu0 0.0
    %948 = vmatpush1.msra.mxu0 0.0
    %949 = vmatprep.subr.mxu0 0.0
    %950 = vmatpush1.msra.mxu0 0.0
    %951 = vmatprep.subr.mxu0 0.0
    %952 = vmatpush1.msra.mxu0 0.0
    %953 = vmatprep.subr.mxu0 0.0
    %954 = vmatpush1.msra.mxu0 0.0
    %955 = vmatprep.subr.mxu0 0.0
    %956 = vmatpush1.msra.mxu0 0.0
    %957 = vmatprep.subr.mxu0 0.0
    %958 = vmatpush1.msra.mxu0 0.0
    %959 = vmatprep.subr.mxu0 0.0
    %960 = vmatpush1.msra.mxu0 0.0
    %961 = vmatprep.subr.mxu0 0.0
    %962 = vmatpush1.msra.mxu0 0.0
    %963 = vmatprep.subr.mxu0 0.0
    %964 = vmatpush1.msra.mxu0 0.0
    %965 = vmatprep.subr.mxu0 0.0
    %966 = vmatpush1.msra.mxu0 0.0
    %967 = vmatprep.subr.mxu0 0.0
    %968 = vmatpush1.msra.mxu0 0.0
    %969 = vmatprep.subr.mxu0 0.0
    %970 = vmatpush1.msra.mxu0 0.0
    %971 = vmatprep.subr.mxu0 0.0
    %972 = vmatpush1.msra.mxu0 0.0
    %973 = vmatprep.subr.mxu0 0.0
    %974 = vmatpush1.msra.mxu0 0.0
    %975 = vmatprep.subr.mxu0 0.0
    %976 = vmatpush1.msra.mxu0 0.0
    %977 = vmatprep.subr.mxu0 0.0
    %978 = vmatpush1.msra.mxu0 0.0
    %979 = vmatprep.subr.mxu0 0.0
    %980 = vmatpush1.msra.mxu0 0.0
    %981 = vmatprep.subr.mxu0 0.0
    %982 = vmatpush1.msra.mxu0 0.0
    %983 = vmatprep.subr.mxu0 0.0
    %984 = vmatpush1.msra.mxu0 0.0
    %985 = vmatprep.subr.mxu0 0.0
    %986 = vmatpush1.msra.mxu0 0.0
    %987 = vmatprep.subr.mxu0 0.0
    %988 = vmatpush1.msra.mxu0 0.0
    %989 = vmatprep.subr.mxu0 0.0
    %990 = vmatpush1.msra.mxu0 0.0
    %991 = vmatprep.subr.mxu0 0.0
    %992 = vmatpush1.msra.mxu0 0.0
    %993 = vmatprep.subr.mxu0 0.0
    %994 = vmatpush1.msra.mxu0 0.0
    %995 = vmatprep.subr.mxu0 0.0
    %996 = vmatpush1.msra.mxu0 0.0
    %997 = vmatprep.mubr.f32.mxu0 0.0
    %998 = vmatmul.mubr.f32.gmra.mrb[0].mxu0 %v844
    %v999 = vpop.f32.mrb[0].mxu0
    %v1000 = vadd.f32 0.0, %v999
    %v1001 = vpop.f32.mrb[0].mxu0
    %v1002 = vadd.f32 0.0, %v1001
    %1003 = vmatprep.mubr.f32.mxu0 0.0
    %1004 = vmatmul.mubr.f32.gmra.mrb[0].mxu0 %v846
    %v1005 = vpop.f32.mrb[0].mxu0
    %v1006 = vadd.f32 0.0, %v1005
    %v1007 = vpop.f32.mrb[0].mxu0
    %v1008 = vadd.f32 0.0, %v1007
    %1009 = vmatprep.mubr.f32.mxu0 0.0
    %1010 = vmatmul.mubr.f32.gmra.mrb[0].mxu0 %v848
    %v1011 = vpop.f32.mrb[0].mxu0
    %v1012 = vadd.f32 0.0, %v1011
    %v1013 = vpop.f32.mrb[0].mxu0
    %v1014 = vadd.f32 0.0, %v1013
    %1015 = vdwg.mxu0
    %v1016 = vadd.f32 %v795, %v917
    %v1017 = vadd.f32 %v796, %v919
    %v1018 = vadd.f32 %v797, %v1000
    %v1019 = vadd.f32 %v798, %v1002
    %v1020 = vadd.f32 %v799, %v923
    %v1021 = vadd.f32 %v800, %v925
    %v1022 = vadd.f32 %v801, %v1006
    %v1023 = vadd.f32 %v802, %v1008
    %v1024 = vadd.f32 %v803, %v929
    %v1025 = vadd.f32 %v804, %v931
    %v1026 = vadd.f32 %v805, %v1012
    %v1027 = vadd.f32 %v806, %v1014
    %s1028 = scalar_lea.vmem [#allocation2], 896
    %v1029 = vld [vmem:[%s1028] sm:$0xff]
    %v1030 = vld [vmem:[%s1028 + $0x8] sm:$0xff]
    %v1031 = vld [vmem:[%s1028 + $0x10] sm:$0xff]
    %v1032 = vld [vmem:[%s1028 + $0x18] sm:$0xff]
    %v1033 = vld [vmem:[%s1028 + $0x20] sm:$0xff]
    %v1034 = vld [vmem:[%s1028 + $0x28] sm:$0xff]
    %v1035 = vld [vmem:[%s1028 + $0x30] sm:$0xff]
    %v1036 = vld [vmem:[%s1028 + $0x38] sm:$0xff]
    %v1037 = vld [vmem:[%s1028 + $0x40] sm:$0xff]
    %v1038 = vld [vmem:[%s1028 + $0x48] sm:$0xff]
    %v1039 = vld [vmem:[%s1028 + $0x50] sm:$0xff]
    %v1040 = vld [vmem:[%s1028 + $0x58] sm:$0xff]
    %v1041 = vld [vmem:[%s1028 + $0x60] sm:$0xff]
    %v1042 = vld [vmem:[%s1028 + $0x68] sm:$0xff]
    %v1043 = vld [vmem:[%s1028 + $0x70] sm:$0xff]
    %v1044 = vld [vmem:[%s1028 + $0x78] sm:$0xff]
    %v1045 = vld [vmem:[%s1028 + $0x80] sm:$0xff]
    %v1046 = vld [vmem:[%s1028 + $0x88] sm:$0xff]
    %v1047 = vld [vmem:[%s1028 + $0x90] sm:$0xff]
    %v1048 = vld [vmem:[%s1028 + $0x98] sm:$0xff]
    %v1049 = vld [vmem:[%s1028 + $0xa0] sm:$0xff]
    %v1050 = vld [vmem:[%s1028 + $0xa8] sm:$0xff]
    %v1051 = vld [vmem:[%s1028 + $0xb0] sm:$0xff]
    %v1052 = vld [vmem:[%s1028 + $0xb8] sm:$0xff]
    %v1053 = vld [vmem:[%s1028 + $0xc0] sm:$0xff]
    %v1054 = vld [vmem:[%s1028 + $0xc8] sm:$0xff]
    %v1055 = vld [vmem:[%s1028 + $0xd0] sm:$0xff]
    %v1056 = vld [vmem:[%s1028 + $0xd8] sm:$0xff]
    %vm1057 = vcmask 1043456
    %v1058 = vrot.slane %v168, 4
    %v1059 = vrot.slane %v169, 4
    %v1060 = vsel %vm1057, %v1058, %v1059
    %v1061 = vrot.slane %v170, 4
    %v1062 = vsel %vm1057, %v1059, %v1061
    %v1063 = vrot.slane %v171, 4
    %v1064 = vsel %vm1057, %v1061, %v1063
    %v1065 = vsel %vm241, %v1060, 0
    %v1067 = vsel %vm241, %v1062, 0
    %v1069 = vsel %vm241, %v1064, 0
    %1071 = vmatprep.subr.mxu0 %v1030
    %1072 = vmatpush1.msra.mxu0 %v1029
    %1073 = vmatprep.subr.mxu0 %v1034
    %1074 = vmatpush1.msra.mxu0 %v1033
    %1075 = vmatprep.subr.mxu0 %v1038
    %1076 = vmatpush1.msra.mxu0 %v1037
    %1077 = vmatprep.subr.mxu0 %v1042
    %1078 = vmatpush1.msra.mxu0 %v1041
    %1079 = vmatprep.subr.mxu0 %v1046
    %1080 = vmatpush1.msra.mxu0 %v1045
    %1081 = vmatprep.subr.mxu0 %v1050
    %1082 = vmatpush1.msra.mxu0 %v1049
    %1083 = vmatprep.subr.mxu0 %v1054
    %1084 = vmatpush1.msra.mxu0 %v1053
    %1085 = vmatprep.subr.mxu0 0.0
    %1086 = vmatpush1.msra.mxu0 0.0
    %1087 = vmatprep.subr.mxu0 0.0
    %1088 = vmatpush1.msra.mxu0 0.0
    %1089 = vmatprep.subr.mxu0 0.0
    %1090 = vmatpush1.msra.mxu0 0.0
    %1091 = vmatprep.subr.mxu0 0.0
    %1092 = vmatpush1.msra.mxu0 0.0
    %1093 = vmatprep.subr.mxu0 0.0
    %1094 = vmatpush1.msra.mxu0 0.0
    %1095 = vmatprep.subr.mxu0 0.0
    %1096 = vmatpush1.msra.mxu0 0.0
    %1097 = vmatprep.subr.mxu0 0.0
    %1098 = vmatpush1.msra.mxu0 0.0
    %1099 = vmatprep.subr.mxu0 0.0
    %1100 = vmatpush1.msra.mxu0 0.0
    %1101 = vmatprep.subr.mxu0 0.0
    %1102 = vmatpush1.msra.mxu0 0.0
    %1103 = vmatprep.subr.mxu0 0.0
    %1104 = vmatpush1.msra.mxu0 0.0
    %1105 = vmatprep.subr.mxu0 0.0
    %1106 = vmatpush1.msra.mxu0 0.0
    %1107 = vmatprep.subr.mxu0 0.0
    %1108 = vmatpush1.msra.mxu0 0.0
    %1109 = vmatprep.subr.mxu0 0.0
    %1110 = vmatpush1.msra.mxu0 0.0
    %1111 = vmatprep.subr.mxu0 0.0
    %1112 = vmatpush1.msra.mxu0 0.0
    %1113 = vmatprep.subr.mxu0 0.0
    %1114 = vmatpush1.msra.mxu0 0.0
    %1115 = vmatprep.subr.mxu0 0.0
    %1116 = vmatpush1.msra.mxu0 0.0
    %1117 = vmatprep.subr.mxu0 0.0
    %1118 = vmatpush1.msra.mxu0 0.0
    %1119 = vmatprep.subr.mxu0 0.0
    %1120 = vmatpush1.msra.mxu0 0.0
    %1121 = vmatprep.subr.mxu0 0.0
    %1122 = vmatpush1.msra.mxu0 0.0
    %1123 = vmatprep.subr.mxu0 0.0
    %1124 = vmatpush1.msra.mxu0 0.0
    %1125 = vmatprep.subr.mxu0 0.0
    %1126 = vmatpush1.msra.mxu0 0.0
    %1127 = vmatprep.subr.mxu0 0.0
    %1128 = vmatpush1.msra.mxu0 0.0
    %1129 = vmatprep.subr.mxu0 0.0
    %1130 = vmatpush1.msra.mxu0 0.0
    %1131 = vmatprep.subr.mxu0 0.0
    %1132 = vmatpush1.msra.mxu0 0.0
    %1133 = vmatprep.subr.mxu0 0.0
    %1134 = vmatpush1.msra.mxu0 0.0
    %1135 = vmatprep.mubr.f32.mxu0 0.0
    %1136 = vmatmul.mubr.f32.gmra.mrb[0].mxu0 %v1065
    %v1137 = vpop.f32.mrb[0].mxu0
    %v1138 = vadd.f32 0.0, %v1137
    %v1139 = vpop.f32.mrb[0].mxu0
    %v1140 = vadd.f32 0.0, %v1139
    %1141 = vmatprep.mubr.f32.mxu0 0.0
    %1142 = vmatmul.mubr.f32.gmra.mrb[0].mxu0 %v1067
    %v1143 = vpop.f32.mrb[0].mxu0
    %v1144 = vadd.f32 0.0, %v1143
    %v1145 = vpop.f32.mrb[0].mxu0
    %v1146 = vadd.f32 0.0, %v1145
    %1147 = vmatprep.mubr.f32.mxu0 0.0
    %1148 = vmatmul.mubr.f32.gmra.mrb[0].mxu0 %v1069
    %v1149 = vpop.f32.mrb[0].mxu0
    %v1150 = vadd.f32 0.0, %v1149
    %v1151 = vpop.f32.mrb[0].mxu0
    %v1152 = vadd.f32 0.0, %v1151
    %1153 = vdwg.mxu0
    %1154 = vmatprep.subr.mxu0 %v1032
    %1155 = vmatpush1.msra.mxu0 %v1031
    %1156 = vmatprep.subr.mxu0 %v1036
    %1157 = vmatpush1.msra.mxu0 %v1035
    %1158 = vmatprep.subr.mxu0 %v1040
    %1159 = vmatpush1.msra.mxu0 %v1039
    %1160 = vmatprep.subr.mxu0 %v1044
    %1161 = vmatpush1.msra.mxu0 %v1043
    %1162 = vmatprep.subr.mxu0 %v1048
    %1163 = vmatpush1.msra.mxu0 %v1047
    %1164 = vmatprep.subr.mxu0 %v1052
    %1165 = vmatpush1.msra.mxu0 %v1051
    %1166 = vmatprep.subr.mxu0 %v1056
    %1167 = vmatpush1.msra.mxu0 %v1055
    %1168 = vmatprep.subr.mxu0 0.0
    %1169 = vmatpush1.msra.mxu0 0.0
    %1170 = vmatprep.subr.mxu0 0.0
    %1171 = vmatpush1.msra.mxu0 0.0
    %1172 = vmatprep.subr.mxu0 0.0
    %1173 = vmatpush1.msra.mxu0 0.0
    %1174 = vmatprep.subr.mxu0 0.0
    %1175 = vmatpush1.msra.mxu0 0.0
    %1176 = vmatprep.subr.mxu0 0.0
    %1177 = vmatpush1.msra.mxu0 0.0
    %1178 = vmatprep.subr.mxu0 0.0
    %1179 = vmatpush1.msra.mxu0 0.0
    %1180 = vmatprep.subr.mxu0 0.0
    %1181 = vmatpush1.msra.mxu0 0.0
    %1182 = vmatprep.subr.mxu0 0.0
    %1183 = vmatpush1.msra.mxu0 0.0
    %1184 = vmatprep.subr.mxu0 0.0
    %1185 = vmatpush1.msra.mxu0 0.0
    %1186 = vmatprep.subr.mxu0 0.0
    %1187 = vmatpush1.msra.mxu0 0.0
    %1188 = vmatprep.subr.mxu0 0.0
    %1189 = vmatpush1.msra.mxu0 0.0
    %1190 = vmatprep.subr.mxu0 0.0
    %1191 = vmatpush1.msra.mxu0 0.0
    %1192 = vmatprep.subr.mxu0 0.0
    %1193 = vmatpush1.msra.mxu0 0.0
    %1194 = vmatprep.subr.mxu0 0.0
    %1195 = vmatpush1.msra.mxu0 0.0
    %1196 = vmatprep.subr.mxu0 0.0
    %1197 = vmatpush1.msra.mxu0 0.0
    %1198 = vmatprep.subr.mxu0 0.0
    %1199 = vmatpush1.msra.mxu0 0.0
    %1200 = vmatprep.subr.mxu0 0.0
    %1201 = vmatpush1.msra.mxu0 0.0
    %1202 = vmatprep.subr.mxu0 0.0
    %1203 = vmatpush1.msra.mxu0 0.0
    %1204 = vmatprep.subr.mxu0 0.0
    %1205 = vmatpush1.msra.mxu0 0.0
    %1206 = vmatprep.subr.mxu0 0.0
    %1207 = vmatpush1.msra.mxu0 0.0
    %1208 = vmatprep.subr.mxu0 0.0
    %1209 = vmatpush1.msra.mxu0 0.0
    %1210 = vmatprep.subr.mxu0 0.0
    %1211 = vmatpush1.msra.mxu0 0.0
    %1212 = vmatprep.subr.mxu0 0.0
    %1213 = vmatpush1.msra.mxu0 0.0
    %1214 = vmatprep.subr.mxu0 0.0
    %1215 = vmatpush1.msra.mxu0 0.0
    %1216 = vmatprep.subr.mxu0 0.0
    %1217 = vmatpush1.msra.mxu0 0.0
    %1218 = vmatprep.mubr.f32.mxu0 0.0
    %1219 = vmatmul.mubr.f32.gmra.mrb[0].mxu0 %v1065
    %v1220 = vpop.f32.mrb[0].mxu0
    %v1221 = vadd.f32 0.0, %v1220
    %v1222 = vpop.f32.mrb[0].mxu0
    %v1223 = vadd.f32 0.0, %v1222
    %1224 = vmatprep.mubr.f32.mxu0 0.0
    %1225 = vmatmul.mubr.f32.gmra.mrb[0].mxu0 %v1067
    %v1226 = vpop.f32.mrb[0].mxu0
    %v1227 = vadd.f32 0.0, %v1226
    %v1228 = vpop.f32.mrb[0].mxu0
    %v1229 = vadd.f32 0.0, %v1228
    %1230 = vmatprep.mubr.f32.mxu0 0.0
    %1231 = vmatmul.mubr.f32.gmra.mrb[0].mxu0 %v1069
    %v1232 = vpop.f32.mrb[0].mxu0
    %v1233 = vadd.f32 0.0, %v1232
    %v1234 = vpop.f32.mrb[0].mxu0
    %v1235 = vadd.f32 0.0, %v1234
    %1236 = vdwg.mxu0
    %v1237 = vadd.f32 %v1016, %v1138
    %v1238 = vadd.f32 %v1017, %v1140
    %v1239 = vadd.f32 %v1018, %v1221
    %v1240 = vadd.f32 %v1019, %v1223
    %v1241 = vadd.f32 %v1020, %v1144
    %v1242 = vadd.f32 %v1021, %v1146
    %v1243 = vadd.f32 %v1022, %v1227
    %v1244 = vadd.f32 %v1023, %v1229
    %v1245 = vadd.f32 %v1024, %v1150
    %v1246 = vadd.f32 %v1025, %v1152
    %v1247 = vadd.f32 %v1026, %v1233
    %v1248 = vadd.f32 %v1027, %v1235
    %v1249 = vld [vmem:[#allocation4] sm:$0xf]
    %v1251 = vlaneseq
    %v1252 = vshrl.u32 %v1251, 7
    %v1253 = vsub.s32 0, %v1252
    %v1254 = vrot.slane %v1249, %v1253
    %v1255 = vlaneseq
    %v1256 = vshrl.u32 %v1255, 7
    %v1257 = vsub.s32 1, %v1256
    %v1258 = vrot.slane %v1249, %v1257
    %v1259 = vlaneseq
    %v1260 = vshrl.u32 %v1259, 7
    %v1261 = vsub.s32 2, %v1260
    %v1262 = vrot.slane %v1249, %v1261
    %v1263 = vlaneseq
    %v1264 = vshrl.u32 %v1263, 7
    %v1265 = vsub.s32 3, %v1264
    %v1266 = vrot.slane %v1249, %v1265
    %v1271 = vadd.f32 %v1237, %v1254
    %v1272 = vadd.f32 %v1238, %v1258
    %v1273 = vadd.f32 %v1239, %v1262
    %v1274 = vadd.f32 %v1240, %v1266
    %v1275 = vadd.f32 %v1241, %v1254
    %v1276 = vadd.f32 %v1242, %v1258
    %v1277 = vadd.f32 %v1243, %v1262
    %v1278 = vadd.f32 %v1244, %v1266
    %v1279 = vadd.f32 %v1245, %v1254
    %v1280 = vadd.f32 %v1246, %v1258
    %v1281 = vadd.f32 %v1247, %v1262
    %v1282 = vadd.f32 %v1248, %v1266
    %v1283 = vld [vmem:[#allocation6] sm:$0xff]
    %v1284 = vld [vmem:[#allocation6 + $0x8] sm:$0xf]
    %vm1285 = vcmask 195584
    %v1287 = vsel %vm1285, %v1283, 0
    %v1290 = vsel %vm1285, %v1284, 0
    %1292 = vmatprep.subr.mxu0 %v1272
    %1293 = vmatpush1.msra.mxu0 %v1271
    %1294 = vmatprep.subr.mxu0 %v1276
    %1295 = vmatpush1.msra.mxu0 %v1275
    %1296 = vmatprep.subr.mxu0 %v1280
    %1297 = vmatpush1.msra.mxu0 %v1279
    %1298 = vmatprep.subr.mxu0 0.0
    %1299 = vmatpush1.msra.mxu0 0.0
    %1300 = vmatprep.subr.mxu0 0.0
    %1301 = vmatpush1.msra.mxu0 0.0
    %1302 = vmatprep.subr.mxu0 0.0
    %1303 = vmatpush1.msra.mxu0 0.0
    %1304 = vmatprep.subr.mxu0 0.0
    %1305 = vmatpush1.msra.mxu0 0.0
    %1306 = vmatprep.subr.mxu0 0.0
    %1307 = vmatpush1.msra.mxu0 0.0
    %1308 = vmatprep.subr.mxu0 0.0
    %1309 = vmatpush1.msra.mxu0 0.0
    %1310 = vmatprep.subr.mxu0 0.0
    %1311 = vmatpush1.msra.mxu0 0.0
    %1312 = vmatprep.subr.mxu0 0.0
    %1313 = vmatpush1.msra.mxu0 0.0
    %1314 = vmatprep.subr.mxu0 0.0
    %1315 = vmatpush1.msra.mxu0 0.0
    %1316 = vmatprep.subr.mxu0 0.0
    %1317 = vmatpush1.msra.mxu0 0.0
    %1318 = vmatprep.subr.mxu0 0.0
    %1319 = vmatpush1.msra.mxu0 0.0
    %1320 = vmatprep.subr.mxu0 0.0
    %1321 = vmatpush1.msra.mxu0 0.0
    %1322 = vmatprep.subr.mxu0 0.0
    %1323 = vmatpush1.msra.mxu0 0.0
    %1324 = vmatprep.subr.mxu0 0.0
    %1325 = vmatpush1.msra.mxu0 0.0
    %1326 = vmatprep.subr.mxu0 0.0
    %1327 = vmatpush1.msra.mxu0 0.0
    %1328 = vmatprep.subr.mxu0 0.0
    %1329 = vmatpush1.msra.mxu0 0.0
    %1330 = vmatprep.subr.mxu0 0.0
    %1331 = vmatpush1.msra.mxu0 0.0
    %1332 = vmatprep.subr.mxu0 0.0
    %1333 = vmatpush1.msra.mxu0 0.0
    %1334 = vmatprep.subr.mxu0 0.0
    %1335 = vmatpush1.msra.mxu0 0.0
    %1336 = vmatprep.subr.mxu0 0.0
    %1337 = vmatpush1.msra.mxu0 0.0
    %1338 = vmatprep.subr.mxu0 0.0
    %1339 = vmatpush1.msra.mxu0 0.0
    %1340 = vmatprep.subr.mxu0 0.0
    %1341 = vmatpush1.msra.mxu0 0.0
    %1342 = vmatprep.subr.mxu0 0.0
    %1343 = vmatpush1.msra.mxu0 0.0
    %1344 = vmatprep.subr.mxu0 0.0
    %1345 = vmatpush1.msra.mxu0 0.0
    %1346 = vmatprep.subr.mxu0 0.0
    %1347 = vmatpush1.msra.mxu0 0.0
    %1348 = vmatprep.subr.mxu0 0.0
    %1349 = vmatpush1.msra.mxu0 0.0
    %1350 = vmatprep.subr.mxu0 0.0
    %1351 = vmatpush1.msra.mxu0 0.0
    %1352 = vmatprep.subr.mxu0 0.0
    %1353 = vmatpush1.msra.mxu0 0.0
    %1354 = vmatprep.subr.mxu0 0.0
    %1355 = vmatpush1.msra.mxu0 0.0
    %1356 = vmatprep.mubr.f32.mxu0 0.0
    %1357 = vmatmul.mubr.f32.gmra.mrb[0].mxu0 %v1287
    %v1358 = vpop.f32.mrb[0].mxu0
    %v1359 = vadd.f32 0.0, %v1358
    %v1360 = vpop.f32.mrb[0].mxu0
    %v1361 = vadd.f32 0.0, %v1360
    %1362 = vmatprep.mubr.f32.mxu0 0.0
    %1363 = vmatmul.mubr.f32.gmra.mrb[0].mxu0 %v1290
    %v1364 = vpop.f32.mrb[0].mxu0
    %v1365 = vadd.f32 0.0, %v1364
    %v1366 = vpop.f32.mrb[0].mxu0
    %v1367 = vadd.f32 0.0, %v1366
    %1368 = vdwg.mxu0
    %1369 = vmatprep.subr.mxu0 %v1274
    %1370 = vmatpush1.msra.mxu0 %v1273
    %1371 = vmatprep.subr.mxu0 %v1278
    %1372 = vmatpush1.msra.mxu0 %v1277
    %1373 = vmatprep.subr.mxu0 %v1282
    %1374 = vmatpush1.msra.mxu0 %v1281
    %1375 = vmatprep.subr.mxu0 0.0
    %1376 = vmatpush1.msra.mxu0 0.0
    %1377 = vmatprep.subr.mxu0 0.0
    %1378 = vmatpush1.msra.mxu0 0.0
    %1379 = vmatprep.subr.mxu0 0.0
    %1380 = vmatpush1.msra.mxu0 0.0
    %1381 = vmatprep.subr.mxu0 0.0
    %1382 = vmatpush1.msra.mxu0 0.0
    %1383 = vmatprep.subr.mxu0 0.0
    %1384 = vmatpush1.msra.mxu0 0.0
    %1385 = vmatprep.subr.mxu0 0.0
    %1386 = vmatpush1.msra.mxu0 0.0
    %1387 = vmatprep.subr.mxu0 0.0
    %1388 = vmatpush1.msra.mxu0 0.0
    %1389 = vmatprep.subr.mxu0 0.0
    %1390 = vmatpush1.msra.mxu0 0.0
    %1391 = vmatprep.subr.mxu0 0.0
    %1392 = vmatpush1.msra.mxu0 0.0
    %1393 = vmatprep.subr.mxu0 0.0
    %1394 = vmatpush1.msra.mxu0 0.0
    %1395 = vmatprep.subr.mxu0 0.0
    %1396 = vmatpush1.msra.mxu0 0.0
    %1397 = vmatprep.subr.mxu0 0.0
    %1398 = vmatpush1.msra.mxu0 0.0
    %1399 = vmatprep.subr.mxu0 0.0
    %1400 = vmatpush1.msra.mxu0 0.0
    %1401 = vmatprep.subr.mxu0 0.0
    %1402 = vmatpush1.msra.mxu0 0.0
    %1403 = vmatprep.subr.mxu0 0.0
    %1404 = vmatpush1.msra.mxu0 0.0
    %1405 = vmatprep.subr.mxu0 0.0
    %1406 = vmatpush1.msra.mxu0 0.0
    %1407 = vmatprep.subr.mxu0 0.0
    %1408 = vmatpush1.msra.mxu0 0.0
    %1409 = vmatprep.subr.mxu0 0.0
    %1410 = vmatpush1.msra.mxu0 0.0
    %1411 = vmatprep.subr.mxu0 0.0
    %1412 = vmatpush1.msra.mxu0 0.0
    %1413 = vmatprep.subr.mxu0 0.0
    %1414 = vmatpush1.msra.mxu0 0.0
    %1415 = vmatprep.subr.mxu0 0.0
    %1416 = vmatpush1.msra.mxu0 0.0
    %1417 = vmatprep.subr.mxu0 0.0
    %1418 = vmatpush1.msra.mxu0 0.0
    %1419 = vmatprep.subr.mxu0 0.0
    %1420 = vmatpush1.msra.mxu0 0.0
    %1421 = vmatprep.subr.mxu0 0.0
    %1422 = vmatpush1.msra.mxu0 0.0
    %1423 = vmatprep.subr.mxu0 0.0
    %1424 = vmatpush1.msra.mxu0 0.0
    %1425 = vmatprep.subr.mxu0 0.0
    %1426 = vmatpush1.msra.mxu0 0.0
    %1427 = vmatprep.subr.mxu0 0.0
    %1428 = vmatpush1.msra.mxu0 0.0
    %1429 = vmatprep.subr.mxu0 0.0
    %1430 = vmatpush1.msra.mxu0 0.0
    %1431 = vmatprep.subr.mxu0 0.0
    %1432 = vmatpush1.msra.mxu0 0.0
    %1433 = vmatprep.mubr.f32.mxu0 0.0
    %1434 = vmatmul.mubr.f32.gmra.mrb[0].mxu0 %v1287
    %v1435 = vpop.f32.mrb[0].mxu0
    %v1436 = vadd.f32 0.0, %v1435
    %v1437 = vpop.f32.mrb[0].mxu0
    %v1438 = vadd.f32 0.0, %v1437
    %1439 = vmatprep.mubr.f32.mxu0 0.0
    %1440 = vmatmul.mubr.f32.gmra.mrb[0].mxu0 %v1290
    %v1441 = vpop.f32.mrb[0].mxu0
    %v1442 = vadd.f32 0.0, %v1441
    %v1443 = vpop.f32.mrb[0].mxu0
    %v1444 = vadd.f32 0.0, %v1443
    %1445 = vdwg.mxu0
    %v1446 = vld [vmem:[#allocation7] sm:$0xff]
    %v1447 = vld [vmem:[#allocation7 + $0x8] sm:$0xf]
    %v1449 = vsel %vm1285, %v1446, 0
    %v1452 = vsel %vm1285, %v1447, 0
    %1454 = vmatprep.subr.mxu0 %v1272
    %1455 = vmatpush1.msra.mxu0 %v1271
    %1456 = vmatprep.subr.mxu0 %v1276
    %1457 = vmatpush1.msra.mxu0 %v1275
    %1458 = vmatprep.subr.mxu0 %v1280
    %1459 = vmatpush1.msra.mxu0 %v1279
    %1460 = vmatprep.subr.mxu0 0.0
    %1461 = vmatpush1.msra.mxu0 0.0
    %1462 = vmatprep.subr.mxu0 0.0
    %1463 = vmatpush1.msra.mxu0 0.0
    %1464 = vmatprep.subr.mxu0 0.0
    %1465 = vmatpush1.msra.mxu0 0.0
    %1466 = vmatprep.subr.mxu0 0.0
    %1467 = vmatpush1.msra.mxu0 0.0
    %1468 = vmatprep.subr.mxu0 0.0
    %1469 = vmatpush1.msra.mxu0 0.0
    %1470 = vmatprep.subr.mxu0 0.0
    %1471 = vmatpush1.msra.mxu0 0.0
    %1472 = vmatprep.subr.mxu0 0.0
    %1473 = vmatpush1.msra.mxu0 0.0
    %1474 = vmatprep.subr.mxu0 0.0
    %1475 = vmatpush1.msra.mxu0 0.0
    %1476 = vmatprep.subr.mxu0 0.0
    %1477 = vmatpush1.msra.mxu0 0.0
    %1478 = vmatprep.subr.mxu0 0.0
    %1479 = vmatpush1.msra.mxu0 0.0
    %1480 = vmatprep.subr.mxu0 0.0
    %1481 = vmatpush1.msra.mxu0 0.0
    %1482 = vmatprep.subr.mxu0 0.0
    %1483 = vmatpush1.msra.mxu0 0.0
    %1484 = vmatprep.subr.mxu0 0.0
    %1485 = vmatpush1.msra.mxu0 0.0
    %1486 = vmatprep.subr.mxu0 0.0
    %1487 = vmatpush1.msra.mxu0 0.0
    %1488 = vmatprep.subr.mxu0 0.0
    %1489 = vmatpush1.msra.mxu0 0.0
    %1490 = vmatprep.subr.mxu0 0.0
    %1491 = vmatpush1.msra.mxu0 0.0
    %1492 = vmatprep.subr.mxu0 0.0
    %1493 = vmatpush1.msra.mxu0 0.0
    %1494 = vmatprep.subr.mxu0 0.0
    %1495 = vmatpush1.msra.mxu0 0.0
    %1496 = vmatprep.subr.mxu0 0.0
    %1497 = vmatpush1.msra.mxu0 0.0
    %1498 = vmatprep.subr.mxu0 0.0
    %1499 = vmatpush1.msra.mxu0 0.0
    %1500 = vmatprep.subr.mxu0 0.0
    %1501 = vmatpush1.msra.mxu0 0.0
    %1502 = vmatprep.subr.mxu0 0.0
    %1503 = vmatpush1.msra.mxu0 0.0
    %1504 = vmatprep.subr.mxu0 0.0
    %1505 = vmatpush1.msra.mxu0 0.0
    %1506 = vmatprep.subr.mxu0 0.0
    %1507 = vmatpush1.msra.mxu0 0.0
    %1508 = vmatprep.subr.mxu0 0.0
    %1509 = vmatpush1.msra.mxu0 0.0
    %1510 = vmatprep.subr.mxu0 0.0
    %1511 = vmatpush1.msra.mxu0 0.0
    %1512 = vmatprep.subr.mxu0 0.0
    %1513 = vmatpush1.msra.mxu0 0.0
    %1514 = vmatprep.subr.mxu0 0.0
    %1515 = vmatpush1.msra.mxu0 0.0
    %1516 = vmatprep.subr.mxu0 0.0
    %1517 = vmatpush1.msra.mxu0 0.0
    %1518 = vmatprep.mubr.f32.mxu0 0.0
    %1519 = vmatmul.mubr.f32.gmra.mrb[0].mxu0 %v1449
    %v1520 = vpop.f32.mrb[0].mxu0
    %v1521 = vadd.f32 0.0, %v1520
    %v1522 = vpop.f32.mrb[0].mxu0
    %v1523 = vadd.f32 0.0, %v1522
    %1524 = vmatprep.mubr.f32.mxu0 0.0
    %1525 = vmatmul.mubr.f32.gmra.mrb[0].mxu0 %v1452
    %v1526 = vpop.f32.mrb[0].mxu0
    %v1527 = vadd.f32 0.0, %v1526
    %v1528 = vpop.f32.mrb[0].mxu0
    %v1529 = vadd.f32 0.0, %v1528
    %1530 = vdwg.mxu0
    %1531 = vmatprep.subr.mxu0 %v1274
    %1532 = vmatpush1.msra.mxu0 %v1273
    %1533 = vmatprep.subr.mxu0 %v1278
    %1534 = vmatpush1.msra.mxu0 %v1277
    %1535 = vmatprep.subr.mxu0 %v1282
    %1536 = vmatpush1.msra.mxu0 %v1281
    %1537 = vmatprep.subr.mxu0 0.0
    %1538 = vmatpush1.msra.mxu0 0.0
    %1539 = vmatprep.subr.mxu0 0.0
    %1540 = vmatpush1.msra.mxu0 0.0
    %1541 = vmatprep.subr.mxu0 0.0
    %1542 = vmatpush1.msra.mxu0 0.0
    %1543 = vmatprep.subr.mxu0 0.0
    %1544 = vmatpush1.msra.mxu0 0.0
    %1545 = vmatprep.subr.mxu0 0.0
    %1546 = vmatpush1.msra.mxu0 0.0
    %1547 = vmatprep.subr.mxu0 0.0
    %1548 = vmatpush1.msra.mxu0 0.0
    %1549 = vmatprep.subr.mxu0 0.0
    %1550 = vmatpush1.msra.mxu0 0.0
    %1551 = vmatprep.subr.mxu0 0.0
    %1552 = vmatpush1.msra.mxu0 0.0
    %1553 = vmatprep.subr.mxu0 0.0
    %1554 = vmatpush1.msra.mxu0 0.0
    %1555 = vmatprep.subr.mxu0 0.0
    %1556 = vmatpush1.msra.mxu0 0.0
    %1557 = vmatprep.subr.mxu0 0.0
    %1558 = vmatpush1.msra.mxu0 0.0
    %1559 = vmatprep.subr.mxu0 0.0
    %1560 = vmatpush1.msra.mxu0 0.0
    %1561 = vmatprep.subr.mxu0 0.0
    %1562 = vmatpush1.msra.mxu0 0.0
    %1563 = vmatprep.subr.mxu0 0.0
    %1564 = vmatpush1.msra.mxu0 0.0
    %1565 = vmatprep.subr.mxu0 0.0
    %1566 = vmatpush1.msra.mxu0 0.0
    %1567 = vmatprep.subr.mxu0 0.0
    %1568 = vmatpush1.msra.mxu0 0.0
    %1569 = vmatprep.subr.mxu0 0.0
    %1570 = vmatpush1.msra.mxu0 0.0
    %1571 = vmatprep.subr.mxu0 0.0
    %1572 = vmatpush1.msra.mxu0 0.0
    %1573 = vmatprep.subr.mxu0 0.0
    %1574 = vmatpush1.msra.mxu0 0.0
    %1575 = vmatprep.subr.mxu0 0.0
    %1576 = vmatpush1.msra.mxu0 0.0
    %1577 = vmatprep.subr.mxu0 0.0
    %1578 = vmatpush1.msra.mxu0 0.0
    %1579 = vmatprep.subr.mxu0 0.0
    %1580 = vmatpush1.msra.mxu0 0.0
    %1581 = vmatprep.subr.mxu0 0.0
    %1582 = vmatpush1.msra.mxu0 0.0
    %1583 = vmatprep.subr.mxu0 0.0
    %1584 = vmatpush1.msra.mxu0 0.0
    %1585 = vmatprep.subr.mxu0 0.0
    %1586 = vmatpush1.msra.mxu0 0.0
    %1587 = vmatprep.subr.mxu0 0.0
    %1588 = vmatpush1.msra.mxu0 0.0
    %1589 = vmatprep.subr.mxu0 0.0
    %1590 = vmatpush1.msra.mxu0 0.0
    %1591 = vmatprep.subr.mxu0 0.0
    %1592 = vmatpush1.msra.mxu0 0.0
    %1593 = vmatprep.subr.mxu0 0.0
    %1594 = vmatpush1.msra.mxu0 0.0
    %1595 = vmatprep.mubr.f32.mxu0 0.0
    %1596 = vmatmul.mubr.f32.gmra.mrb[0].mxu0 %v1449
    %v1597 = vpop.f32.mrb[0].mxu0
    %v1598 = vadd.f32 0.0, %v1597
    %v1599 = vpop.f32.mrb[0].mxu0
    %v1600 = vadd.f32 0.0, %v1599
    %1601 = vmatprep.mubr.f32.mxu0 0.0
    %1602 = vmatmul.mubr.f32.gmra.mrb[0].mxu0 %v1452
    %v1603 = vpop.f32.mrb[0].mxu0
    %v1604 = vadd.f32 0.0, %v1603
    %v1605 = vpop.f32.mrb[0].mxu0
    %v1606 = vadd.f32 0.0, %v1605
    %1607 = vdwg.mxu0
    %v1608 = vmax.f32 %v1359, %v1521
    %v1609 = vmax.f32 %v1361, %v1523
    %v1610 = vmax.f32 %v1436, %v1598
    %v1611 = vmax.f32 %v1438, %v1600
    %v1612 = vmax.f32 %v1365, %v1527
    %v1613 = vmax.f32 %v1367, %v1529
    %v1614 = vmax.f32 %v1442, %v1604
    %v1615 = vmax.f32 %v1444, %v1606
    %v1616 = vmax.f32 %v1608, %v1610
    %v1617 = vmax.f32 %v1609, %v1611
    %v1618 = vmax.f32 %v1612, %v1614
    %v1619 = vmax.f32 %v1613, %v1615
    %v1620 = vmax.f32 %v1616, 0.0
    %v1621 = vmax.f32 %v1617, 0.0
    %v1622 = vmax.f32 %v1618, 0.0
    %v1623 = vmax.f32 %v1619, 0.0
    %v1624 = vld [vmem:[#allocation9] sm:$0xff]
    %v1625 = vld [vmem:[#allocation9 + $0x8] sm:$0xff]
    %v1626 = vld [vmem:[#allocation9 + $0x10] sm:$0xff]
    %v1627 = vld [vmem:[#allocation9 + $0x18] sm:$0xff]
    %v1628 = vld [vmem:[#allocation9 + $0x20] sm:$0xff]
    %v1629 = vld [vmem:[#allocation9 + $0x28] sm:$0xff]
    %v1630 = vld [vmem:[#allocation9 + $0x30] sm:$0xff]
    %v1631 = vld [vmem:[#allocation9 + $0x38] sm:$0xff]
    %v1632 = vld [vmem:[#allocation9 + $0x40] sm:$0xff]
    %v1633 = vld [vmem:[#allocation9 + $0x48] sm:$0xff]
    %v1634 = vld [vmem:[#allocation9 + $0x50] sm:$0xff]
    %v1635 = vld [vmem:[#allocation9 + $0x58] sm:$0xff]
    %v1636 = vld [vmem:[#allocation9 + $0x60] sm:$0xff]
    %v1637 = vld [vmem:[#allocation9 + $0x68] sm:$0xff]
    %v1638 = vld [vmem:[#allocation9 + $0x70] sm:$0xff]
    %v1639 = vld [vmem:[#allocation9 + $0x78] sm:$0xff]
    %v1640 = vld [vmem:[#allocation9 + $0x80] sm:$0xff]
    %v1641 = vld [vmem:[#allocation9 + $0x88] sm:$0xff]
    %v1642 = vld [vmem:[#allocation9 + $0x90] sm:$0xff]
    %v1643 = vld [vmem:[#allocation9 + $0x98] sm:$0xff]
    %v1644 = vld [vmem:[#allocation9 + $0xa0] sm:$0xff]
    %v1645 = vld [vmem:[#allocation9 + $0xa8] sm:$0xff]
    %v1646 = vld [vmem:[#allocation9 + $0xb0] sm:$0xff]
    %v1647 = vld [vmem:[#allocation9 + $0xb8] sm:$0xff]
    %v1648 = vld [vmem:[#allocation9 + $0xc0] sm:$0xff]
    %v1649 = vld [vmem:[#allocation9 + $0xc8] sm:$0xff]
    %v1650 = vld [vmem:[#allocation9 + $0xd0] sm:$0xff]
    %v1651 = vld [vmem:[#allocation9 + $0xd8] sm:$0xff]
    %v1652 = vld [vmem:[#allocation9 + $0xe0] sm:$0xff]
    %v1653 = vld [vmem:[#allocation9 + $0xe8] sm:$0xff]
    %v1654 = vld [vmem:[#allocation9 + $0xf0] sm:$0xff]
    %v1655 = vld [vmem:[#allocation9 + $0xf8] sm:$0xff]
    %v1656 = vld [vmem:[#allocation9 + $0x100] sm:$0xff]
    %v1657 = vld [vmem:[#allocation9 + $0x108] sm:$0xff]
    %v1658 = vld [vmem:[#allocation9 + $0x110] sm:$0xff]
    %v1659 = vld [vmem:[#allocation9 + $0x118] sm:$0xff]
    %v1660 = vld [vmem:[#allocation9 + $0x120] sm:$0xff]
    %v1661 = vld [vmem:[#allocation9 + $0x128] sm:$0xff]
    %v1662 = vld [vmem:[#allocation9 + $0x130] sm:$0xff]
    %v1663 = vld [vmem:[#allocation9 + $0x138] sm:$0xff]
    %v1664 = vld [vmem:[#allocation9 + $0x140] sm:$0xff]
    %v1665 = vld [vmem:[#allocation9 + $0x148] sm:$0xff]
    %v1666 = vld [vmem:[#allocation9 + $0x150] sm:$0xff]
    %v1667 = vld [vmem:[#allocation9 + $0x158] sm:$0xff]
    %v1668 = vld [vmem:[#allocation9 + $0x160] sm:$0xff]
    %v1669 = vld [vmem:[#allocation9 + $0x168] sm:$0xff]
    %v1670 = vld [vmem:[#allocation9 + $0x170] sm:$0xff]
    %v1671 = vld [vmem:[#allocation9 + $0x178] sm:$0xff]
    %v1672 = vld [vmem:[#allocation9 + $0x180] sm:$0xff]
    %v1673 = vld [vmem:[#allocation9 + $0x188] sm:$0xff]
    %v1674 = vld [vmem:[#allocation9 + $0x190] sm:$0xff]
    %v1675 = vld [vmem:[#allocation9 + $0x198] sm:$0xff]
    %v1676 = vld [vmem:[#allocation9 + $0x1a0] sm:$0xff]
    %v1677 = vld [vmem:[#allocation9 + $0x1a8] sm:$0xff]
    %v1678 = vld [vmem:[#allocation9 + $0x1b0] sm:$0xff]
    %v1679 = vld [vmem:[#allocation9 + $0x1b8] sm:$0xff]
    %v1680 = vld [vmem:[#allocation9 + $0x1c0] sm:$0xff]
    %v1681 = vld [vmem:[#allocation9 + $0x1c8] sm:$0xff]
    %v1682 = vld [vmem:[#allocation9 + $0x1d0] sm:$0xff]
    %v1683 = vld [vmem:[#allocation9 + $0x1d8] sm:$0xff]
    %v1684 = vld [vmem:[#allocation9 + $0x1e0] sm:$0xff]
    %v1685 = vld [vmem:[#allocation9 + $0x1e8] sm:$0xff]
    %v1686 = vld [vmem:[#allocation9 + $0x1f0] sm:$0xff]
    %v1687 = vld [vmem:[#allocation9 + $0x1f8] sm:$0xff]
    %v1688 = vld [vmem:[#allocation9 + $0x200] sm:$0xff]
    %v1689 = vld [vmem:[#allocation9 + $0x208] sm:$0xff]
    %v1690 = vld [vmem:[#allocation9 + $0x210] sm:$0xff]
    %v1691 = vld [vmem:[#allocation9 + $0x218] sm:$0xff]
    %v1692 = vld [vmem:[#allocation9 + $0x220] sm:$0xff]
    %v1693 = vld [vmem:[#allocation9 + $0x228] sm:$0xff]
    %v1694 = vld [vmem:[#allocation9 + $0x230] sm:$0xff]
    %v1695 = vld [vmem:[#allocation9 + $0x238] sm:$0xff]
    %v1696 = vld [vmem:[#allocation9 + $0x240] sm:$0xff]
    %v1697 = vld [vmem:[#allocation9 + $0x248] sm:$0xff]
    %v1698 = vld [vmem:[#allocation9 + $0x250] sm:$0xff]
    %v1699 = vld [vmem:[#allocation9 + $0x258] sm:$0xff]
    %v1700 = vld [vmem:[#allocation9 + $0x260] sm:$0xff]
    %v1701 = vld [vmem:[#allocation9 + $0x268] sm:$0xff]
    %v1702 = vld [vmem:[#allocation9 + $0x270] sm:$0xff]
    %v1703 = vld [vmem:[#allocation9 + $0x278] sm:$0xff]
    %v1704 = vld [vmem:[#allocation9 + $0x280] sm:$0xff]
    %v1705 = vld [vmem:[#allocation9 + $0x288] sm:$0xff]
    %v1706 = vld [vmem:[#allocation9 + $0x290] sm:$0xff]
    %v1707 = vld [vmem:[#allocation9 + $0x298] sm:$0xff]
    %v1708 = vld [vmem:[#allocation9 + $0x2a0] sm:$0xff]
    %v1709 = vld [vmem:[#allocation9 + $0x2a8] sm:$0xff]
    %v1710 = vld [vmem:[#allocation9 + $0x2b0] sm:$0xff]
    %v1711 = vld [vmem:[#allocation9 + $0x2b8] sm:$0xff]
    %v1712 = vld [vmem:[#allocation9 + $0x2c0] sm:$0xff]
    %v1713 = vld [vmem:[#allocation9 + $0x2c8] sm:$0xff]
    %v1714 = vld [vmem:[#allocation9 + $0x2d0] sm:$0xff]
    %v1715 = vld [vmem:[#allocation9 + $0x2d8] sm:$0xff]
    %v1716 = vld [vmem:[#allocation9 + $0x2e0] sm:$0xff]
    %v1717 = vld [vmem:[#allocation9 + $0x2e8] sm:$0xff]
    %v1718 = vld [vmem:[#allocation9 + $0x2f0] sm:$0xff]
    %v1719 = vld [vmem:[#allocation9 + $0x2f8] sm:$0xff]
    %v1720 = vld [vmem:[#allocation9 + $0x300] sm:$0xff]
    %v1721 = vld [vmem:[#allocation9 + $0x308] sm:$0xff]
    %v1722 = vld [vmem:[#allocation9 + $0x310] sm:$0xff]
    %v1723 = vld [vmem:[#allocation9 + $0x318] sm:$0xff]
    %v1724 = vld [vmem:[#allocation9 + $0x320] sm:$0xff]
    %v1725 = vld [vmem:[#allocation9 + $0x328] sm:$0xff]
    %v1726 = vld [vmem:[#allocation9 + $0x330] sm:$0xff]
    %v1727 = vld [vmem:[#allocation9 + $0x338] sm:$0xff]
    %v1728 = vld [vmem:[#allocation9 + $0x340] sm:$0xff]
    %v1729 = vld [vmem:[#allocation9 + $0x348] sm:$0xff]
    %v1730 = vld [vmem:[#allocation9 + $0x350] sm:$0xff]
    %v1731 = vld [vmem:[#allocation9 + $0x358] sm:$0xff]
    %v1732 = vld [vmem:[#allocation9 + $0x360] sm:$0xff]
    %v1733 = vld [vmem:[#allocation9 + $0x368] sm:$0xff]
    %v1734 = vld [vmem:[#allocation9 + $0x370] sm:$0xff]
    %v1735 = vld [vmem:[#allocation9 + $0x378] sm:$0xff]
    %v1736 = vld [vmem:[#allocation9 + $0x380] sm:$0xff]
    %v1737 = vld [vmem:[#allocation9 + $0x388] sm:$0xff]
    %v1738 = vld [vmem:[#allocation9 + $0x390] sm:$0xff]
    %v1739 = vld [vmem:[#allocation9 + $0x398] sm:$0xff]
    %v1740 = vld [vmem:[#allocation9 + $0x3a0] sm:$0xff]
    %v1741 = vld [vmem:[#allocation9 + $0x3a8] sm:$0xff]
    %v1742 = vld [vmem:[#allocation9 + $0x3b0] sm:$0xff]
    %v1743 = vld [vmem:[#allocation9 + $0x3b8] sm:$0xff]
    %v1744 = vld [vmem:[#allocation9 + $0x3c0] sm:$0xff]
    %v1745 = vld [vmem:[#allocation9 + $0x3c8] sm:$0xff]
    %v1746 = vld [vmem:[#allocation9 + $0x3d0] sm:$0xff]
    %v1747 = vld [vmem:[#allocation9 + $0x3d8] sm:$0xff]
    %v1748 = vld [vmem:[#allocation9 + $0x3e0] sm:$0xff]
    %v1749 = vld [vmem:[#allocation9 + $0x3e8] sm:$0xff]
    %v1750 = vld [vmem:[#allocation9 + $0x3f0] sm:$0xff]
    %v1751 = vld [vmem:[#allocation9 + $0x3f8] sm:$0xff]
    %s1752 = scalar_lea.vmem [#allocation9], 1024
    %v1753 = vld [vmem:[%s1752] sm:$0xff]
    %v1754 = vld [vmem:[%s1752 + $0x8] sm:$0xff]
    %v1755 = vld [vmem:[%s1752 + $0x10] sm:$0xff]
    %v1756 = vld [vmem:[%s1752 + $0x18] sm:$0xff]
    %v1757 = vld [vmem:[%s1752 + $0x20] sm:$0xff]
    %v1758 = vld [vmem:[%s1752 + $0x28] sm:$0xff]
    %v1759 = vld [vmem:[%s1752 + $0x30] sm:$0xff]
    %v1760 = vld [vmem:[%s1752 + $0x38] sm:$0xff]
    %v1761 = vld [vmem:[%s1752 + $0x40] sm:$0xff]
    %v1762 = vld [vmem:[%s1752 + $0x48] sm:$0xff]
    %v1763 = vld [vmem:[%s1752 + $0x50] sm:$0xff]
    %v1764 = vld [vmem:[%s1752 + $0x58] sm:$0xff]
    %v1765 = vld [vmem:[%s1752 + $0x60] sm:$0xff]
    %v1766 = vld [vmem:[%s1752 + $0x68] sm:$0xff]
    %v1767 = vld [vmem:[%s1752 + $0x70] sm:$0xff]
    %v1768 = vld [vmem:[%s1752 + $0x78] sm:$0xff]
    %v1769 = vld [vmem:[%s1752 + $0x80] sm:$0xff]
    %v1770 = vld [vmem:[%s1752 + $0x88] sm:$0xff]
    %v1771 = vld [vmem:[%s1752 + $0x90] sm:$0xff]
    %v1772 = vld [vmem:[%s1752 + $0x98] sm:$0xff]
    %v1773 = vld [vmem:[%s1752 + $0xa0] sm:$0xff]
    %v1774 = vld [vmem:[%s1752 + $0xa8] sm:$0xff]
    %v1775 = vld [vmem:[%s1752 + $0xb0] sm:$0xff]
    %v1776 = vld [vmem:[%s1752 + $0xb8] sm:$0xff]
    %v1777 = vld [vmem:[%s1752 + $0xc0] sm:$0xff]
    %v1778 = vld [vmem:[%s1752 + $0xc8] sm:$0xff]
    %v1779 = vld [vmem:[%s1752 + $0xd0] sm:$0xff]
    %v1780 = vld [vmem:[%s1752 + $0xd8] sm:$0xff]
    %v1781 = vld [vmem:[%s1752 + $0xe0] sm:$0xff]
    %v1782 = vld [vmem:[%s1752 + $0xe8] sm:$0xff]
    %v1783 = vld [vmem:[%s1752 + $0xf0] sm:$0xff]
    %v1784 = vld [vmem:[%s1752 + $0xf8] sm:$0xff]
    %v1785 = vld [vmem:[%s1752 + $0x100] sm:$0xff]
    %v1786 = vld [vmem:[%s1752 + $0x108] sm:$0xff]
    %v1787 = vld [vmem:[%s1752 + $0x110] sm:$0xff]
    %v1788 = vld [vmem:[%s1752 + $0x118] sm:$0xff]
    %v1789 = vld [vmem:[%s1752 + $0x120] sm:$0xff]
    %v1790 = vld [vmem:[%s1752 + $0x128] sm:$0xff]
    %v1791 = vld [vmem:[%s1752 + $0x130] sm:$0xff]
    %v1792 = vld [vmem:[%s1752 + $0x138] sm:$0xff]
    %v1793 = vld [vmem:[%s1752 + $0x140] sm:$0xff]
    %v1794 = vld [vmem:[%s1752 + $0x148] sm:$0xff]
    %v1795 = vld [vmem:[%s1752 + $0x150] sm:$0xff]
    %v1796 = vld [vmem:[%s1752 + $0x158] sm:$0xff]
    %v1797 = vld [vmem:[%s1752 + $0x160] sm:$0xff]
    %v1798 = vld [vmem:[%s1752 + $0x168] sm:$0xff]
    %v1799 = vld [vmem:[%s1752 + $0x170] sm:$0xff]
    %v1800 = vld [vmem:[%s1752 + $0x178] sm:$0xff]
    %v1801 = vld [vmem:[%s1752 + $0x180] sm:$0xff]
    %v1802 = vld [vmem:[%s1752 + $0x188] sm:$0xff]
    %v1803 = vld [vmem:[%s1752 + $0x190] sm:$0xff]
    %v1804 = vld [vmem:[%s1752 + $0x198] sm:$0xff]
    %v1805 = vld [vmem:[%s1752 + $0x1a0] sm:$0xff]
    %v1806 = vld [vmem:[%s1752 + $0x1a8] sm:$0xff]
    %v1807 = vld [vmem:[%s1752 + $0x1b0] sm:$0xff]
    %v1808 = vld [vmem:[%s1752 + $0x1b8] sm:$0xff]
    %v1809 = vld [vmem:[%s1752 + $0x1c0] sm:$0xff]
    %v1810 = vld [vmem:[%s1752 + $0x1c8] sm:$0xff]
    %v1811 = vld [vmem:[%s1752 + $0x1d0] sm:$0xff]
    %v1812 = vld [vmem:[%s1752 + $0x1d8] sm:$0xff]
    %v1813 = vld [vmem:[%s1752 + $0x1e0] sm:$0xff]
    %v1814 = vld [vmem:[%s1752 + $0x1e8] sm:$0xff]
    %v1815 = vld [vmem:[%s1752 + $0x1f0] sm:$0xff]
    %v1816 = vld [vmem:[%s1752 + $0x1f8] sm:$0xff]
    %v1817 = vld [vmem:[%s1752 + $0x200] sm:$0xff]
    %v1818 = vld [vmem:[%s1752 + $0x208] sm:$0xff]
    %v1819 = vld [vmem:[%s1752 + $0x210] sm:$0xff]
    %v1820 = vld [vmem:[%s1752 + $0x218] sm:$0xff]
    %v1821 = vld [vmem:[%s1752 + $0x220] sm:$0xff]
    %v1822 = vld [vmem:[%s1752 + $0x228] sm:$0xff]
    %v1823 = vld [vmem:[%s1752 + $0x230] sm:$0xff]
    %v1824 = vld [vmem:[%s1752 + $0x238] sm:$0xff]
    %v1825 = vld [vmem:[%s1752 + $0x240] sm:$0xff]
    %v1826 = vld [vmem:[%s1752 + $0x248] sm:$0xff]
    %v1827 = vld [vmem:[%s1752 + $0x250] sm:$0xff]
    %v1828 = vld [vmem:[%s1752 + $0x258] sm:$0xff]
    %v1829 = vld [vmem:[%s1752 + $0x260] sm:$0xff]
    %v1830 = vld [vmem:[%s1752 + $0x268] sm:$0xff]
    %v1831 = vld [vmem:[%s1752 + $0x270] sm:$0xff]
    %v1832 = vld [vmem:[%s1752 + $0x278] sm:$0xff]
    %v1833 = vld [vmem:[%s1752 + $0x280] sm:$0xff]
    %v1834 = vld [vmem:[%s1752 + $0x288] sm:$0xff]
    %v1835 = vld [vmem:[%s1752 + $0x290] sm:$0xff]
    %v1836 = vld [vmem:[%s1752 + $0x298] sm:$0xff]
    %v1837 = vld [vmem:[%s1752 + $0x2a0] sm:$0xff]
    %v1838 = vld [vmem:[%s1752 + $0x2a8] sm:$0xff]
    %v1839 = vld [vmem:[%s1752 + $0x2b0] sm:$0xff]
    %v1840 = vld [vmem:[%s1752 + $0x2b8] sm:$0xff]
    %v1841 = vld [vmem:[%s1752 + $0x2c0] sm:$0xff]
    %v1842 = vld [vmem:[%s1752 + $0x2c8] sm:$0xff]
    %v1843 = vld [vmem:[%s1752 + $0x2d0] sm:$0xff]
    %v1844 = vld [vmem:[%s1752 + $0x2d8] sm:$0xff]
    %v1845 = vld [vmem:[%s1752 + $0x2e0] sm:$0xff]
    %v1846 = vld [vmem:[%s1752 + $0x2e8] sm:$0xff]
    %v1847 = vld [vmem:[%s1752 + $0x2f0] sm:$0xff]
    %v1848 = vld [vmem:[%s1752 + $0x2f8] sm:$0xff]
    %v1849 = vld [vmem:[%s1752 + $0x300] sm:$0xff]
    %v1850 = vld [vmem:[%s1752 + $0x308] sm:$0xff]
    %v1851 = vld [vmem:[%s1752 + $0x310] sm:$0xff]
    %v1852 = vld [vmem:[%s1752 + $0x318] sm:$0xff]
    %v1853 = vld [vmem:[%s1752 + $0x320] sm:$0xff]
    %v1854 = vld [vmem:[%s1752 + $0x328] sm:$0xff]
    %v1855 = vld [vmem:[%s1752 + $0x330] sm:$0xff]
    %v1856 = vld [vmem:[%s1752 + $0x338] sm:$0xff]
    %v1857 = vld [vmem:[%s1752 + $0x340] sm:$0xff]
    %v1858 = vld [vmem:[%s1752 + $0x348] sm:$0xff]
    %v1859 = vld [vmem:[%s1752 + $0x350] sm:$0xff]
    %v1860 = vld [vmem:[%s1752 + $0x358] sm:$0xff]
    %v1861 = vld [vmem:[%s1752 + $0x360] sm:$0xff]
    %v1862 = vld [vmem:[%s1752 + $0x368] sm:$0xff]
    %v1863 = vld [vmem:[%s1752 + $0x370] sm:$0xff]
    %v1864 = vld [vmem:[%s1752 + $0x378] sm:$0xff]
    %v1865 = vld [vmem:[%s1752 + $0x380] sm:$0xff]
    %v1866 = vld [vmem:[%s1752 + $0x388] sm:$0xff]
    %v1867 = vld [vmem:[%s1752 + $0x390] sm:$0xff]
    %v1868 = vld [vmem:[%s1752 + $0x398] sm:$0xff]
    %v1869 = vld [vmem:[%s1752 + $0x3a0] sm:$0xff]
    %v1870 = vld [vmem:[%s1752 + $0x3a8] sm:$0xff]
    %v1871 = vld [vmem:[%s1752 + $0x3b0] sm:$0xff]
    %v1872 = vld [vmem:[%s1752 + $0x3b8] sm:$0xff]
    %v1873 = vld [vmem:[%s1752 + $0x3c0] sm:$0xff]
    %v1874 = vld [vmem:[%s1752 + $0x3c8] sm:$0xff]
    %v1875 = vld [vmem:[%s1752 + $0x3d0] sm:$0xff]
    %v1876 = vld [vmem:[%s1752 + $0x3d8] sm:$0xff]
    %v1877 = vld [vmem:[%s1752 + $0x3e0] sm:$0xff]
    %v1878 = vld [vmem:[%s1752 + $0x3e8] sm:$0xff]
    %v1879 = vld [vmem:[%s1752 + $0x3f0] sm:$0xff]
    %v1880 = vld [vmem:[%s1752 + $0x3f8] sm:$0xff]
    %v1885 = vrot.slane %v1620, 1
    %v1886 = vrot.slane %v1622, 1
    %v1887 = vsel %vm233, %v1885, %v1886
    %v1888 = vrot.slane %v1621, 1
    %v1889 = vrot.slane %v1623, 1
    %v1890 = vsel %vm233, %v1888, %v1889
    %1893 = vmatprep.subr.mxu0 %v1754
    %1894 = vmatpush1.msra.mxu0 %v1753
    %1895 = vmatprep.subr.mxu0 %v1758
    %1896 = vmatpush1.msra.mxu0 %v1757
    %1897 = vmatprep.subr.mxu0 %v1762
    %1898 = vmatpush1.msra.mxu0 %v1761
    %1899 = vmatprep.subr.mxu0 %v1766
    %1900 = vmatpush1.msra.mxu0 %v1765
    %1901 = vmatprep.subr.mxu0 %v1770
    %1902 = vmatpush1.msra.mxu0 %v1769
    %1903 = vmatprep.subr.mxu0 %v1774
    %1904 = vmatpush1.msra.mxu0 %v1773
    %1905 = vmatprep.subr.mxu0 %v1778
    %1906 = vmatpush1.msra.mxu0 %v1777
    %1907 = vmatprep.subr.mxu0 %v1782
    %1908 = vmatpush1.msra.mxu0 %v1781
    %1909 = vmatprep.subr.mxu0 %v1786
    %1910 = vmatpush1.msra.mxu0 %v1785
    %1911 = vmatprep.subr.mxu0 %v1790
    %1912 = vmatpush1.msra.mxu0 %v1789
    %1913 = vmatprep.subr.mxu0 %v1794
    %1914 = vmatpush1.msra.mxu0 %v1793
    %1915 = vmatprep.subr.mxu0 %v1798
    %1916 = vmatpush1.msra.mxu0 %v1797
    %1917 = vmatprep.subr.mxu0 %v1802
    %1918 = vmatpush1.msra.mxu0 %v1801
    %1919 = vmatprep.subr.mxu0 %v1806
    %1920 = vmatpush1.msra.mxu0 %v1805
    %1921 = vmatprep.subr.mxu0 %v1810
    %1922 = vmatpush1.msra.mxu0 %v1809
    %1923 = vmatprep.subr.mxu0 %v1814
    %1924 = vmatpush1.msra.mxu0 %v1813
    %1925 = vmatprep.subr.mxu0 %v1818
    %1926 = vmatpush1.msra.mxu0 %v1817
    %1927 = vmatprep.subr.mxu0 %v1822
    %1928 = vmatpush1.msra.mxu0 %v1821
    %1929 = vmatprep.subr.mxu0 %v1826
    %1930 = vmatpush1.msra.mxu0 %v1825
    %1931 = vmatprep.subr.mxu0 %v1830
    %1932 = vmatpush1.msra.mxu0 %v1829
    %1933 = vmatprep.subr.mxu0 %v1834
    %1934 = vmatpush1.msra.mxu0 %v1833
    %1935 = vmatprep.subr.mxu0 %v1838
    %1936 = vmatpush1.msra.mxu0 %v1837
    %1937 = vmatprep.subr.mxu0 %v1842
    %1938 = vmatpush1.msra.mxu0 %v1841
    %1939 = vmatprep.subr.mxu0 %v1846
    %1940 = vmatpush1.msra.mxu0 %v1845
    %1941 = vmatprep.subr.mxu0 %v1850
    %1942 = vmatpush1.msra.mxu0 %v1849
    %1943 = vmatprep.subr.mxu0 %v1854
    %1944 = vmatpush1.msra.mxu0 %v1853
    %1945 = vmatprep.subr.mxu0 %v1858
    %1946 = vmatpush1.msra.mxu0 %v1857
    %1947 = vmatprep.subr.mxu0 %v1862
    %1948 = vmatpush1.msra.mxu0 %v1861
    %1949 = vmatprep.subr.mxu0 %v1866
    %1950 = vmatpush1.msra.mxu0 %v1865
    %1951 = vmatprep.subr.mxu0 %v1870
    %1952 = vmatpush1.msra.mxu0 %v1869
    %1953 = vmatprep.subr.mxu0 %v1874
    %1954 = vmatpush1.msra.mxu0 %v1873
    %1955 = vmatprep.subr.mxu0 %v1878
    %1956 = vmatpush1.msra.mxu0 %v1877
    %1957 = vmatprep.mubr.f32.mxu0 %v1890
    %1958 = vmatmul.mubr.f32.gmra.mrb[0].mxu0 %v1887
    %v1959 = vpop.f32.mrb[0].mxu0
    %v1960 = vadd.f32 0.0, %v1959
    %v1961 = vpop.f32.mrb[0].mxu0
    %v1962 = vadd.f32 0.0, %v1961
    %1963 = vdwg.mxu0
    %1964 = vmatprep.subr.mxu0 %v1756
    %1965 = vmatpush1.msra.mxu0 %v1755
    %1966 = vmatprep.subr.mxu0 %v1760
    %1967 = vmatpush1.msra.mxu0 %v1759
    %1968 = vmatprep.subr.mxu0 %v1764
    %1969 = vmatpush1.msra.mxu0 %v1763
    %1970 = vmatprep.subr.mxu0 %v1768
    %1971 = vmatpush1.msra.mxu0 %v1767
    %1972 = vmatprep.subr.mxu0 %v1772
    %1973 = vmatpush1.msra.mxu0 %v1771
    %1974 = vmatprep.subr.mxu0 %v1776
    %1975 = vmatpush1.msra.mxu0 %v1775
    %1976 = vmatprep.subr.mxu0 %v1780
    %1977 = vmatpush1.msra.mxu0 %v1779
    %1978 = vmatprep.subr.mxu0 %v1784
    %1979 = vmatpush1.msra.mxu0 %v1783
    %1980 = vmatprep.subr.mxu0 %v1788
    %1981 = vmatpush1.msra.mxu0 %v1787
    %1982 = vmatprep.subr.mxu0 %v1792
    %1983 = vmatpush1.msra.mxu0 %v1791
    %1984 = vmatprep.subr.mxu0 %v1796
    %1985 = vmatpush1.msra.mxu0 %v1795
    %1986 = vmatprep.subr.mxu0 %v1800
    %1987 = vmatpush1.msra.mxu0 %v1799
    %1988 = vmatprep.subr.mxu0 %v1804
    %1989 = vmatpush1.msra.mxu0 %v1803
    %1990 = vmatprep.subr.mxu0 %v1808
    %1991 = vmatpush1.msra.mxu0 %v1807
    %1992 = vmatprep.subr.mxu0 %v1812
    %1993 = vmatpush1.msra.mxu0 %v1811
    %1994 = vmatprep.subr.mxu0 %v1816
    %1995 = vmatpush1.msra.mxu0 %v1815
    %1996 = vmatprep.subr.mxu0 %v1820
    %1997 = vmatpush1.msra.mxu0 %v1819
    %1998 = vmatprep.subr.mxu0 %v1824
    %1999 = vmatpush1.msra.mxu0 %v1823
    %2000 = vmatprep.subr.mxu0 %v1828
    %2001 = vmatpush1.msra.mxu0 %v1827
    %2002 = vmatprep.subr.mxu0 %v1832
    %2003 = vmatpush1.msra.mxu0 %v1831
    %2004 = vmatprep.subr.mxu0 %v1836
    %2005 = vmatpush1.msra.mxu0 %v1835
    %2006 = vmatprep.subr.mxu0 %v1840
    %2007 = vmatpush1.msra.mxu0 %v1839
    %2008 = vmatprep.subr.mxu0 %v1844
    %2009 = vmatpush1.msra.mxu0 %v1843
    %2010 = vmatprep.subr.mxu0 %v1848
    %2011 = vmatpush1.msra.mxu0 %v1847
    %2012 = vmatprep.subr.mxu0 %v1852
    %2013 = vmatpush1.msra.mxu0 %v1851
    %2014 = vmatprep.subr.mxu0 %v1856
    %2015 = vmatpush1.msra.mxu0 %v1855
    %2016 = vmatprep.subr.mxu0 %v1860
    %2017 = vmatpush1.msra.mxu0 %v1859
    %2018 = vmatprep.subr.mxu0 %v1864
    %2019 = vmatpush1.msra.mxu0 %v1863
    %2020 = vmatprep.subr.mxu0 %v1868
    %2021 = vmatpush1.msra.mxu0 %v1867
    %2022 = vmatprep.subr.mxu0 %v1872
    %2023 = vmatpush1.msra.mxu0 %v1871
    %2024 = vmatprep.subr.mxu0 %v1876
    %2025 = vmatpush1.msra.mxu0 %v1875
    %2026 = vmatprep.subr.mxu0 %v1880
    %2027 = vmatpush1.msra.mxu0 %v1879
    %2028 = vmatprep.mubr.f32.mxu0 %v1890
    %2029 = vmatmul.mubr.f32.gmra.mrb[0].mxu0 %v1887
    %v2030 = vpop.f32.mrb[0].mxu0
    %v2031 = vadd.f32 0.0, %v2030
    %v2032 = vpop.f32.mrb[0].mxu0
    %v2033 = vadd.f32 0.0, %v2032
    %2034 = vdwg.mxu0
    %2035 = vmatprep.subr.mxu0 %v1625
    %2036 = vmatpush1.msra.mxu0 %v1624
    %2037 = vmatprep.subr.mxu0 %v1629
    %2038 = vmatpush1.msra.mxu0 %v1628
    %2039 = vmatprep.subr.mxu0 %v1633
    %2040 = vmatpush1.msra.mxu0 %v1632
    %2041 = vmatprep.subr.mxu0 %v1637
    %2042 = vmatpush1.msra.mxu0 %v1636
    %2043 = vmatprep.subr.mxu0 %v1641
    %2044 = vmatpush1.msra.mxu0 %v1640
    %2045 = vmatprep.subr.mxu0 %v1645
    %2046 = vmatpush1.msra.mxu0 %v1644
    %2047 = vmatprep.subr.mxu0 %v1649
    %2048 = vmatpush1.msra.mxu0 %v1648
    %2049 = vmatprep.subr.mxu0 %v1653
    %2050 = vmatpush1.msra.mxu0 %v1652
    %2051 = vmatprep.subr.mxu0 %v1657
    %2052 = vmatpush1.msra.mxu0 %v1656
    %2053 = vmatprep.subr.mxu0 %v1661
    %2054 = vmatpush1.msra.mxu0 %v1660
    %2055 = vmatprep.subr.mxu0 %v1665
    %2056 = vmatpush1.msra.mxu0 %v1664
    %2057 = vmatprep.subr.mxu0 %v1669
    %2058 = vmatpush1.msra.mxu0 %v1668
    %2059 = vmatprep.subr.mxu0 %v1673
    %2060 = vmatpush1.msra.mxu0 %v1672
    %2061 = vmatprep.subr.mxu0 %v1677
    %2062 = vmatpush1.msra.mxu0 %v1676
    %2063 = vmatprep.subr.mxu0 %v1681
    %2064 = vmatpush1.msra.mxu0 %v1680
    %2065 = vmatprep.subr.mxu0 %v1685
    %2066 = vmatpush1.msra.mxu0 %v1684
    %2067 = vmatprep.subr.mxu0 %v1689
    %2068 = vmatpush1.msra.mxu0 %v1688
    %2069 = vmatprep.subr.mxu0 %v1693
    %2070 = vmatpush1.msra.mxu0 %v1692
    %2071 = vmatprep.subr.mxu0 %v1697
    %2072 = vmatpush1.msra.mxu0 %v1696
    %2073 = vmatprep.subr.mxu0 %v1701
    %2074 = vmatpush1.msra.mxu0 %v1700
    %2075 = vmatprep.subr.mxu0 %v1705
    %2076 = vmatpush1.msra.mxu0 %v1704
    %2077 = vmatprep.subr.mxu0 %v1709
    %2078 = vmatpush1.msra.mxu0 %v1708
    %2079 = vmatprep.subr.mxu0 %v1713
    %2080 = vmatpush1.msra.mxu0 %v1712
    %2081 = vmatprep.subr.mxu0 %v1717
    %2082 = vmatpush1.msra.mxu0 %v1716
    %2083 = vmatprep.subr.mxu0 %v1721
    %2084 = vmatpush1.msra.mxu0 %v1720
    %2085 = vmatprep.subr.mxu0 %v1725
    %2086 = vmatpush1.msra.mxu0 %v1724
    %2087 = vmatprep.subr.mxu0 %v1729
    %2088 = vmatpush1.msra.mxu0 %v1728
    %2089 = vmatprep.subr.mxu0 %v1733
    %2090 = vmatpush1.msra.mxu0 %v1732
    %2091 = vmatprep.subr.mxu0 %v1737
    %2092 = vmatpush1.msra.mxu0 %v1736
    %2093 = vmatprep.subr.mxu0 %v1741
    %2094 = vmatpush1.msra.mxu0 %v1740
    %2095 = vmatprep.subr.mxu0 %v1745
    %2096 = vmatpush1.msra.mxu0 %v1744
    %2097 = vmatprep.subr.mxu0 %v1749
    %2098 = vmatpush1.msra.mxu0 %v1748
    %2099 = vmatprep.mubr.f32.mxu0 %v1621
    %2100 = vmatmul.mubr.f32.gmra.mrb[0].mxu0 %v1620
    %v2101 = vpop.f32.mrb[0].mxu0
    %v2102 = vadd.f32 %v1960, %v2101
    %v2103 = vpop.f32.mrb[0].mxu0
    %v2104 = vadd.f32 %v1962, %v2103
    %2105 = vdwg.mxu0
    %2106 = vmatprep.subr.mxu0 %v1627
    %2107 = vmatpush1.msra.mxu0 %v1626
    %2108 = vmatprep.subr.mxu0 %v1631
    %2109 = vmatpush1.msra.mxu0 %v1630
    %2110 = vmatprep.subr.mxu0 %v1635
    %2111 = vmatpush1.msra.mxu0 %v1634
    %2112 = vmatprep.subr.mxu0 %v1639
    %2113 = vmatpush1.msra.mxu0 %v1638
    %2114 = vmatprep.subr.mxu0 %v1643
    %2115 = vmatpush1.msra.mxu0 %v1642
    %2116 = vmatprep.subr.mxu0 %v1647
    %2117 = vmatpush1.msra.mxu0 %v1646
    %2118 = vmatprep.subr.mxu0 %v1651
    %2119 = vmatpush1.msra.mxu0 %v1650
    %2120 = vmatprep.subr.mxu0 %v1655
    %2121 = vmatpush1.msra.mxu0 %v1654
    %2122 = vmatprep.subr.mxu0 %v1659
    %2123 = vmatpush1.msra.mxu0 %v1658
    %2124 = vmatprep.subr.mxu0 %v1663
    %2125 = vmatpush1.msra.mxu0 %v1662
    %2126 = vmatprep.subr.mxu0 %v1667
    %2127 = vmatpush1.msra.mxu0 %v1666
    %2128 = vmatprep.subr.mxu0 %v1671
    %2129 = vmatpush1.msra.mxu0 %v1670
    %2130 = vmatprep.subr.mxu0 %v1675
    %2131 = vmatpush1.msra.mxu0 %v1674
    %2132 = vmatprep.subr.mxu0 %v1679
    %2133 = vmatpush1.msra.mxu0 %v1678
    %2134 = vmatprep.subr.mxu0 %v1683
    %2135 = vmatpush1.msra.mxu0 %v1682
    %2136 = vmatprep.subr.mxu0 %v1687
    %2137 = vmatpush1.msra.mxu0 %v1686
    %2138 = vmatprep.subr.mxu0 %v1691
    %2139 = vmatpush1.msra.mxu0 %v1690
    %2140 = vmatprep.subr.mxu0 %v1695
    %2141 = vmatpush1.msra.mxu0 %v1694
    %2142 = vmatprep.subr.mxu0 %v1699
    %2143 = vmatpush1.msra.mxu0 %v1698
    %2144 = vmatprep.subr.mxu0 %v1703
    %2145 = vmatpush1.msra.mxu0 %v1702
    %2146 = vmatprep.subr.mxu0 %v1707
    %2147 = vmatpush1.msra.mxu0 %v1706
    %2148 = vmatprep.subr.mxu0 %v1711
    %2149 = vmatpush1.msra.mxu0 %v1710
    %2150 = vmatprep.subr.mxu0 %v1715
    %2151 = vmatpush1.msra.mxu0 %v1714
    %2152 = vmatprep.subr.mxu0 %v1719
    %2153 = vmatpush1.msra.mxu0 %v1718
    %2154 = vmatprep.subr.mxu0 %v1723
    %2155 = vmatpush1.msra.mxu0 %v1722
    %2156 = vmatprep.subr.mxu0 %v1727
    %2157 = vmatpush1.msra.mxu0 %v1726
    %2158 = vmatprep.subr.mxu0 %v1731
    %2159 = vmatpush1.msra.mxu0 %v1730
    %2160 = vmatprep.subr.mxu0 %v1735
    %2161 = vmatpush1.msra.mxu0 %v1734
    %2162 = vmatprep.subr.mxu0 %v1739
    %2163 = vmatpush1.msra.mxu0 %v1738
    %2164 = vmatprep.subr.mxu0 %v1743
    %2165 = vmatpush1.msra.mxu0 %v1742
    %2166 = vmatprep.subr.mxu0 %v1747
    %2167 = vmatpush1.msra.mxu0 %v1746
    %2168 = vmatprep.subr.mxu0 %v1751
    %2169 = vmatpush1.msra.mxu0 %v1750
    %2170 = vmatprep.mubr.f32.mxu0 %v1621
    %2171 = vmatmul.mubr.f32.gmra.mrb[0].mxu0 %v1620
    %v2172 = vpop.f32.mrb[0].mxu0
    %v2173 = vadd.f32 %v2031, %v2172
    %v2174 = vpop.f32.mrb[0].mxu0
    %v2175 = vadd.f32 %v2033, %v2174
    %2176 = vdwg.mxu0
    %s2177 = scalar_lea.vmem [#allocation9], 2048
    %v2178 = vld [vmem:[%s2177] sm:$0xff]
    %v2179 = vld [vmem:[%s2177 + $0x8] sm:$0xff]
    %v2180 = vld [vmem:[%s2177 + $0x10] sm:$0xff]
    %v2181 = vld [vmem:[%s2177 + $0x18] sm:$0xff]
    %v2182 = vld [vmem:[%s2177 + $0x20] sm:$0xff]
    %v2183 = vld [vmem:[%s2177 + $0x28] sm:$0xff]
    %v2184 = vld [vmem:[%s2177 + $0x30] sm:$0xff]
    %v2185 = vld [vmem:[%s2177 + $0x38] sm:$0xff]
    %v2186 = vld [vmem:[%s2177 + $0x40] sm:$0xff]
    %v2187 = vld [vmem:[%s2177 + $0x48] sm:$0xff]
    %v2188 = vld [vmem:[%s2177 + $0x50] sm:$0xff]
    %v2189 = vld [vmem:[%s2177 + $0x58] sm:$0xff]
    %v2190 = vld [vmem:[%s2177 + $0x60] sm:$0xff]
    %v2191 = vld [vmem:[%s2177 + $0x68] sm:$0xff]
    %v2192 = vld [vmem:[%s2177 + $0x70] sm:$0xff]
    %v2193 = vld [vmem:[%s2177 + $0x78] sm:$0xff]
    %v2194 = vld [vmem:[%s2177 + $0x80] sm:$0xff]
    %v2195 = vld [vmem:[%s2177 + $0x88] sm:$0xff]
    %v2196 = vld [vmem:[%s2177 + $0x90] sm:$0xff]
    %v2197 = vld [vmem:[%s2177 + $0x98] sm:$0xff]
    %v2198 = vld [vmem:[%s2177 + $0xa0] sm:$0xff]
    %v2199 = vld [vmem:[%s2177 + $0xa8] sm:$0xff]
    %v2200 = vld [vmem:[%s2177 + $0xb0] sm:$0xff]
    %v2201 = vld [vmem:[%s2177 + $0xb8] sm:$0xff]
    %v2202 = vld [vmem:[%s2177 + $0xc0] sm:$0xff]
    %v2203 = vld [vmem:[%s2177 + $0xc8] sm:$0xff]
    %v2204 = vld [vmem:[%s2177 + $0xd0] sm:$0xff]
    %v2205 = vld [vmem:[%s2177 + $0xd8] sm:$0xff]
    %v2206 = vld [vmem:[%s2177 + $0xe0] sm:$0xff]
    %v2207 = vld [vmem:[%s2177 + $0xe8] sm:$0xff]
    %v2208 = vld [vmem:[%s2177 + $0xf0] sm:$0xff]
    %v2209 = vld [vmem:[%s2177 + $0xf8] sm:$0xff]
    %v2210 = vld [vmem:[%s2177 + $0x100] sm:$0xff]
    %v2211 = vld [vmem:[%s2177 + $0x108] sm:$0xff]
    %v2212 = vld [vmem:[%s2177 + $0x110] sm:$0xff]
    %v2213 = vld [vmem:[%s2177 + $0x118] sm:$0xff]
    %v2214 = vld [vmem:[%s2177 + $0x120] sm:$0xff]
    %v2215 = vld [vmem:[%s2177 + $0x128] sm:$0xff]
    %v2216 = vld [vmem:[%s2177 + $0x130] sm:$0xff]
    %v2217 = vld [vmem:[%s2177 + $0x138] sm:$0xff]
    %v2218 = vld [vmem:[%s2177 + $0x140] sm:$0xff]
    %v2219 = vld [vmem:[%s2177 + $0x148] sm:$0xff]
    %v2220 = vld [vmem:[%s2177 + $0x150] sm:$0xff]
    %v2221 = vld [vmem:[%s2177 + $0x158] sm:$0xff]
    %v2222 = vld [vmem:[%s2177 + $0x160] sm:$0xff]
    %v2223 = vld [vmem:[%s2177 + $0x168] sm:$0xff]
    %v2224 = vld [vmem:[%s2177 + $0x170] sm:$0xff]
    %v2225 = vld [vmem:[%s2177 + $0x178] sm:$0xff]
    %v2226 = vld [vmem:[%s2177 + $0x180] sm:$0xff]
    %v2227 = vld [vmem:[%s2177 + $0x188] sm:$0xff]
    %v2228 = vld [vmem:[%s2177 + $0x190] sm:$0xff]
    %v2229 = vld [vmem:[%s2177 + $0x198] sm:$0xff]
    %v2230 = vld [vmem:[%s2177 + $0x1a0] sm:$0xff]
    %v2231 = vld [vmem:[%s2177 + $0x1a8] sm:$0xff]
    %v2232 = vld [vmem:[%s2177 + $0x1b0] sm:$0xff]
    %v2233 = vld [vmem:[%s2177 + $0x1b8] sm:$0xff]
    %v2234 = vld [vmem:[%s2177 + $0x1c0] sm:$0xff]
    %v2235 = vld [vmem:[%s2177 + $0x1c8] sm:$0xff]
    %v2236 = vld [vmem:[%s2177 + $0x1d0] sm:$0xff]
    %v2237 = vld [vmem:[%s2177 + $0x1d8] sm:$0xff]
    %v2238 = vld [vmem:[%s2177 + $0x1e0] sm:$0xff]
    %v2239 = vld [vmem:[%s2177 + $0x1e8] sm:$0xff]
    %v2240 = vld [vmem:[%s2177 + $0x1f0] sm:$0xff]
    %v2241 = vld [vmem:[%s2177 + $0x1f8] sm:$0xff]
    %v2242 = vld [vmem:[%s2177 + $0x200] sm:$0xff]
    %v2243 = vld [vmem:[%s2177 + $0x208] sm:$0xff]
    %v2244 = vld [vmem:[%s2177 + $0x210] sm:$0xff]
    %v2245 = vld [vmem:[%s2177 + $0x218] sm:$0xff]
    %v2246 = vld [vmem:[%s2177 + $0x220] sm:$0xff]
    %v2247 = vld [vmem:[%s2177 + $0x228] sm:$0xff]
    %v2248 = vld [vmem:[%s2177 + $0x230] sm:$0xff]
    %v2249 = vld [vmem:[%s2177 + $0x238] sm:$0xff]
    %v2250 = vld [vmem:[%s2177 + $0x240] sm:$0xff]
    %v2251 = vld [vmem:[%s2177 + $0x248] sm:$0xff]
    %v2252 = vld [vmem:[%s2177 + $0x250] sm:$0xff]
    %v2253 = vld [vmem:[%s2177 + $0x258] sm:$0xff]
    %v2254 = vld [vmem:[%s2177 + $0x260] sm:$0xff]
    %v2255 = vld [vmem:[%s2177 + $0x268] sm:$0xff]
    %v2256 = vld [vmem:[%s2177 + $0x270] sm:$0xff]
    %v2257 = vld [vmem:[%s2177 + $0x278] sm:$0xff]
    %v2258 = vld [vmem:[%s2177 + $0x280] sm:$0xff]
    %v2259 = vld [vmem:[%s2177 + $0x288] sm:$0xff]
    %v2260 = vld [vmem:[%s2177 + $0x290] sm:$0xff]
    %v2261 = vld [vmem:[%s2177 + $0x298] sm:$0xff]
    %v2262 = vld [vmem:[%s2177 + $0x2a0] sm:$0xff]
    %v2263 = vld [vmem:[%s2177 + $0x2a8] sm:$0xff]
    %v2264 = vld [vmem:[%s2177 + $0x2b0] sm:$0xff]
    %v2265 = vld [vmem:[%s2177 + $0x2b8] sm:$0xff]
    %v2266 = vld [vmem:[%s2177 + $0x2c0] sm:$0xff]
    %v2267 = vld [vmem:[%s2177 + $0x2c8] sm:$0xff]
    %v2268 = vld [vmem:[%s2177 + $0x2d0] sm:$0xff]
    %v2269 = vld [vmem:[%s2177 + $0x2d8] sm:$0xff]
    %v2270 = vld [vmem:[%s2177 + $0x2e0] sm:$0xff]
    %v2271 = vld [vmem:[%s2177 + $0x2e8] sm:$0xff]
    %v2272 = vld [vmem:[%s2177 + $0x2f0] sm:$0xff]
    %v2273 = vld [vmem:[%s2177 + $0x2f8] sm:$0xff]
    %v2274 = vld [vmem:[%s2177 + $0x300] sm:$0xff]
    %v2275 = vld [vmem:[%s2177 + $0x308] sm:$0xff]
    %v2276 = vld [vmem:[%s2177 + $0x310] sm:$0xff]
    %v2277 = vld [vmem:[%s2177 + $0x318] sm:$0xff]
    %v2278 = vld [vmem:[%s2177 + $0x320] sm:$0xff]
    %v2279 = vld [vmem:[%s2177 + $0x328] sm:$0xff]
    %v2280 = vld [vmem:[%s2177 + $0x330] sm:$0xff]
    %v2281 = vld [vmem:[%s2177 + $0x338] sm:$0xff]
    %v2282 = vld [vmem:[%s2177 + $0x340] sm:$0xff]
    %v2283 = vld [vmem:[%s2177 + $0x348] sm:$0xff]
    %v2284 = vld [vmem:[%s2177 + $0x350] sm:$0xff]
    %v2285 = vld [vmem:[%s2177 + $0x358] sm:$0xff]
    %v2286 = vld [vmem:[%s2177 + $0x360] sm:$0xff]
    %v2287 = vld [vmem:[%s2177 + $0x368] sm:$0xff]
    %v2288 = vld [vmem:[%s2177 + $0x370] sm:$0xff]
    %v2289 = vld [vmem:[%s2177 + $0x378] sm:$0xff]
    %v2290 = vld [vmem:[%s2177 + $0x380] sm:$0xff]
    %v2291 = vld [vmem:[%s2177 + $0x388] sm:$0xff]
    %v2292 = vld [vmem:[%s2177 + $0x390] sm:$0xff]
    %v2293 = vld [vmem:[%s2177 + $0x398] sm:$0xff]
    %v2294 = vld [vmem:[%s2177 + $0x3a0] sm:$0xff]
    %v2295 = vld [vmem:[%s2177 + $0x3a8] sm:$0xff]
    %v2296 = vld [vmem:[%s2177 + $0x3b0] sm:$0xff]
    %v2297 = vld [vmem:[%s2177 + $0x3b8] sm:$0xff]
    %v2298 = vld [vmem:[%s2177 + $0x3c0] sm:$0xff]
    %v2299 = vld [vmem:[%s2177 + $0x3c8] sm:$0xff]
    %v2300 = vld [vmem:[%s2177 + $0x3d0] sm:$0xff]
    %v2301 = vld [vmem:[%s2177 + $0x3d8] sm:$0xff]
    %v2302 = vld [vmem:[%s2177 + $0x3e0] sm:$0xff]
    %v2303 = vld [vmem:[%s2177 + $0x3e8] sm:$0xff]
    %v2304 = vld [vmem:[%s2177 + $0x3f0] sm:$0xff]
    %v2305 = vld [vmem:[%s2177 + $0x3f8] sm:$0xff]
    %v2306 = vrot.slane %v1620, 2
    %v2307 = vrot.slane %v1622, 2
    %v2308 = vsel %vm615, %v2306, %v2307
    %v2309 = vrot.slane %v1621, 2
    %v2310 = vrot.slane %v1623, 2
    %v2311 = vsel %vm615, %v2309, %v2310
    %2314 = vmatprep.subr.mxu0 %v2179
    %2315 = vmatpush1.msra.mxu0 %v2178
    %2316 = vmatprep.subr.mxu0 %v2183
    %2317 = vmatpush1.msra.mxu0 %v2182
    %2318 = vmatprep.subr.mxu0 %v2187
    %2319 = vmatpush1.msra.mxu0 %v2186
    %2320 = vmatprep.subr.mxu0 %v2191
    %2321 = vmatpush1.msra.mxu0 %v2190
    %2322 = vmatprep.subr.mxu0 %v2195
    %2323 = vmatpush1.msra.mxu0 %v2194
    %2324 = vmatprep.subr.mxu0 %v2199
    %2325 = vmatpush1.msra.mxu0 %v2198
    %2326 = vmatprep.subr.mxu0 %v2203
    %2327 = vmatpush1.msra.mxu0 %v2202
    %2328 = vmatprep.subr.mxu0 %v2207
    %2329 = vmatpush1.msra.mxu0 %v2206
    %2330 = vmatprep.subr.mxu0 %v2211
    %2331 = vmatpush1.msra.mxu0 %v2210
    %2332 = vmatprep.subr.mxu0 %v2215
    %2333 = vmatpush1.msra.mxu0 %v2214
    %2334 = vmatprep.subr.mxu0 %v2219
    %2335 = vmatpush1.msra.mxu0 %v2218
    %2336 = vmatprep.subr.mxu0 %v2223
    %2337 = vmatpush1.msra.mxu0 %v2222
    %2338 = vmatprep.subr.mxu0 %v2227
    %2339 = vmatpush1.msra.mxu0 %v2226
    %2340 = vmatprep.subr.mxu0 %v2231
    %2341 = vmatpush1.msra.mxu0 %v2230
    %2342 = vmatprep.subr.mxu0 %v2235
    %2343 = vmatpush1.msra.mxu0 %v2234
    %2344 = vmatprep.subr.mxu0 %v2239
    %2345 = vmatpush1.msra.mxu0 %v2238
    %2346 = vmatprep.subr.mxu0 %v2243
    %2347 = vmatpush1.msra.mxu0 %v2242
    %2348 = vmatprep.subr.mxu0 %v2247
    %2349 = vmatpush1.msra.mxu0 %v2246
    %2350 = vmatprep.subr.mxu0 %v2251
    %2351 = vmatpush1.msra.mxu0 %v2250
    %2352 = vmatprep.subr.mxu0 %v2255
    %2353 = vmatpush1.msra.mxu0 %v2254
    %2354 = vmatprep.subr.mxu0 %v2259
    %2355 = vmatpush1.msra.mxu0 %v2258
    %2356 = vmatprep.subr.mxu0 %v2263
    %2357 = vmatpush1.msra.mxu0 %v2262
    %2358 = vmatprep.subr.mxu0 %v2267
    %2359 = vmatpush1.msra.mxu0 %v2266
    %2360 = vmatprep.subr.mxu0 %v2271
    %2361 = vmatpush1.msra.mxu0 %v2270
    %2362 = vmatprep.subr.mxu0 %v2275
    %2363 = vmatpush1.msra.mxu0 %v2274
    %2364 = vmatprep.subr.mxu0 %v2279
    %2365 = vmatpush1.msra.mxu0 %v2278
    %2366 = vmatprep.subr.mxu0 %v2283
    %2367 = vmatpush1.msra.mxu0 %v2282
    %2368 = vmatprep.subr.mxu0 %v2287
    %2369 = vmatpush1.msra.mxu0 %v2286
    %2370 = vmatprep.subr.mxu0 %v2291
    %2371 = vmatpush1.msra.mxu0 %v2290
    %2372 = vmatprep.subr.mxu0 %v2295
    %2373 = vmatpush1.msra.mxu0 %v2294
    %2374 = vmatprep.subr.mxu0 %v2299
    %2375 = vmatpush1.msra.mxu0 %v2298
    %2376 = vmatprep.subr.mxu0 %v2303
    %2377 = vmatpush1.msra.mxu0 %v2302
    %2378 = vmatprep.mubr.f32.mxu0 %v2311
    %2379 = vmatmul.mubr.f32.gmra.mrb[0].mxu0 %v2308
    %v2380 = vpop.f32.mrb[0].mxu0
    %v2381 = vadd.f32 0.0, %v2380
    %v2382 = vpop.f32.mrb[0].mxu0
    %v2383 = vadd.f32 0.0, %v2382
    %2384 = vdwg.mxu0
    %2385 = vmatprep.subr.mxu0 %v2181
    %2386 = vmatpush1.msra.mxu0 %v2180
    %2387 = vmatprep.subr.mxu0 %v2185
    %2388 = vmatpush1.msra.mxu0 %v2184
    %2389 = vmatprep.subr.mxu0 %v2189
    %2390 = vmatpush1.msra.mxu0 %v2188
    %2391 = vmatprep.subr.mxu0 %v2193
    %2392 = vmatpush1.msra.mxu0 %v2192
    %2393 = vmatprep.subr.mxu0 %v2197
    %2394 = vmatpush1.msra.mxu0 %v2196
    %2395 = vmatprep.subr.mxu0 %v2201
    %2396 = vmatpush1.msra.mxu0 %v2200
    %2397 = vmatprep.subr.mxu0 %v2205
    %2398 = vmatpush1.msra.mxu0 %v2204
    %2399 = vmatprep.subr.mxu0 %v2209
    %2400 = vmatpush1.msra.mxu0 %v2208
    %2401 = vmatprep.subr.mxu0 %v2213
    %2402 = vmatpush1.msra.mxu0 %v2212
    %2403 = vmatprep.subr.mxu0 %v2217
    %2404 = vmatpush1.msra.mxu0 %v2216
    %2405 = vmatprep.subr.mxu0 %v2221
    %2406 = vmatpush1.msra.mxu0 %v2220
    %2407 = vmatprep.subr.mxu0 %v2225
    %2408 = vmatpush1.msra.mxu0 %v2224
    %2409 = vmatprep.subr.mxu0 %v2229
    %2410 = vmatpush1.msra.mxu0 %v2228
    %2411 = vmatprep.subr.mxu0 %v2233
    %2412 = vmatpush1.msra.mxu0 %v2232
    %2413 = vmatprep.subr.mxu0 %v2237
    %2414 = vmatpush1.msra.mxu0 %v2236
    %2415 = vmatprep.subr.mxu0 %v2241
    %2416 = vmatpush1.msra.mxu0 %v2240
    %2417 = vmatprep.subr.mxu0 %v2245
    %2418 = vmatpush1.msra.mxu0 %v2244
    %2419 = vmatprep.subr.mxu0 %v2249
    %2420 = vmatpush1.msra.mxu0 %v2248
    %2421 = vmatprep.subr.mxu0 %v2253
    %2422 = vmatpush1.msra.mxu0 %v2252
    %2423 = vmatprep.subr.mxu0 %v2257
    %2424 = vmatpush1.msra.mxu0 %v2256
    %2425 = vmatprep.subr.mxu0 %v2261
    %2426 = vmatpush1.msra.mxu0 %v2260
    %2427 = vmatprep.subr.mxu0 %v2265
    %2428 = vmatpush1.msra.mxu0 %v2264
    %2429 = vmatprep.subr.mxu0 %v2269
    %2430 = vmatpush1.msra.mxu0 %v2268
    %2431 = vmatprep.subr.mxu0 %v2273
    %2432 = vmatpush1.msra.mxu0 %v2272
    %2433 = vmatprep.subr.mxu0 %v2277
    %2434 = vmatpush1.msra.mxu0 %v2276
    %2435 = vmatprep.subr.mxu0 %v2281
    %2436 = vmatpush1.msra.mxu0 %v2280
    %2437 = vmatprep.subr.mxu0 %v2285
    %2438 = vmatpush1.msra.mxu0 %v2284
    %2439 = vmatprep.subr.mxu0 %v2289
    %2440 = vmatpush1.msra.mxu0 %v2288
    %2441 = vmatprep.subr.mxu0 %v2293
    %2442 = vmatpush1.msra.mxu0 %v2292
    %2443 = vmatprep.subr.mxu0 %v2297
    %2444 = vmatpush1.msra.mxu0 %v2296
    %2445 = vmatprep.subr.mxu0 %v2301
    %2446 = vmatpush1.msra.mxu0 %v2300
    %2447 = vmatprep.subr.mxu0 %v2305
    %2448 = vmatpush1.msra.mxu0 %v2304
    %2449 = vmatprep.mubr.f32.mxu0 %v2311
    %2450 = vmatmul.mubr.f32.gmra.mrb[0].mxu0 %v2308
    %v2451 = vpop.f32.mrb[0].mxu0
    %v2452 = vadd.f32 0.0, %v2451
    %v2453 = vpop.f32.mrb[0].mxu0
    %v2454 = vadd.f32 0.0, %v2453
    %2455 = vdwg.mxu0
    %v2456 = vadd.f32 %v2102, %v2381
    %v2457 = vadd.f32 %v2104, %v2383
    %v2458 = vadd.f32 %v2173, %v2452
    %v2459 = vadd.f32 %v2175, %v2454
    %s2460 = scalar_lea.vmem [#allocation9], 3072
    %v2461 = vld [vmem:[%s2460] sm:$0xff]
    %v2462 = vld [vmem:[%s2460 + $0x8] sm:$0xff]
    %v2463 = vld [vmem:[%s2460 + $0x10] sm:$0xff]
    %v2464 = vld [vmem:[%s2460 + $0x18] sm:$0xff]
    %v2465 = vld [vmem:[%s2460 + $0x20] sm:$0xff]
    %v2466 = vld [vmem:[%s2460 + $0x28] sm:$0xff]
    %v2467 = vld [vmem:[%s2460 + $0x30] sm:$0xff]
    %v2468 = vld [vmem:[%s2460 + $0x38] sm:$0xff]
    %v2469 = vld [vmem:[%s2460 + $0x40] sm:$0xff]
    %v2470 = vld [vmem:[%s2460 + $0x48] sm:$0xff]
    %v2471 = vld [vmem:[%s2460 + $0x50] sm:$0xff]
    %v2472 = vld [vmem:[%s2460 + $0x58] sm:$0xff]
    %v2473 = vld [vmem:[%s2460 + $0x60] sm:$0xff]
    %v2474 = vld [vmem:[%s2460 + $0x68] sm:$0xff]
    %v2475 = vld [vmem:[%s2460 + $0x70] sm:$0xff]
    %v2476 = vld [vmem:[%s2460 + $0x78] sm:$0xff]
    %v2477 = vld [vmem:[%s2460 + $0x80] sm:$0xff]
    %v2478 = vld [vmem:[%s2460 + $0x88] sm:$0xff]
    %v2479 = vld [vmem:[%s2460 + $0x90] sm:$0xff]
    %v2480 = vld [vmem:[%s2460 + $0x98] sm:$0xff]
    %v2481 = vld [vmem:[%s2460 + $0xa0] sm:$0xff]
    %v2482 = vld [vmem:[%s2460 + $0xa8] sm:$0xff]
    %v2483 = vld [vmem:[%s2460 + $0xb0] sm:$0xff]
    %v2484 = vld [vmem:[%s2460 + $0xb8] sm:$0xff]
    %v2485 = vld [vmem:[%s2460 + $0xc0] sm:$0xff]
    %v2486 = vld [vmem:[%s2460 + $0xc8] sm:$0xff]
    %v2487 = vld [vmem:[%s2460 + $0xd0] sm:$0xff]
    %v2488 = vld [vmem:[%s2460 + $0xd8] sm:$0xff]
    %v2489 = vld [vmem:[%s2460 + $0xe0] sm:$0xff]
    %v2490 = vld [vmem:[%s2460 + $0xe8] sm:$0xff]
    %v2491 = vld [vmem:[%s2460 + $0xf0] sm:$0xff]
    %v2492 = vld [vmem:[%s2460 + $0xf8] sm:$0xff]
    %v2493 = vld [vmem:[%s2460 + $0x100] sm:$0xff]
    %v2494 = vld [vmem:[%s2460 + $0x108] sm:$0xff]
    %v2495 = vld [vmem:[%s2460 + $0x110] sm:$0xff]
    %v2496 = vld [vmem:[%s2460 + $0x118] sm:$0xff]
    %v2497 = vld [vmem:[%s2460 + $0x120] sm:$0xff]
    %v2498 = vld [vmem:[%s2460 + $0x128] sm:$0xff]
    %v2499 = vld [vmem:[%s2460 + $0x130] sm:$0xff]
    %v2500 = vld [vmem:[%s2460 + $0x138] sm:$0xff]
    %v2501 = vld [vmem:[%s2460 + $0x140] sm:$0xff]
    %v2502 = vld [vmem:[%s2460 + $0x148] sm:$0xff]
    %v2503 = vld [vmem:[%s2460 + $0x150] sm:$0xff]
    %v2504 = vld [vmem:[%s2460 + $0x158] sm:$0xff]
    %v2505 = vld [vmem:[%s2460 + $0x160] sm:$0xff]
    %v2506 = vld [vmem:[%s2460 + $0x168] sm:$0xff]
    %v2507 = vld [vmem:[%s2460 + $0x170] sm:$0xff]
    %v2508 = vld [vmem:[%s2460 + $0x178] sm:$0xff]
    %v2509 = vld [vmem:[%s2460 + $0x180] sm:$0xff]
    %v2510 = vld [vmem:[%s2460 + $0x188] sm:$0xff]
    %v2511 = vld [vmem:[%s2460 + $0x190] sm:$0xff]
    %v2512 = vld [vmem:[%s2460 + $0x198] sm:$0xff]
    %v2513 = vld [vmem:[%s2460 + $0x1a0] sm:$0xff]
    %v2514 = vld [vmem:[%s2460 + $0x1a8] sm:$0xff]
    %v2515 = vld [vmem:[%s2460 + $0x1b0] sm:$0xff]
    %v2516 = vld [vmem:[%s2460 + $0x1b8] sm:$0xff]
    %v2517 = vld [vmem:[%s2460 + $0x1c0] sm:$0xff]
    %v2518 = vld [vmem:[%s2460 + $0x1c8] sm:$0xff]
    %v2519 = vld [vmem:[%s2460 + $0x1d0] sm:$0xff]
    %v2520 = vld [vmem:[%s2460 + $0x1d8] sm:$0xff]
    %v2521 = vld [vmem:[%s2460 + $0x1e0] sm:$0xff]
    %v2522 = vld [vmem:[%s2460 + $0x1e8] sm:$0xff]
    %v2523 = vld [vmem:[%s2460 + $0x1f0] sm:$0xff]
    %v2524 = vld [vmem:[%s2460 + $0x1f8] sm:$0xff]
    %v2525 = vld [vmem:[%s2460 + $0x200] sm:$0xff]
    %v2526 = vld [vmem:[%s2460 + $0x208] sm:$0xff]
    %v2527 = vld [vmem:[%s2460 + $0x210] sm:$0xff]
    %v2528 = vld [vmem:[%s2460 + $0x218] sm:$0xff]
    %v2529 = vld [vmem:[%s2460 + $0x220] sm:$0xff]
    %v2530 = vld [vmem:[%s2460 + $0x228] sm:$0xff]
    %v2531 = vld [vmem:[%s2460 + $0x230] sm:$0xff]
    %v2532 = vld [vmem:[%s2460 + $0x238] sm:$0xff]
    %v2533 = vld [vmem:[%s2460 + $0x240] sm:$0xff]
    %v2534 = vld [vmem:[%s2460 + $0x248] sm:$0xff]
    %v2535 = vld [vmem:[%s2460 + $0x250] sm:$0xff]
    %v2536 = vld [vmem:[%s2460 + $0x258] sm:$0xff]
    %v2537 = vld [vmem:[%s2460 + $0x260] sm:$0xff]
    %v2538 = vld [vmem:[%s2460 + $0x268] sm:$0xff]
    %v2539 = vld [vmem:[%s2460 + $0x270] sm:$0xff]
    %v2540 = vld [vmem:[%s2460 + $0x278] sm:$0xff]
    %v2541 = vld [vmem:[%s2460 + $0x280] sm:$0xff]
    %v2542 = vld [vmem:[%s2460 + $0x288] sm:$0xff]
    %v2543 = vld [vmem:[%s2460 + $0x290] sm:$0xff]
    %v2544 = vld [vmem:[%s2460 + $0x298] sm:$0xff]
    %v2545 = vld [vmem:[%s2460 + $0x2a0] sm:$0xff]
    %v2546 = vld [vmem:[%s2460 + $0x2a8] sm:$0xff]
    %v2547 = vld [vmem:[%s2460 + $0x2b0] sm:$0xff]
    %v2548 = vld [vmem:[%s2460 + $0x2b8] sm:$0xff]
    %v2549 = vld [vmem:[%s2460 + $0x2c0] sm:$0xff]
    %v2550 = vld [vmem:[%s2460 + $0x2c8] sm:$0xff]
    %v2551 = vld [vmem:[%s2460 + $0x2d0] sm:$0xff]
    %v2552 = vld [vmem:[%s2460 + $0x2d8] sm:$0xff]
    %v2553 = vld [vmem:[%s2460 + $0x2e0] sm:$0xff]
    %v2554 = vld [vmem:[%s2460 + $0x2e8] sm:$0xff]
    %v2555 = vld [vmem:[%s2460 + $0x2f0] sm:$0xff]
    %v2556 = vld [vmem:[%s2460 + $0x2f8] sm:$0xff]
    %v2557 = vld [vmem:[%s2460 + $0x300] sm:$0xff]
    %v2558 = vld [vmem:[%s2460 + $0x308] sm:$0xff]
    %v2559 = vld [vmem:[%s2460 + $0x310] sm:$0xff]
    %v2560 = vld [vmem:[%s2460 + $0x318] sm:$0xff]
    %v2561 = vld [vmem:[%s2460 + $0x320] sm:$0xff]
    %v2562 = vld [vmem:[%s2460 + $0x328] sm:$0xff]
    %v2563 = vld [vmem:[%s2460 + $0x330] sm:$0xff]
    %v2564 = vld [vmem:[%s2460 + $0x338] sm:$0xff]
    %v2565 = vld [vmem:[%s2460 + $0x340] sm:$0xff]
    %v2566 = vld [vmem:[%s2460 + $0x348] sm:$0xff]
    %v2567 = vld [vmem:[%s2460 + $0x350] sm:$0xff]
    %v2568 = vld [vmem:[%s2460 + $0x358] sm:$0xff]
    %v2569 = vld [vmem:[%s2460 + $0x360] sm:$0xff]
    %v2570 = vld [vmem:[%s2460 + $0x368] sm:$0xff]
    %v2571 = vld [vmem:[%s2460 + $0x370] sm:$0xff]
    %v2572 = vld [vmem:[%s2460 + $0x378] sm:$0xff]
    %v2573 = vld [vmem:[%s2460 + $0x380] sm:$0xff]
    %v2574 = vld [vmem:[%s2460 + $0x388] sm:$0xff]
    %v2575 = vld [vmem:[%s2460 + $0x390] sm:$0xff]
    %v2576 = vld [vmem:[%s2460 + $0x398] sm:$0xff]
    %v2577 = vld [vmem:[%s2460 + $0x3a0] sm:$0xff]
    %v2578 = vld [vmem:[%s2460 + $0x3a8] sm:$0xff]
    %v2579 = vld [vmem:[%s2460 + $0x3b0] sm:$0xff]
    %v2580 = vld [vmem:[%s2460 + $0x3b8] sm:$0xff]
    %v2581 = vld [vmem:[%s2460 + $0x3c0] sm:$0xff]
    %v2582 = vld [vmem:[%s2460 + $0x3c8] sm:$0xff]
    %v2583 = vld [vmem:[%s2460 + $0x3d0] sm:$0xff]
    %v2584 = vld [vmem:[%s2460 + $0x3d8] sm:$0xff]
    %v2585 = vld [vmem:[%s2460 + $0x3e0] sm:$0xff]
    %v2586 = vld [vmem:[%s2460 + $0x3e8] sm:$0xff]
    %v2587 = vld [vmem:[%s2460 + $0x3f0] sm:$0xff]
    %v2588 = vld [vmem:[%s2460 + $0x3f8] sm:$0xff]
    %v2589 = vrot.slane %v1620, 3
    %v2590 = vrot.slane %v1622, 3
    %v2591 = vsel %vm836, %v2589, %v2590
    %v2592 = vrot.slane %v1621, 3
    %v2593 = vrot.slane %v1623, 3
    %v2594 = vsel %vm836, %v2592, %v2593
    %2597 = vmatprep.subr.mxu0 %v2462
    %2598 = vmatpush1.msra.mxu0 %v2461
    %2599 = vmatprep.subr.mxu0 %v2466
    %2600 = vmatpush1.msra.mxu0 %v2465
    %2601 = vmatprep.subr.mxu0 %v2470
    %2602 = vmatpush1.msra.mxu0 %v2469
    %2603 = vmatprep.subr.mxu0 %v2474
    %2604 = vmatpush1.msra.mxu0 %v2473
    %2605 = vmatprep.subr.mxu0 %v2478
    %2606 = vmatpush1.msra.mxu0 %v2477
    %2607 = vmatprep.subr.mxu0 %v2482
    %2608 = vmatpush1.msra.mxu0 %v2481
    %2609 = vmatprep.subr.mxu0 %v2486
    %2610 = vmatpush1.msra.mxu0 %v2485
    %2611 = vmatprep.subr.mxu0 %v2490
    %2612 = vmatpush1.msra.mxu0 %v2489
    %2613 = vmatprep.subr.mxu0 %v2494
    %2614 = vmatpush1.msra.mxu0 %v2493
    %2615 = vmatprep.subr.mxu0 %v2498
    %2616 = vmatpush1.msra.mxu0 %v2497
    %2617 = vmatprep.subr.mxu0 %v2502
    %2618 = vmatpush1.msra.mxu0 %v2501
    %2619 = vmatprep.subr.mxu0 %v2506
    %2620 = vmatpush1.msra.mxu0 %v2505
    %2621 = vmatprep.subr.mxu0 %v2510
    %2622 = vmatpush1.msra.mxu0 %v2509
    %2623 = vmatprep.subr.mxu0 %v2514
    %2624 = vmatpush1.msra.mxu0 %v2513
    %2625 = vmatprep.subr.mxu0 %v2518
    %2626 = vmatpush1.msra.mxu0 %v2517
    %2627 = vmatprep.subr.mxu0 %v2522
    %2628 = vmatpush1.msra.mxu0 %v2521
    %2629 = vmatprep.subr.mxu0 %v2526
    %2630 = vmatpush1.msra.mxu0 %v2525
    %2631 = vmatprep.subr.mxu0 %v2530
    %2632 = vmatpush1.msra.mxu0 %v2529
    %2633 = vmatprep.subr.mxu0 %v2534
    %2634 = vmatpush1.msra.mxu0 %v2533
    %2635 = vmatprep.subr.mxu0 %v2538
    %2636 = vmatpush1.msra.mxu0 %v2537
    %2637 = vmatprep.subr.mxu0 %v2542
    %2638 = vmatpush1.msra.mxu0 %v2541
    %2639 = vmatprep.subr.mxu0 %v2546
    %2640 = vmatpush1.msra.mxu0 %v2545
    %2641 = vmatprep.subr.mxu0 %v2550
    %2642 = vmatpush1.msra.mxu0 %v2549
    %2643 = vmatprep.subr.mxu0 %v2554
    %2644 = vmatpush1.msra.mxu0 %v2553
    %2645 = vmatprep.subr.mxu0 %v2558
    %2646 = vmatpush1.msra.mxu0 %v2557
    %2647 = vmatprep.subr.mxu0 %v2562
    %2648 = vmatpush1.msra.mxu0 %v2561
    %2649 = vmatprep.subr.mxu0 %v2566
    %2650 = vmatpush1.msra.mxu0 %v2565
    %2651 = vmatprep.subr.mxu0 %v2570
    %2652 = vmatpush1.msra.mxu0 %v2569
    %2653 = vmatprep.subr.mxu0 %v2574
    %2654 = vmatpush1.msra.mxu0 %v2573
    %2655 = vmatprep.subr.mxu0 %v2578
    %2656 = vmatpush1.msra.mxu0 %v2577
    %2657 = vmatprep.subr.mxu0 %v2582
    %2658 = vmatpush1.msra.mxu0 %v2581
    %2659 = vmatprep.subr.mxu0 %v2586
    %2660 = vmatpush1.msra.mxu0 %v2585
    %2661 = vmatprep.mubr.f32.mxu0 %v2594
    %2662 = vmatmul.mubr.f32.gmra.mrb[0].mxu0 %v2591
    %v2663 = vpop.f32.mrb[0].mxu0
    %v2664 = vadd.f32 0.0, %v2663
    %v2665 = vpop.f32.mrb[0].mxu0
    %v2666 = vadd.f32 0.0, %v2665
    %2667 = vdwg.mxu0
    %2668 = vmatprep.subr.mxu0 %v2464
    %2669 = vmatpush1.msra.mxu0 %v2463
    %2670 = vmatprep.subr.mxu0 %v2468
    %2671 = vmatpush1.msra.mxu0 %v2467
    %2672 = vmatprep.subr.mxu0 %v2472
    %2673 = vmatpush1.msra.mxu0 %v2471
    %2674 = vmatprep.subr.mxu0 %v2476
    %2675 = vmatpush1.msra.mxu0 %v2475
    %2676 = vmatprep.subr.mxu0 %v2480
    %2677 = vmatpush1.msra.mxu0 %v2479
    %2678 = vmatprep.subr.mxu0 %v2484
    %2679 = vmatpush1.msra.mxu0 %v2483
    %2680 = vmatprep.subr.mxu0 %v2488
    %2681 = vmatpush1.msra.mxu0 %v2487
    %2682 = vmatprep.subr.mxu0 %v2492
    %2683 = vmatpush1.msra.mxu0 %v2491
    %2684 = vmatprep.subr.mxu0 %v2496
    %2685 = vmatpush1.msra.mxu0 %v2495
    %2686 = vmatprep.subr.mxu0 %v2500
    %2687 = vmatpush1.msra.mxu0 %v2499
    %2688 = vmatprep.subr.mxu0 %v2504
    %2689 = vmatpush1.msra.mxu0 %v2503
    %2690 = vmatprep.subr.mxu0 %v2508
    %2691 = vmatpush1.msra.mxu0 %v2507
    %2692 = vmatprep.subr.mxu0 %v2512
    %2693 = vmatpush1.msra.mxu0 %v2511
    %2694 = vmatprep.subr.mxu0 %v2516
    %2695 = vmatpush1.msra.mxu0 %v2515
    %2696 = vmatprep.subr.mxu0 %v2520
    %2697 = vmatpush1.msra.mxu0 %v2519
    %2698 = vmatprep.subr.mxu0 %v2524
    %2699 = vmatpush1.msra.mxu0 %v2523
    %2700 = vmatprep.subr.mxu0 %v2528
    %2701 = vmatpush1.msra.mxu0 %v2527
    %2702 = vmatprep.subr.mxu0 %v2532
    %2703 = vmatpush1.msra.mxu0 %v2531
    %2704 = vmatprep.subr.mxu0 %v2536
    %2705 = vmatpush1.msra.mxu0 %v2535
    %2706 = vmatprep.subr.mxu0 %v2540
    %2707 = vmatpush1.msra.mxu0 %v2539
    %2708 = vmatprep.subr.mxu0 %v2544
    %2709 = vmatpush1.msra.mxu0 %v2543
    %2710 = vmatprep.subr.mxu0 %v2548
    %2711 = vmatpush1.msra.mxu0 %v2547
    %2712 = vmatprep.subr.mxu0 %v2552
    %2713 = vmatpush1.msra.mxu0 %v2551
    %2714 = vmatprep.subr.mxu0 %v2556
    %2715 = vmatpush1.msra.mxu0 %v2555
    %2716 = vmatprep.subr.mxu0 %v2560
    %2717 = vmatpush1.msra.mxu0 %v2559
    %2718 = vmatprep.subr.mxu0 %v2564
    %2719 = vmatpush1.msra.mxu0 %v2563
    %2720 = vmatprep.subr.mxu0 %v2568
    %2721 = vmatpush1.msra.mxu0 %v2567
    %2722 = vmatprep.subr.mxu0 %v2572
    %2723 = vmatpush1.msra.mxu0 %v2571
    %2724 = vmatprep.subr.mxu0 %v2576
    %2725 = vmatpush1.msra.mxu0 %v2575
    %2726 = vmatprep.subr.mxu0 %v2580
    %2727 = vmatpush1.msra.mxu0 %v2579
    %2728 = vmatprep.subr.mxu0 %v2584
    %2729 = vmatpush1.msra.mxu0 %v2583
    %2730 = vmatprep.subr.mxu0 %v2588
    %2731 = vmatpush1.msra.mxu0 %v2587
    %2732 = vmatprep.mubr.f32.mxu0 %v2594
    %2733 = vmatmul.mubr.f32.gmra.mrb[0].mxu0 %v2591
    %v2734 = vpop.f32.mrb[0].mxu0
    %v2735 = vadd.f32 0.0, %v2734
    %v2736 = vpop.f32.mrb[0].mxu0
    %v2737 = vadd.f32 0.0, %v2736
    %2738 = vdwg.mxu0
    %v2739 = vadd.f32 %v2456, %v2664
    %v2740 = vadd.f32 %v2457, %v2666
    %v2741 = vadd.f32 %v2458, %v2735
    %v2742 = vadd.f32 %v2459, %v2737
    %s2743 = scalar_lea.vmem [#allocation9], 4096
    %v2744 = vld [vmem:[%s2743] sm:$0xff]
    %v2745 = vld [vmem:[%s2743 + $0x8] sm:$0xff]
    %v2746 = vld [vmem:[%s2743 + $0x10] sm:$0xff]
    %v2747 = vld [vmem:[%s2743 + $0x18] sm:$0xff]
    %v2748 = vld [vmem:[%s2743 + $0x20] sm:$0xff]
    %v2749 = vld [vmem:[%s2743 + $0x28] sm:$0xff]
    %v2750 = vld [vmem:[%s2743 + $0x30] sm:$0xff]
    %v2751 = vld [vmem:[%s2743 + $0x38] sm:$0xff]
    %v2752 = vld [vmem:[%s2743 + $0x40] sm:$0xff]
    %v2753 = vld [vmem:[%s2743 + $0x48] sm:$0xff]
    %v2754 = vld [vmem:[%s2743 + $0x50] sm:$0xff]
    %v2755 = vld [vmem:[%s2743 + $0x58] sm:$0xff]
    %v2756 = vld [vmem:[%s2743 + $0x60] sm:$0xff]
    %v2757 = vld [vmem:[%s2743 + $0x68] sm:$0xff]
    %v2758 = vld [vmem:[%s2743 + $0x70] sm:$0xff]
    %v2759 = vld [vmem:[%s2743 + $0x78] sm:$0xff]
    %v2760 = vld [vmem:[%s2743 + $0x80] sm:$0xff]
    %v2761 = vld [vmem:[%s2743 + $0x88] sm:$0xff]
    %v2762 = vld [vmem:[%s2743 + $0x90] sm:$0xff]
    %v2763 = vld [vmem:[%s2743 + $0x98] sm:$0xff]
    %v2764 = vld [vmem:[%s2743 + $0xa0] sm:$0xff]
    %v2765 = vld [vmem:[%s2743 + $0xa8] sm:$0xff]
    %v2766 = vld [vmem:[%s2743 + $0xb0] sm:$0xff]
    %v2767 = vld [vmem:[%s2743 + $0xb8] sm:$0xff]
    %v2768 = vld [vmem:[%s2743 + $0xc0] sm:$0xff]
    %v2769 = vld [vmem:[%s2743 + $0xc8] sm:$0xff]
    %v2770 = vld [vmem:[%s2743 + $0xd0] sm:$0xff]
    %v2771 = vld [vmem:[%s2743 + $0xd8] sm:$0xff]
    %v2772 = vld [vmem:[%s2743 + $0xe0] sm:$0xff]
    %v2773 = vld [vmem:[%s2743 + $0xe8] sm:$0xff]
    %v2774 = vld [vmem:[%s2743 + $0xf0] sm:$0xff]
    %v2775 = vld [vmem:[%s2743 + $0xf8] sm:$0xff]
    %v2776 = vld [vmem:[%s2743 + $0x100] sm:$0xff]
    %v2777 = vld [vmem:[%s2743 + $0x108] sm:$0xff]
    %v2778 = vld [vmem:[%s2743 + $0x110] sm:$0xff]
    %v2779 = vld [vmem:[%s2743 + $0x118] sm:$0xff]
    %v2780 = vld [vmem:[%s2743 + $0x120] sm:$0xff]
    %v2781 = vld [vmem:[%s2743 + $0x128] sm:$0xff]
    %v2782 = vld [vmem:[%s2743 + $0x130] sm:$0xff]
    %v2783 = vld [vmem:[%s2743 + $0x138] sm:$0xff]
    %v2784 = vld [vmem:[%s2743 + $0x140] sm:$0xff]
    %v2785 = vld [vmem:[%s2743 + $0x148] sm:$0xff]
    %v2786 = vld [vmem:[%s2743 + $0x150] sm:$0xff]
    %v2787 = vld [vmem:[%s2743 + $0x158] sm:$0xff]
    %v2788 = vld [vmem:[%s2743 + $0x160] sm:$0xff]
    %v2789 = vld [vmem:[%s2743 + $0x168] sm:$0xff]
    %v2790 = vld [vmem:[%s2743 + $0x170] sm:$0xff]
    %v2791 = vld [vmem:[%s2743 + $0x178] sm:$0xff]
    %v2792 = vld [vmem:[%s2743 + $0x180] sm:$0xff]
    %v2793 = vld [vmem:[%s2743 + $0x188] sm:$0xff]
    %v2794 = vld [vmem:[%s2743 + $0x190] sm:$0xff]
    %v2795 = vld [vmem:[%s2743 + $0x198] sm:$0xff]
    %v2796 = vld [vmem:[%s2743 + $0x1a0] sm:$0xff]
    %v2797 = vld [vmem:[%s2743 + $0x1a8] sm:$0xff]
    %v2798 = vld [vmem:[%s2743 + $0x1b0] sm:$0xff]
    %v2799 = vld [vmem:[%s2743 + $0x1b8] sm:$0xff]
    %v2800 = vld [vmem:[%s2743 + $0x1c0] sm:$0xff]
    %v2801 = vld [vmem:[%s2743 + $0x1c8] sm:$0xff]
    %v2802 = vld [vmem:[%s2743 + $0x1d0] sm:$0xff]
    %v2803 = vld [vmem:[%s2743 + $0x1d8] sm:$0xff]
    %v2804 = vld [vmem:[%s2743 + $0x1e0] sm:$0xff]
    %v2805 = vld [vmem:[%s2743 + $0x1e8] sm:$0xff]
    %v2806 = vld [vmem:[%s2743 + $0x1f0] sm:$0xff]
    %v2807 = vld [vmem:[%s2743 + $0x1f8] sm:$0xff]
    %v2808 = vld [vmem:[%s2743 + $0x200] sm:$0xff]
    %v2809 = vld [vmem:[%s2743 + $0x208] sm:$0xff]
    %v2810 = vld [vmem:[%s2743 + $0x210] sm:$0xff]
    %v2811 = vld [vmem:[%s2743 + $0x218] sm:$0xff]
    %v2812 = vld [vmem:[%s2743 + $0x220] sm:$0xff]
    %v2813 = vld [vmem:[%s2743 + $0x228] sm:$0xff]
    %v2814 = vld [vmem:[%s2743 + $0x230] sm:$0xff]
    %v2815 = vld [vmem:[%s2743 + $0x238] sm:$0xff]
    %v2816 = vld [vmem:[%s2743 + $0x240] sm:$0xff]
    %v2817 = vld [vmem:[%s2743 + $0x248] sm:$0xff]
    %v2818 = vld [vmem:[%s2743 + $0x250] sm:$0xff]
    %v2819 = vld [vmem:[%s2743 + $0x258] sm:$0xff]
    %v2820 = vld [vmem:[%s2743 + $0x260] sm:$0xff]
    %v2821 = vld [vmem:[%s2743 + $0x268] sm:$0xff]
    %v2822 = vld [vmem:[%s2743 + $0x270] sm:$0xff]
    %v2823 = vld [vmem:[%s2743 + $0x278] sm:$0xff]
    %v2824 = vld [vmem:[%s2743 + $0x280] sm:$0xff]
    %v2825 = vld [vmem:[%s2743 + $0x288] sm:$0xff]
    %v2826 = vld [vmem:[%s2743 + $0x290] sm:$0xff]
    %v2827 = vld [vmem:[%s2743 + $0x298] sm:$0xff]
    %v2828 = vld [vmem:[%s2743 + $0x2a0] sm:$0xff]
    %v2829 = vld [vmem:[%s2743 + $0x2a8] sm:$0xff]
    %v2830 = vld [vmem:[%s2743 + $0x2b0] sm:$0xff]
    %v2831 = vld [vmem:[%s2743 + $0x2b8] sm:$0xff]
    %v2832 = vld [vmem:[%s2743 + $0x2c0] sm:$0xff]
    %v2833 = vld [vmem:[%s2743 + $0x2c8] sm:$0xff]
    %v2834 = vld [vmem:[%s2743 + $0x2d0] sm:$0xff]
    %v2835 = vld [vmem:[%s2743 + $0x2d8] sm:$0xff]
    %v2836 = vld [vmem:[%s2743 + $0x2e0] sm:$0xff]
    %v2837 = vld [vmem:[%s2743 + $0x2e8] sm:$0xff]
    %v2838 = vld [vmem:[%s2743 + $0x2f0] sm:$0xff]
    %v2839 = vld [vmem:[%s2743 + $0x2f8] sm:$0xff]
    %v2840 = vld [vmem:[%s2743 + $0x300] sm:$0xff]
    %v2841 = vld [vmem:[%s2743 + $0x308] sm:$0xff]
    %v2842 = vld [vmem:[%s2743 + $0x310] sm:$0xff]
    %v2843 = vld [vmem:[%s2743 + $0x318] sm:$0xff]
    %v2844 = vld [vmem:[%s2743 + $0x320] sm:$0xff]
    %v2845 = vld [vmem:[%s2743 + $0x328] sm:$0xff]
    %v2846 = vld [vmem:[%s2743 + $0x330] sm:$0xff]
    %v2847 = vld [vmem:[%s2743 + $0x338] sm:$0xff]
    %v2848 = vld [vmem:[%s2743 + $0x340] sm:$0xff]
    %v2849 = vld [vmem:[%s2743 + $0x348] sm:$0xff]
    %v2850 = vld [vmem:[%s2743 + $0x350] sm:$0xff]
    %v2851 = vld [vmem:[%s2743 + $0x358] sm:$0xff]
    %v2852 = vld [vmem:[%s2743 + $0x360] sm:$0xff]
    %v2853 = vld [vmem:[%s2743 + $0x368] sm:$0xff]
    %v2854 = vld [vmem:[%s2743 + $0x370] sm:$0xff]
    %v2855 = vld [vmem:[%s2743 + $0x378] sm:$0xff]
    %v2856 = vld [vmem:[%s2743 + $0x380] sm:$0xff]
    %v2857 = vld [vmem:[%s2743 + $0x388] sm:$0xff]
    %v2858 = vld [vmem:[%s2743 + $0x390] sm:$0xff]
    %v2859 = vld [vmem:[%s2743 + $0x398] sm:$0xff]
    %v2860 = vld [vmem:[%s2743 + $0x3a0] sm:$0xff]
    %v2861 = vld [vmem:[%s2743 + $0x3a8] sm:$0xff]
    %v2862 = vld [vmem:[%s2743 + $0x3b0] sm:$0xff]
    %v2863 = vld [vmem:[%s2743 + $0x3b8] sm:$0xff]
    %v2864 = vld [vmem:[%s2743 + $0x3c0] sm:$0xff]
    %v2865 = vld [vmem:[%s2743 + $0x3c8] sm:$0xff]
    %v2866 = vld [vmem:[%s2743 + $0x3d0] sm:$0xff]
    %v2867 = vld [vmem:[%s2743 + $0x3d8] sm:$0xff]
    %v2868 = vld [vmem:[%s2743 + $0x3e0] sm:$0xff]
    %v2869 = vld [vmem:[%s2743 + $0x3e8] sm:$0xff]
    %v2870 = vld [vmem:[%s2743 + $0x3f0] sm:$0xff]
    %v2871 = vld [vmem:[%s2743 + $0x3f8] sm:$0xff]
    %v2872 = vrot.slane %v1620, 4
    %v2873 = vrot.slane %v1622, 4
    %v2874 = vsel %vm1057, %v2872, %v2873
    %v2875 = vrot.slane %v1621, 4
    %v2876 = vrot.slane %v1623, 4
    %v2877 = vsel %vm1057, %v2875, %v2876
    %2880 = vmatprep.subr.mxu0 %v2745
    %2881 = vmatpush1.msra.mxu0 %v2744
    %2882 = vmatprep.subr.mxu0 %v2749
    %2883 = vmatpush1.msra.mxu0 %v2748
    %2884 = vmatprep.subr.mxu0 %v2753
    %2885 = vmatpush1.msra.mxu0 %v2752
    %2886 = vmatprep.subr.mxu0 %v2757
    %2887 = vmatpush1.msra.mxu0 %v2756
    %2888 = vmatprep.subr.mxu0 %v2761
    %2889 = vmatpush1.msra.mxu0 %v2760
    %2890 = vmatprep.subr.mxu0 %v2765
    %2891 = vmatpush1.msra.mxu0 %v2764
    %2892 = vmatprep.subr.mxu0 %v2769
    %2893 = vmatpush1.msra.mxu0 %v2768
    %2894 = vmatprep.subr.mxu0 %v2773
    %2895 = vmatpush1.msra.mxu0 %v2772
    %2896 = vmatprep.subr.mxu0 %v2777
    %2897 = vmatpush1.msra.mxu0 %v2776
    %2898 = vmatprep.subr.mxu0 %v2781
    %2899 = vmatpush1.msra.mxu0 %v2780
    %2900 = vmatprep.subr.mxu0 %v2785
    %2901 = vmatpush1.msra.mxu0 %v2784
    %2902 = vmatprep.subr.mxu0 %v2789
    %2903 = vmatpush1.msra.mxu0 %v2788
    %2904 = vmatprep.subr.mxu0 %v2793
    %2905 = vmatpush1.msra.mxu0 %v2792
    %2906 = vmatprep.subr.mxu0 %v2797
    %2907 = vmatpush1.msra.mxu0 %v2796
    %2908 = vmatprep.subr.mxu0 %v2801
    %2909 = vmatpush1.msra.mxu0 %v2800
    %2910 = vmatprep.subr.mxu0 %v2805
    %2911 = vmatpush1.msra.mxu0 %v2804
    %2912 = vmatprep.subr.mxu0 %v2809
    %2913 = vmatpush1.msra.mxu0 %v2808
    %2914 = vmatprep.subr.mxu0 %v2813
    %2915 = vmatpush1.msra.mxu0 %v2812
    %2916 = vmatprep.subr.mxu0 %v2817
    %2917 = vmatpush1.msra.mxu0 %v2816
    %2918 = vmatprep.subr.mxu0 %v2821
    %2919 = vmatpush1.msra.mxu0 %v2820
    %2920 = vmatprep.subr.mxu0 %v2825
    %2921 = vmatpush1.msra.mxu0 %v2824
    %2922 = vmatprep.subr.mxu0 %v2829
    %2923 = vmatpush1.msra.mxu0 %v2828
    %2924 = vmatprep.subr.mxu0 %v2833
    %2925 = vmatpush1.msra.mxu0 %v2832
    %2926 = vmatprep.subr.mxu0 %v2837
    %2927 = vmatpush1.msra.mxu0 %v2836
    %2928 = vmatprep.subr.mxu0 %v2841
    %2929 = vmatpush1.msra.mxu0 %v2840
    %2930 = vmatprep.subr.mxu0 %v2845
    %2931 = vmatpush1.msra.mxu0 %v2844
    %2932 = vmatprep.subr.mxu0 %v2849
    %2933 = vmatpush1.msra.mxu0 %v2848
    %2934 = vmatprep.subr.mxu0 %v2853
    %2935 = vmatpush1.msra.mxu0 %v2852
    %2936 = vmatprep.subr.mxu0 %v2857
    %2937 = vmatpush1.msra.mxu0 %v2856
    %2938 = vmatprep.subr.mxu0 %v2861
    %2939 = vmatpush1.msra.mxu0 %v2860
    %2940 = vmatprep.subr.mxu0 %v2865
    %2941 = vmatpush1.msra.mxu0 %v2864
    %2942 = vmatprep.subr.mxu0 %v2869
    %2943 = vmatpush1.msra.mxu0 %v2868
    %2944 = vmatprep.mubr.f32.mxu0 %v2877
    %2945 = vmatmul.mubr.f32.gmra.mrb[0].mxu0 %v2874
    %v2946 = vpop.f32.mrb[0].mxu0
    %v2947 = vadd.f32 0.0, %v2946
    %v2948 = vpop.f32.mrb[0].mxu0
    %v2949 = vadd.f32 0.0, %v2948
    %2950 = vdwg.mxu0
    %2951 = vmatprep.subr.mxu0 %v2747
    %2952 = vmatpush1.msra.mxu0 %v2746
    %2953 = vmatprep.subr.mxu0 %v2751
    %2954 = vmatpush1.msra.mxu0 %v2750
    %2955 = vmatprep.subr.mxu0 %v2755
    %2956 = vmatpush1.msra.mxu0 %v2754
    %2957 = vmatprep.subr.mxu0 %v2759
    %2958 = vmatpush1.msra.mxu0 %v2758
    %2959 = vmatprep.subr.mxu0 %v2763
    %2960 = vmatpush1.msra.mxu0 %v2762
    %2961 = vmatprep.subr.mxu0 %v2767
    %2962 = vmatpush1.msra.mxu0 %v2766
    %2963 = vmatprep.subr.mxu0 %v2771
    %2964 = vmatpush1.msra.mxu0 %v2770
    %2965 = vmatprep.subr.mxu0 %v2775
    %2966 = vmatpush1.msra.mxu0 %v2774
    %2967 = vmatprep.subr.mxu0 %v2779
    %2968 = vmatpush1.msra.mxu0 %v2778
    %2969 = vmatprep.subr.mxu0 %v2783
    %2970 = vmatpush1.msra.mxu0 %v2782
    %2971 = vmatprep.subr.mxu0 %v2787
    %2972 = vmatpush1.msra.mxu0 %v2786
    %2973 = vmatprep.subr.mxu0 %v2791
    %2974 = vmatpush1.msra.mxu0 %v2790
    %2975 = vmatprep.subr.mxu0 %v2795
    %2976 = vmatpush1.msra.mxu0 %v2794
    %2977 = vmatprep.subr.mxu0 %v2799
    %2978 = vmatpush1.msra.mxu0 %v2798
    %2979 = vmatprep.subr.mxu0 %v2803
    %2980 = vmatpush1.msra.mxu0 %v2802
    %2981 = vmatprep.subr.mxu0 %v2807
    %2982 = vmatpush1.msra.mxu0 %v2806
    %2983 = vmatprep.subr.mxu0 %v2811
    %2984 = vmatpush1.msra.mxu0 %v2810
    %2985 = vmatprep.subr.mxu0 %v2815
    %2986 = vmatpush1.msra.mxu0 %v2814
    %2987 = vmatprep.subr.mxu0 %v2819
    %2988 = vmatpush1.msra.mxu0 %v2818
    %2989 = vmatprep.subr.mxu0 %v2823
    %2990 = vmatpush1.msra.mxu0 %v2822
    %2991 = vmatprep.subr.mxu0 %v2827
    %2992 = vmatpush1.msra.mxu0 %v2826
    %2993 = vmatprep.subr.mxu0 %v2831
    %2994 = vmatpush1.msra.mxu0 %v2830
    %2995 = vmatprep.subr.mxu0 %v2835
    %2996 = vmatpush1.msra.mxu0 %v2834
    %2997 = vmatprep.subr.mxu0 %v2839
    %2998 = vmatpush1.msra.mxu0 %v2838
    %2999 = vmatprep.subr.mxu0 %v2843
    %3000 = vmatpush1.msra.mxu0 %v2842
    %3001 = vmatprep.subr.mxu0 %v2847
    %3002 = vmatpush1.msra.mxu0 %v2846
    %3003 = vmatprep.subr.mxu0 %v2851
    %3004 = vmatpush1.msra.mxu0 %v2850
    %3005 = vmatprep.subr.mxu0 %v2855
    %3006 = vmatpush1.msra.mxu0 %v2854
    %3007 = vmatprep.subr.mxu0 %v2859
    %3008 = vmatpush1.msra.mxu0 %v2858
    %3009 = vmatprep.subr.mxu0 %v2863
    %3010 = vmatpush1.msra.mxu0 %v2862
    %3011 = vmatprep.subr.mxu0 %v2867
    %3012 = vmatpush1.msra.mxu0 %v2866
    %3013 = vmatprep.subr.mxu0 %v2871
    %3014 = vmatpush1.msra.mxu0 %v2870
    %3015 = vmatprep.mubr.f32.mxu0 %v2877
    %3016 = vmatmul.mubr.f32.gmra.mrb[0].mxu0 %v2874
    %v3017 = vpop.f32.mrb[0].mxu0
    %v3018 = vadd.f32 0.0, %v3017
    %v3019 = vpop.f32.mrb[0].mxu0
    %v3020 = vadd.f32 0.0, %v3019
    %3021 = vdwg.mxu0
    %v3022 = vadd.f32 %v2739, %v2947
    %v3023 = vadd.f32 %v2740, %v2949
    %v3024 = vadd.f32 %v2741, %v3018
    %v3025 = vadd.f32 %v2742, %v3020
    %v3026 = vld [vmem:[#allocation10] sm:$0xf]
    %v3028 = vlaneseq
    %v3029 = vshrl.u32 %v3028, 7
    %v3030 = vsub.s32 0, %v3029
    %v3031 = vrot.slane %v3026, %v3030
    %v3032 = vlaneseq
    %v3033 = vshrl.u32 %v3032, 7
    %v3034 = vsub.s32 1, %v3033
    %v3035 = vrot.slane %v3026, %v3034
    %v3036 = vlaneseq
    %v3037 = vshrl.u32 %v3036, 7
    %v3038 = vsub.s32 2, %v3037
    %v3039 = vrot.slane %v3026, %v3038
    %v3040 = vlaneseq
    %v3041 = vshrl.u32 %v3040, 7
    %v3042 = vsub.s32 3, %v3041
    %v3043 = vrot.slane %v3026, %v3042
    %v3048 = vadd.f32 %v3022, %v3031
    %v3049 = vadd.f32 %v3023, %v3035
    %v3050 = vadd.f32 %v3024, %v3039
    %v3051 = vadd.f32 %v3025, %v3043
    %v3052 = vld [vmem:[#allocation12] sm:$0xf]
    %vm3053 = vcmask 64512
    %v3055 = vsel %vm3053, %v3052, 0
    %3057 = vmatprep.subr.mxu0 %v3049
    %3058 = vmatpush1.msra.mxu0 %v3048
    %3059 = vmatprep.subr.mxu0 0.0
    %3060 = vmatpush1.msra.mxu0 0.0
    %3061 = vmatprep.subr.mxu0 0.0
    %3062 = vmatpush1.msra.mxu0 0.0
    %3063 = vmatprep.subr.mxu0 0.0
    %3064 = vmatpush1.msra.mxu0 0.0
    %3065 = vmatprep.subr.mxu0 0.0
    %3066 = vmatpush1.msra.mxu0 0.0
    %3067 = vmatprep.subr.mxu0 0.0
    %3068 = vmatpush1.msra.mxu0 0.0
    %3069 = vmatprep.subr.mxu0 0.0
    %3070 = vmatpush1.msra.mxu0 0.0
    %3071 = vmatprep.subr.mxu0 0.0
    %3072 = vmatpush1.msra.mxu0 0.0
    %3073 = vmatprep.subr.mxu0 0.0
    %3074 = vmatpush1.msra.mxu0 0.0
    %3075 = vmatprep.subr.mxu0 0.0
    %3076 = vmatpush1.msra.mxu0 0.0
    %3077 = vmatprep.subr.mxu0 0.0
    %3078 = vmatpush1.msra.mxu0 0.0
    %3079 = vmatprep.subr.mxu0 0.0
    %3080 = vmatpush1.msra.mxu0 0.0
    %3081 = vmatprep.subr.mxu0 0.0
    %3082 = vmatpush1.msra.mxu0 0.0
    %3083 = vmatprep.subr.mxu0 0.0
    %3084 = vmatpush1.msra.mxu0 0.0
    %3085 = vmatprep.subr.mxu0 0.0
    %3086 = vmatpush1.msra.mxu0 0.0
    %3087 = vmatprep.subr.mxu0 0.0
    %3088 = vmatpush1.msra.mxu0 0.0
    %3089 = vmatprep.subr.mxu0 0.0
    %3090 = vmatpush1.msra.mxu0 0.0
    %3091 = vmatprep.subr.mxu0 0.0
    %3092 = vmatpush1.msra.mxu0 0.0
    %3093 = vmatprep.subr.mxu0 0.0
    %3094 = vmatpush1.msra.mxu0 0.0
    %3095 = vmatprep.subr.mxu0 0.0
    %3096 = vmatpush1.msra.mxu0 0.0
    %3097 = vmatprep.subr.mxu0 0.0
    %3098 = vmatpush1.msra.mxu0 0.0
    %3099 = vmatprep.subr.mxu0 0.0
    %3100 = vmatpush1.msra.mxu0 0.0
    %3101 = vmatprep.subr.mxu0 0.0
    %3102 = vmatpush1.msra.mxu0 0.0
    %3103 = vmatprep.subr.mxu0 0.0
    %3104 = vmatpush1.msra.mxu0 0.0
    %3105 = vmatprep.subr.mxu0 0.0
    %3106 = vmatpush1.msra.mxu0 0.0
    %3107 = vmatprep.subr.mxu0 0.0
    %3108 = vmatpush1.msra.mxu0 0.0
    %3109 = vmatprep.subr.mxu0 0.0
    %3110 = vmatpush1.msra.mxu0 0.0
    %3111 = vmatprep.subr.mxu0 0.0
    %3112 = vmatpush1.msra.mxu0 0.0
    %3113 = vmatprep.subr.mxu0 0.0
    %3114 = vmatpush1.msra.mxu0 0.0
    %3115 = vmatprep.subr.mxu0 0.0
    %3116 = vmatpush1.msra.mxu0 0.0
    %3117 = vmatprep.subr.mxu0 0.0
    %3118 = vmatpush1.msra.mxu0 0.0
    %3119 = vmatprep.subr.mxu0 0.0
    %3120 = vmatpush1.msra.mxu0 0.0
    %3121 = vmatprep.mubr.f32.mxu0 0.0
    %3122 = vmatmul.mubr.f32.gmra.mrb[0].mxu0 %v3055
    %v3123 = vpop.f32.mrb[0].mxu0
    %v3124 = vadd.f32 0.0, %v3123
    %v3125 = vpop.f32.mrb[0].mxu0
    %v3126 = vadd.f32 0.0, %v3125
    %3127 = vdwg.mxu0
    %3128 = vmatprep.subr.mxu0 %v3051
    %3129 = vmatpush1.msra.mxu0 %v3050
    %3130 = vmatprep.subr.mxu0 0.0
    %3131 = vmatpush1.msra.mxu0 0.0
    %3132 = vmatprep.subr.mxu0 0.0
    %3133 = vmatpush1.msra.mxu0 0.0
    %3134 = vmatprep.subr.mxu0 0.0
    %3135 = vmatpush1.msra.mxu0 0.0
    %3136 = vmatprep.subr.mxu0 0.0
    %3137 = vmatpush1.msra.mxu0 0.0
    %3138 = vmatprep.subr.mxu0 0.0
    %3139 = vmatpush1.msra.mxu0 0.0
    %3140 = vmatprep.subr.mxu0 0.0
    %3141 = vmatpush1.msra.mxu0 0.0
    %3142 = vmatprep.subr.mxu0 0.0
    %3143 = vmatpush1.msra.mxu0 0.0
    %3144 = vmatprep.subr.mxu0 0.0
    %3145 = vmatpush1.msra.mxu0 0.0
    %3146 = vmatprep.subr.mxu0 0.0
    %3147 = vmatpush1.msra.mxu0 0.0
    %3148 = vmatprep.subr.mxu0 0.0
    %3149 = vmatpush1.msra.mxu0 0.0
    %3150 = vmatprep.subr.mxu0 0.0
    %3151 = vmatpush1.msra.mxu0 0.0
    %3152 = vmatprep.subr.mxu0 0.0
    %3153 = vmatpush1.msra.mxu0 0.0
    %3154 = vmatprep.subr.mxu0 0.0
    %3155 = vmatpush1.msra.mxu0 0.0
    %3156 = vmatprep.subr.mxu0 0.0
    %3157 = vmatpush1.msra.mxu0 0.0
    %3158 = vmatprep.subr.mxu0 0.0
    %3159 = vmatpush1.msra.mxu0 0.0
    %3160 = vmatprep.subr.mxu0 0.0
    %3161 = vmatpush1.msra.mxu0 0.0
    %3162 = vmatprep.subr.mxu0 0.0
    %3163 = vmatpush1.msra.mxu0 0.0
    %3164 = vmatprep.subr.mxu0 0.0
    %3165 = vmatpush1.msra.mxu0 0.0
    %3166 = vmatprep.subr.mxu0 0.0
    %3167 = vmatpush1.msra.mxu0 0.0
    %3168 = vmatprep.subr.mxu0 0.0
    %3169 = vmatpush1.msra.mxu0 0.0
    %3170 = vmatprep.subr.mxu0 0.0
    %3171 = vmatpush1.msra.mxu0 0.0
    %3172 = vmatprep.subr.mxu0 0.0
    %3173 = vmatpush1.msra.mxu0 0.0
    %3174 = vmatprep.subr.mxu0 0.0
    %3175 = vmatpush1.msra.mxu0 0.0
    %3176 = vmatprep.subr.mxu0 0.0
    %3177 = vmatpush1.msra.mxu0 0.0
    %3178 = vmatprep.subr.mxu0 0.0
    %3179 = vmatpush1.msra.mxu0 0.0
    %3180 = vmatprep.subr.mxu0 0.0
    %3181 = vmatpush1.msra.mxu0 0.0
    %3182 = vmatprep.subr.mxu0 0.0
    %3183 = vmatpush1.msra.mxu0 0.0
    %3184 = vmatprep.subr.mxu0 0.0
    %3185 = vmatpush1.msra.mxu0 0.0
    %3186 = vmatprep.subr.mxu0 0.0
    %3187 = vmatpush1.msra.mxu0 0.0
    %3188 = vmatprep.subr.mxu0 0.0
    %3189 = vmatpush1.msra.mxu0 0.0
    %3190 = vmatprep.subr.mxu0 0.0
    %3191 = vmatpush1.msra.mxu0 0.0
    %3192 = vmatprep.mubr.f32.mxu0 0.0
    %3193 = vmatmul.mubr.f32.gmra.mrb[0].mxu0 %v3055
    %v3194 = vpop.f32.mrb[0].mxu0
    %v3195 = vadd.f32 0.0, %v3194
    %v3196 = vpop.f32.mrb[0].mxu0
    %v3197 = vadd.f32 0.0, %v3196
    %3198 = vdwg.mxu0
    %v3199 = vld [vmem:[#allocation13] sm:$0xf]
    %v3201 = vsel %vm3053, %v3199, 0
    %3203 = vmatprep.subr.mxu0 %v3049
    %3204 = vmatpush1.msra.mxu0 %v3048
    %3205 = vmatprep.subr.mxu0 0.0
    %3206 = vmatpush1.msra.mxu0 0.0
    %3207 = vmatprep.subr.mxu0 0.0
    %3208 = vmatpush1.msra.mxu0 0.0
    %3209 = vmatprep.subr.mxu0 0.0
    %3210 = vmatpush1.msra.mxu0 0.0
    %3211 = vmatprep.subr.mxu0 0.0
    %3212 = vmatpush1.msra.mxu0 0.0
    %3213 = vmatprep.subr.mxu0 0.0
    %3214 = vmatpush1.msra.mxu0 0.0
    %3215 = vmatprep.subr.mxu0 0.0
    %3216 = vmatpush1.msra.mxu0 0.0
    %3217 = vmatprep.subr.mxu0 0.0
    %3218 = vmatpush1.msra.mxu0 0.0
    %3219 = vmatprep.subr.mxu0 0.0
    %3220 = vmatpush1.msra.mxu0 0.0
    %3221 = vmatprep.subr.mxu0 0.0
    %3222 = vmatpush1.msra.mxu0 0.0
    %3223 = vmatprep.subr.mxu0 0.0
    %3224 = vmatpush1.msra.mxu0 0.0
    %3225 = vmatprep.subr.mxu0 0.0
    %3226 = vmatpush1.msra.mxu0 0.0
    %3227 = vmatprep.subr.mxu0 0.0
    %3228 = vmatpush1.msra.mxu0 0.0
    %3229 = vmatprep.subr.mxu0 0.0
    %3230 = vmatpush1.msra.mxu0 0.0
    %3231 = vmatprep.subr.mxu0 0.0
    %3232 = vmatpush1.msra.mxu0 0.0
    %3233 = vmatprep.subr.mxu0 0.0
    %3234 = vmatpush1.msra.mxu0 0.0
    %3235 = vmatprep.subr.mxu0 0.0
    %3236 = vmatpush1.msra.mxu0 0.0
    %3237 = vmatprep.subr.mxu0 0.0
    %3238 = vmatpush1.msra.mxu0 0.0
    %3239 = vmatprep.subr.mxu0 0.0
    %3240 = vmatpush1.msra.mxu0 0.0
    %3241 = vmatprep.subr.mxu0 0.0
    %3242 = vmatpush1.msra.mxu0 0.0
    %3243 = vmatprep.subr.mxu0 0.0
    %3244 = vmatpush1.msra.mxu0 0.0
    %3245 = vmatprep.subr.mxu0 0.0
    %3246 = vmatpush1.msra.mxu0 0.0
    %3247 = vmatprep.subr.mxu0 0.0
    %3248 = vmatpush1.msra.mxu0 0.0
    %3249 = vmatprep.subr.mxu0 0.0
    %3250 = vmatpush1.msra.mxu0 0.0
    %3251 = vmatprep.subr.mxu0 0.0
    %3252 = vmatpush1.msra.mxu0 0.0
    %3253 = vmatprep.subr.mxu0 0.0
    %3254 = vmatpush1.msra.mxu0 0.0
    %3255 = vmatprep.subr.mxu0 0.0
    %3256 = vmatpush1.msra.mxu0 0.0
    %3257 = vmatprep.subr.mxu0 0.0
    %3258 = vmatpush1.msra.mxu0 0.0
    %3259 = vmatprep.subr.mxu0 0.0
    %3260 = vmatpush1.msra.mxu0 0.0
    %3261 = vmatprep.subr.mxu0 0.0
    %3262 = vmatpush1.msra.mxu0 0.0
    %3263 = vmatprep.subr.mxu0 0.0
    %3264 = vmatpush1.msra.mxu0 0.0
    %3265 = vmatprep.subr.mxu0 0.0
    %3266 = vmatpush1.msra.mxu0 0.0
    %3267 = vmatprep.mubr.f32.mxu0 0.0
    %3268 = vmatmul.mubr.f32.gmra.mrb[0].mxu0 %v3201
    %v3269 = vpop.f32.mrb[0].mxu0
    %v3270 = vadd.f32 0.0, %v3269
    %v3271 = vpop.f32.mrb[0].mxu0
    %v3272 = vadd.f32 0.0, %v3271
    %3273 = vdwg.mxu0
    %3274 = vmatprep.subr.mxu0 %v3051
    %3275 = vmatpush1.msra.mxu0 %v3050
    %3276 = vmatprep.subr.mxu0 0.0
    %3277 = vmatpush1.msra.mxu0 0.0
    %3278 = vmatprep.subr.mxu0 0.0
    %3279 = vmatpush1.msra.mxu0 0.0
    %3280 = vmatprep.subr.mxu0 0.0
    %3281 = vmatpush1.msra.mxu0 0.0
    %3282 = vmatprep.subr.mxu0 0.0
    %3283 = vmatpush1.msra.mxu0 0.0
    %3284 = vmatprep.subr.mxu0 0.0
    %3285 = vmatpush1.msra.mxu0 0.0
    %3286 = vmatprep.subr.mxu0 0.0
    %3287 = vmatpush1.msra.mxu0 0.0
    %3288 = vmatprep.subr.mxu0 0.0
    %3289 = vmatpush1.msra.mxu0 0.0
    %3290 = vmatprep.subr.mxu0 0.0
    %3291 = vmatpush1.msra.mxu0 0.0
    %3292 = vmatprep.subr.mxu0 0.0
    %3293 = vmatpush1.msra.mxu0 0.0
    %3294 = vmatprep.subr.mxu0 0.0
    %3295 = vmatpush1.msra.mxu0 0.0
    %3296 = vmatprep.subr.mxu0 0.0
    %3297 = vmatpush1.msra.mxu0 0.0
    %3298 = vmatprep.subr.mxu0 0.0
    %3299 = vmatpush1.msra.mxu0 0.0
    %3300 = vmatprep.subr.mxu0 0.0
    %3301 = vmatpush1.msra.mxu0 0.0
    %3302 = vmatprep.subr.mxu0 0.0
    %3303 = vmatpush1.msra.mxu0 0.0
    %3304 = vmatprep.subr.mxu0 0.0
    %3305 = vmatpush1.msra.mxu0 0.0
    %3306 = vmatprep.subr.mxu0 0.0
    %3307 = vmatpush1.msra.mxu0 0.0
    %3308 = vmatprep.subr.mxu0 0.0
    %3309 = vmatpush1.msra.mxu0 0.0
    %3310 = vmatprep.subr.mxu0 0.0
    %3311 = vmatpush1.msra.mxu0 0.0
    %3312 = vmatprep.subr.mxu0 0.0
    %3313 = vmatpush1.msra.mxu0 0.0
    %3314 = vmatprep.subr.mxu0 0.0
    %3315 = vmatpush1.msra.mxu0 0.0
    %3316 = vmatprep.subr.mxu0 0.0
    %3317 = vmatpush1.msra.mxu0 0.0
    %3318 = vmatprep.subr.mxu0 0.0
    %3319 = vmatpush1.msra.mxu0 0.0
    %3320 = vmatprep.subr.mxu0 0.0
    %3321 = vmatpush1.msra.mxu0 0.0
    %3322 = vmatprep.subr.mxu0 0.0
    %3323 = vmatpush1.msra.mxu0 0.0
    %3324 = vmatprep.subr.mxu0 0.0
    %3325 = vmatpush1.msra.mxu0 0.0
    %3326 = vmatprep.subr.mxu0 0.0
    %3327 = vmatpush1.msra.mxu0 0.0
    %3328 = vmatprep.subr.mxu0 0.0
    %3329 = vmatpush1.msra.mxu0 0.0
    %3330 = vmatprep.subr.mxu0 0.0
    %3331 = vmatpush1.msra.mxu0 0.0
    %3332 = vmatprep.subr.mxu0 0.0
    %3333 = vmatpush1.msra.mxu0 0.0
    %3334 = vmatprep.subr.mxu0 0.0
    %3335 = vmatpush1.msra.mxu0 0.0
    %3336 = vmatprep.subr.mxu0 0.0
    %3337 = vmatpush1.msra.mxu0 0.0
    %3338 = vmatprep.mubr.f32.mxu0 0.0
    %3339 = vmatmul.mubr.f32.gmra.mrb[0].mxu0 %v3201
    %v3340 = vpop.f32.mrb[0].mxu0
    %v3341 = vadd.f32 0.0, %v3340
    %v3342 = vpop.f32.mrb[0].mxu0
    %v3343 = vadd.f32 0.0, %v3342
    %3344 = vdwg.mxu0
    %v3345 = vmax.f32 %v3124, %v3270
    %v3346 = vmax.f32 %v3126, %v3272
    %v3347 = vmax.f32 %v3195, %v3341
    %v3348 = vmax.f32 %v3197, %v3343
    %v3349 = vmax.f32 %v3345, %v3347
    %v3350 = vmax.f32 %v3346, %v3348
    %v3351 = vmax.f32 %v3349, 0.0
    %v3352 = vmax.f32 %v3350, 0.0
    %v3353 = vld [vmem:[#allocation15] sm:$0x1]
    %v3354 = vld [vmem:[%s9] sm:$0xff]
    %v3355 = vld [vmem:[%s9 + $0x8] sm:$0xff]
    %v3356 = vld [vmem:[%s9 + $0x10] sm:$0xff]
    %v3357 = vld [vmem:[%s9 + $0x18] sm:$0xff]
    %v3358 = vld [vmem:[%s9 + $0x20] sm:$0xff]
    %v3359 = vld [vmem:[%s9 + $0x28] sm:$0xff]
    %v3360 = vld [vmem:[%s9 + $0x30] sm:$0xff]
    %v3361 = vld [vmem:[%s9 + $0x38] sm:$0xff]
    %v3362 = vld [vmem:[%s9 + $0x40] sm:$0xff]
    %v3363 = vld [vmem:[%s9 + $0x48] sm:$0xff]
    %v3364 = vld [vmem:[%s9 + $0x50] sm:$0xff]
    %v3365 = vld [vmem:[%s9 + $0x58] sm:$0xff]
    %v3366 = vld [vmem:[%s9 + $0x60] sm:$0xff]
    %v3367 = vld [vmem:[%s9 + $0x68] sm:$0xff]
    %v3368 = vld [vmem:[%s9 + $0x70] sm:$0xff]
    %v3369 = vld [vmem:[%s9 + $0x78] sm:$0xff]
    %v3370 = vld [vmem:[%s9 + $0x80] sm:$0xff]
    %v3371 = vld [vmem:[%s9 + $0x88] sm:$0xff]
    %v3372 = vld [vmem:[%s9 + $0x90] sm:$0xff]
    %v3373 = vld [vmem:[%s9 + $0x98] sm:$0xff]
    %v3374 = vld [vmem:[%s9 + $0xa0] sm:$0xff]
    %v3375 = vld [vmem:[%s9 + $0xa8] sm:$0xff]
    %v3376 = vld [vmem:[%s9 + $0xb0] sm:$0xff]
    %v3377 = vld [vmem:[%s9 + $0xb8] sm:$0xff]
    %v3378 = vld [vmem:[%s9 + $0xc0] sm:$0xff]
    %v3379 = vld [vmem:[%s9 + $0xc8] sm:$0xff]
    %v3380 = vld [vmem:[%s9 + $0xd0] sm:$0xff]
    %v3381 = vld [vmem:[%s9 + $0xd8] sm:$0xff]
    %v3382 = vld [vmem:[%s9 + $0xe0] sm:$0xff]
    %v3383 = vld [vmem:[%s9 + $0xe8] sm:$0xff]
    %v3384 = vld [vmem:[%s9 + $0xf0] sm:$0xff]
    %v3385 = vld [vmem:[%s9 + $0xf8] sm:$0xff]
    %3386 = vmatprep.subr.mxu0 0.0
    %3387 = vmatpush1.msra.mxu0 %v3354
    %3388 = vmatprep.subr.mxu0 0.0
    %3389 = vmatpush1.msra.mxu0 %v3355
    %3390 = vmatprep.subr.mxu0 0.0
    %3391 = vmatpush1.msra.mxu0 %v3356
    %3392 = vmatprep.subr.mxu0 0.0
    %3393 = vmatpush1.msra.mxu0 %v3357
    %3394 = vmatprep.subr.mxu0 0.0
    %3395 = vmatpush1.msra.mxu0 %v3358
    %3396 = vmatprep.subr.mxu0 0.0
    %3397 = vmatpush1.msra.mxu0 %v3359
    %3398 = vmatprep.subr.mxu0 0.0
    %3399 = vmatpush1.msra.mxu0 %v3360
    %3400 = vmatprep.subr.mxu0 0.0
    %3401 = vmatpush1.msra.mxu0 %v3361
    %3402 = vmatprep.subr.mxu0 0.0
    %3403 = vmatpush1.msra.mxu0 %v3362
    %3404 = vmatprep.subr.mxu0 0.0
    %3405 = vmatpush1.msra.mxu0 %v3363
    %3406 = vmatprep.subr.mxu0 0.0
    %3407 = vmatpush1.msra.mxu0 %v3364
    %3408 = vmatprep.subr.mxu0 0.0
    %3409 = vmatpush1.msra.mxu0 %v3365
    %3410 = vmatprep.subr.mxu0 0.0
    %3411 = vmatpush1.msra.mxu0 %v3366
    %3412 = vmatprep.subr.mxu0 0.0
    %3413 = vmatpush1.msra.mxu0 %v3367
    %3414 = vmatprep.subr.mxu0 0.0
    %3415 = vmatpush1.msra.mxu0 %v3368
    %3416 = vmatprep.subr.mxu0 0.0
    %3417 = vmatpush1.msra.mxu0 %v3369
    %3418 = vmatprep.subr.mxu0 0.0
    %3419 = vmatpush1.msra.mxu0 %v3370
    %3420 = vmatprep.subr.mxu0 0.0
    %3421 = vmatpush1.msra.mxu0 %v3371
    %3422 = vmatprep.subr.mxu0 0.0
    %3423 = vmatpush1.msra.mxu0 %v3372
    %3424 = vmatprep.subr.mxu0 0.0
    %3425 = vmatpush1.msra.mxu0 %v3373
    %3426 = vmatprep.subr.mxu0 0.0
    %3427 = vmatpush1.msra.mxu0 %v3374
    %3428 = vmatprep.subr.mxu0 0.0
    %3429 = vmatpush1.msra.mxu0 %v3375
    %3430 = vmatprep.subr.mxu0 0.0
    %3431 = vmatpush1.msra.mxu0 %v3376
    %3432 = vmatprep.subr.mxu0 0.0
    %3433 = vmatpush1.msra.mxu0 %v3377
    %3434 = vmatprep.subr.mxu0 0.0
    %3435 = vmatpush1.msra.mxu0 %v3378
    %3436 = vmatprep.subr.mxu0 0.0
    %3437 = vmatpush1.msra.mxu0 %v3379
    %3438 = vmatprep.subr.mxu0 0.0
    %3439 = vmatpush1.msra.mxu0 %v3380
    %3440 = vmatprep.subr.mxu0 0.0
    %3441 = vmatpush1.msra.mxu0 %v3381
    %3442 = vmatprep.subr.mxu0 0.0
    %3443 = vmatpush1.msra.mxu0 %v3382
    %3444 = vmatprep.subr.mxu0 0.0
    %3445 = vmatpush1.msra.mxu0 %v3383
    %3446 = vmatprep.subr.mxu0 0.0
    %3447 = vmatpush1.msra.mxu0 %v3384
    %3448 = vmatprep.subr.mxu0 0.0
    %3449 = vmatpush1.msra.mxu0 %v3385
    %3450 = vmatprep.mubr.f32.mxu0 %v3352
    %3451 = vmatmul.mubr.f32.gmra.mrb[0].mxu0 %v3351
    %v3452 = vpop.f32.mrb[0].mxu0
    %v3453 = vadd.f32 0.0, %v3452
    %v3454 = vpop.f32.mrb[0].mxu0
    %3455 = vdwg.mxu0
    %v3456 = vadd.f32 %v3353, %v3453
    %s3457 = scalar_lea.vmem %s9, 256
    %v3458 = vld [vmem:[%s3457] sm:$0xff]
    %v3459 = vld [vmem:[%s3457 + $0x8] sm:$0xff]
    %v3460 = vld [vmem:[%s3457 + $0x10] sm:$0xff]
    %v3461 = vld [vmem:[%s3457 + $0x18] sm:$0xff]
    %v3462 = vld [vmem:[%s3457 + $0x20] sm:$0xff]
    %v3463 = vld [vmem:[%s3457 + $0x28] sm:$0xff]
    %v3464 = vld [vmem:[%s3457 + $0x30] sm:$0xff]
    %v3465 = vld [vmem:[%s3457 + $0x38] sm:$0xff]
    %v3466 = vld [vmem:[%s3457 + $0x40] sm:$0xff]
    %v3467 = vld [vmem:[%s3457 + $0x48] sm:$0xff]
    %v3468 = vld [vmem:[%s3457 + $0x50] sm:$0xff]
    %v3469 = vld [vmem:[%s3457 + $0x58] sm:$0xff]
    %v3470 = vld [vmem:[%s3457 + $0x60] sm:$0xff]
    %v3471 = vld [vmem:[%s3457 + $0x68] sm:$0xff]
    %v3472 = vld [vmem:[%s3457 + $0x70] sm:$0xff]
    %v3473 = vld [vmem:[%s3457 + $0x78] sm:$0xff]
    %v3474 = vld [vmem:[%s3457 + $0x80] sm:$0xff]
    %v3475 = vld [vmem:[%s3457 + $0x88] sm:$0xff]
    %v3476 = vld [vmem:[%s3457 + $0x90] sm:$0xff]
    %v3477 = vld [vmem:[%s3457 + $0x98] sm:$0xff]
    %v3478 = vld [vmem:[%s3457 + $0xa0] sm:$0xff]
    %v3479 = vld [vmem:[%s3457 + $0xa8] sm:$0xff]
    %v3480 = vld [vmem:[%s3457 + $0xb0] sm:$0xff]
    %v3481 = vld [vmem:[%s3457 + $0xb8] sm:$0xff]
    %v3482 = vld [vmem:[%s3457 + $0xc0] sm:$0xff]
    %v3483 = vld [vmem:[%s3457 + $0xc8] sm:$0xff]
    %v3484 = vld [vmem:[%s3457 + $0xd0] sm:$0xff]
    %v3485 = vld [vmem:[%s3457 + $0xd8] sm:$0xff]
    %v3486 = vld [vmem:[%s3457 + $0xe0] sm:$0xff]
    %v3487 = vld [vmem:[%s3457 + $0xe8] sm:$0xff]
    %v3488 = vld [vmem:[%s3457 + $0xf0] sm:$0xff]
    %v3489 = vld [vmem:[%s3457 + $0xf8] sm:$0xff]
    %v3492 = vrot.slane %v3351, 1
    %v3493 = vrot.slane %v3352, 1
    %3496 = vmatprep.subr.mxu0 0.0
    %3497 = vmatpush1.msra.mxu0 %v3458
    %3498 = vmatprep.subr.mxu0 0.0
    %3499 = vmatpush1.msra.mxu0 %v3459
    %3500 = vmatprep.subr.mxu0 0.0
    %3501 = vmatpush1.msra.mxu0 %v3460
    %3502 = vmatprep.subr.mxu0 0.0
    %3503 = vmatpush1.msra.mxu0 %v3461
    %3504 = vmatprep.subr.mxu0 0.0
    %3505 = vmatpush1.msra.mxu0 %v3462
    %3506 = vmatprep.subr.mxu0 0.0
    %3507 = vmatpush1.msra.mxu0 %v3463
    %3508 = vmatprep.subr.mxu0 0.0
    %3509 = vmatpush1.msra.mxu0 %v3464
    %3510 = vmatprep.subr.mxu0 0.0
    %3511 = vmatpush1.msra.mxu0 %v3465
    %3512 = vmatprep.subr.mxu0 0.0
    %3513 = vmatpush1.msra.mxu0 %v3466
    %3514 = vmatprep.subr.mxu0 0.0
    %3515 = vmatpush1.msra.mxu0 %v3467
    %3516 = vmatprep.subr.mxu0 0.0
    %3517 = vmatpush1.msra.mxu0 %v3468
    %3518 = vmatprep.subr.mxu0 0.0
    %3519 = vmatpush1.msra.mxu0 %v3469
    %3520 = vmatprep.subr.mxu0 0.0
    %3521 = vmatpush1.msra.mxu0 %v3470
    %3522 = vmatprep.subr.mxu0 0.0
    %3523 = vmatpush1.msra.mxu0 %v3471
    %3524 = vmatprep.subr.mxu0 0.0
    %3525 = vmatpush1.msra.mxu0 %v3472
    %3526 = vmatprep.subr.mxu0 0.0
    %3527 = vmatpush1.msra.mxu0 %v3473
    %3528 = vmatprep.subr.mxu0 0.0
    %3529 = vmatpush1.msra.mxu0 %v3474
    %3530 = vmatprep.subr.mxu0 0.0
    %3531 = vmatpush1.msra.mxu0 %v3475
    %3532 = vmatprep.subr.mxu0 0.0
    %3533 = vmatpush1.msra.mxu0 %v3476
    %3534 = vmatprep.subr.mxu0 0.0
    %3535 = vmatpush1.msra.mxu0 %v3477
    %3536 = vmatprep.subr.mxu0 0.0
    %3537 = vmatpush1.msra.mxu0 %v3478
    %3538 = vmatprep.subr.mxu0 0.0
    %3539 = vmatpush1.msra.mxu0 %v3479
    %3540 = vmatprep.subr.mxu0 0.0
    %3541 = vmatpush1.msra.mxu0 %v3480
    %3542 = vmatprep.subr.mxu0 0.0
    %3543 = vmatpush1.msra.mxu0 %v3481
    %3544 = vmatprep.subr.mxu0 0.0
    %3545 = vmatpush1.msra.mxu0 %v3482
    %3546 = vmatprep.subr.mxu0 0.0
    %3547 = vmatpush1.msra.mxu0 %v3483
    %3548 = vmatprep.subr.mxu0 0.0
    %3549 = vmatpush1.msra.mxu0 %v3484
    %3550 = vmatprep.subr.mxu0 0.0
    %3551 = vmatpush1.msra.mxu0 %v3485
    %3552 = vmatprep.subr.mxu0 0.0
    %3553 = vmatpush1.msra.mxu0 %v3486
    %3554 = vmatprep.subr.mxu0 0.0
    %3555 = vmatpush1.msra.mxu0 %v3487
    %3556 = vmatprep.subr.mxu0 0.0
    %3557 = vmatpush1.msra.mxu0 %v3488
    %3558 = vmatprep.subr.mxu0 0.0
    %3559 = vmatpush1.msra.mxu0 %v3489
    %3560 = vmatprep.mubr.f32.mxu0 %v3493
    %3561 = vmatmul.mubr.f32.gmra.mrb[0].mxu0 %v3492
    %v3562 = vpop.f32.mrb[0].mxu0
    %v3563 = vadd.f32 0.0, %v3562
    %v3564 = vpop.f32.mrb[0].mxu0
    %3565 = vdwg.mxu0
    %v3566 = vadd.f32 %v3456, %v3563
    %s3567 = scalar_lea.vmem %s9, 512
    %v3568 = vld [vmem:[%s3567] sm:$0xff]
    %v3569 = vld [vmem:[%s3567 + $0x8] sm:$0xff]
    %v3570 = vld [vmem:[%s3567 + $0x10] sm:$0xff]
    %v3571 = vld [vmem:[%s3567 + $0x18] sm:$0xff]
    %v3572 = vld [vmem:[%s3567 + $0x20] sm:$0xff]
    %v3573 = vld [vmem:[%s3567 + $0x28] sm:$0xff]
    %v3574 = vld [vmem:[%s3567 + $0x30] sm:$0xff]
    %v3575 = vld [vmem:[%s3567 + $0x38] sm:$0xff]
    %v3576 = vld [vmem:[%s3567 + $0x40] sm:$0xff]
    %v3577 = vld [vmem:[%s3567 + $0x48] sm:$0xff]
    %v3578 = vld [vmem:[%s3567 + $0x50] sm:$0xff]
    %v3579 = vld [vmem:[%s3567 + $0x58] sm:$0xff]
    %v3580 = vld [vmem:[%s3567 + $0x60] sm:$0xff]
    %v3581 = vld [vmem:[%s3567 + $0x68] sm:$0xff]
    %v3582 = vld [vmem:[%s3567 + $0x70] sm:$0xff]
    %v3583 = vld [vmem:[%s3567 + $0x78] sm:$0xff]
    %v3584 = vld [vmem:[%s3567 + $0x80] sm:$0xff]
    %v3585 = vld [vmem:[%s3567 + $0x88] sm:$0xff]
    %v3586 = vld [vmem:[%s3567 + $0x90] sm:$0xff]
    %v3587 = vld [vmem:[%s3567 + $0x98] sm:$0xff]
    %v3588 = vld [vmem:[%s3567 + $0xa0] sm:$0xff]
    %v3589 = vld [vmem:[%s3567 + $0xa8] sm:$0xff]
    %v3590 = vld [vmem:[%s3567 + $0xb0] sm:$0xff]
    %v3591 = vld [vmem:[%s3567 + $0xb8] sm:$0xff]
    %v3592 = vld [vmem:[%s3567 + $0xc0] sm:$0xff]
    %v3593 = vld [vmem:[%s3567 + $0xc8] sm:$0xff]
    %v3594 = vld [vmem:[%s3567 + $0xd0] sm:$0xff]
    %v3595 = vld [vmem:[%s3567 + $0xd8] sm:$0xff]
    %v3596 = vld [vmem:[%s3567 + $0xe0] sm:$0xff]
    %v3597 = vld [vmem:[%s3567 + $0xe8] sm:$0xff]
    %v3598 = vld [vmem:[%s3567 + $0xf0] sm:$0xff]
    %v3599 = vld [vmem:[%s3567 + $0xf8] sm:$0xff]
    %v3600 = vrot.slane %v3351, 2
    %v3601 = vrot.slane %v3352, 2
    %3604 = vmatprep.subr.mxu0 0.0
    %3605 = vmatpush1.msra.mxu0 %v3568
    %3606 = vmatprep.subr.mxu0 0.0
    %3607 = vmatpush1.msra.mxu0 %v3569
    %3608 = vmatprep.subr.mxu0 0.0
    %3609 = vmatpush1.msra.mxu0 %v3570
    %3610 = vmatprep.subr.mxu0 0.0
    %3611 = vmatpush1.msra.mxu0 %v3571
    %3612 = vmatprep.subr.mxu0 0.0
    %3613 = vmatpush1.msra.mxu0 %v3572
    %3614 = vmatprep.subr.mxu0 0.0
    %3615 = vmatpush1.msra.mxu0 %v3573
    %3616 = vmatprep.subr.mxu0 0.0
    %3617 = vmatpush1.msra.mxu0 %v3574
    %3618 = vmatprep.subr.mxu0 0.0
    %3619 = vmatpush1.msra.mxu0 %v3575
    %3620 = vmatprep.subr.mxu0 0.0
    %3621 = vmatpush1.msra.mxu0 %v3576
    %3622 = vmatprep.subr.mxu0 0.0
    %3623 = vmatpush1.msra.mxu0 %v3577
    %3624 = vmatprep.subr.mxu0 0.0
    %3625 = vmatpush1.msra.mxu0 %v3578
    %3626 = vmatprep.subr.mxu0 0.0
    %3627 = vmatpush1.msra.mxu0 %v3579
    %3628 = vmatprep.subr.mxu0 0.0
    %3629 = vmatpush1.msra.mxu0 %v3580
    %3630 = vmatprep.subr.mxu0 0.0
    %3631 = vmatpush1.msra.mxu0 %v3581
    %3632 = vmatprep.subr.mxu0 0.0
    %3633 = vmatpush1.msra.mxu0 %v3582
    %3634 = vmatprep.subr.mxu0 0.0
    %3635 = vmatpush1.msra.mxu0 %v3583
    %3636 = vmatprep.subr.mxu0 0.0
    %3637 = vmatpush1.msra.mxu0 %v3584
    %3638 = vmatprep.subr.mxu0 0.0
    %3639 = vmatpush1.msra.mxu0 %v3585
    %3640 = vmatprep.subr.mxu0 0.0
    %3641 = vmatpush1.msra.mxu0 %v3586
    %3642 = vmatprep.subr.mxu0 0.0
    %3643 = vmatpush1.msra.mxu0 %v3587
    %3644 = vmatprep.subr.mxu0 0.0
    %3645 = vmatpush1.msra.mxu0 %v3588
    %3646 = vmatprep.subr.mxu0 0.0
    %3647 = vmatpush1.msra.mxu0 %v3589
    %3648 = vmatprep.subr.mxu0 0.0
    %3649 = vmatpush1.msra.mxu0 %v3590
    %3650 = vmatprep.subr.mxu0 0.0
    %3651 = vmatpush1.msra.mxu0 %v3591
    %3652 = vmatprep.subr.mxu0 0.0
    %3653 = vmatpush1.msra.mxu0 %v3592
    %3654 = vmatprep.subr.mxu0 0.0
    %3655 = vmatpush1.msra.mxu0 %v3593
    %3656 = vmatprep.subr.mxu0 0.0
    %3657 = vmatpush1.msra.mxu0 %v3594
    %3658 = vmatprep.subr.mxu0 0.0
    %3659 = vmatpush1.msra.mxu0 %v3595
    %3660 = vmatprep.subr.mxu0 0.0
    %3661 = vmatpush1.msra.mxu0 %v3596
    %3662 = vmatprep.subr.mxu0 0.0
    %3663 = vmatpush1.msra.mxu0 %v3597
    %3664 = vmatprep.subr.mxu0 0.0
    %3665 = vmatpush1.msra.mxu0 %v3598
    %3666 = vmatprep.subr.mxu0 0.0
    %3667 = vmatpush1.msra.mxu0 %v3599
    %3668 = vmatprep.mubr.f32.mxu0 %v3601
    %3669 = vmatmul.mubr.f32.gmra.mrb[0].mxu0 %v3600
    %v3670 = vpop.f32.mrb[0].mxu0
    %v3671 = vadd.f32 0.0, %v3670
    %v3672 = vpop.f32.mrb[0].mxu0
    %3673 = vdwg.mxu0
    %v3674 = vadd.f32 %v3566, %v3671
    %s3675 = scalar_lea.vmem %s9, 768
    %v3676 = vld [vmem:[%s3675] sm:$0xff]
    %v3677 = vld [vmem:[%s3675 + $0x8] sm:$0xff]
    %v3678 = vld [vmem:[%s3675 + $0x10] sm:$0xff]
    %v3679 = vld [vmem:[%s3675 + $0x18] sm:$0xff]
    %v3680 = vld [vmem:[%s3675 + $0x20] sm:$0xff]
    %v3681 = vld [vmem:[%s3675 + $0x28] sm:$0xff]
    %v3682 = vld [vmem:[%s3675 + $0x30] sm:$0xff]
    %v3683 = vld [vmem:[%s3675 + $0x38] sm:$0xff]
    %v3684 = vld [vmem:[%s3675 + $0x40] sm:$0xff]
    %v3685 = vld [vmem:[%s3675 + $0x48] sm:$0xff]
    %v3686 = vld [vmem:[%s3675 + $0x50] sm:$0xff]
    %v3687 = vld [vmem:[%s3675 + $0x58] sm:$0xff]
    %v3688 = vld [vmem:[%s3675 + $0x60] sm:$0xff]
    %v3689 = vld [vmem:[%s3675 + $0x68] sm:$0xff]
    %v3690 = vld [vmem:[%s3675 + $0x70] sm:$0xff]
    %v3691 = vld [vmem:[%s3675 + $0x78] sm:$0xff]
    %v3692 = vld [vmem:[%s3675 + $0x80] sm:$0xff]
    %v3693 = vld [vmem:[%s3675 + $0x88] sm:$0xff]
    %v3694 = vld [vmem:[%s3675 + $0x90] sm:$0xff]
    %v3695 = vld [vmem:[%s3675 + $0x98] sm:$0xff]
    %v3696 = vld [vmem:[%s3675 + $0xa0] sm:$0xff]
    %v3697 = vld [vmem:[%s3675 + $0xa8] sm:$0xff]
    %v3698 = vld [vmem:[%s3675 + $0xb0] sm:$0xff]
    %v3699 = vld [vmem:[%s3675 + $0xb8] sm:$0xff]
    %v3700 = vld [vmem:[%s3675 + $0xc0] sm:$0xff]
    %v3701 = vld [vmem:[%s3675 + $0xc8] sm:$0xff]
    %v3702 = vld [vmem:[%s3675 + $0xd0] sm:$0xff]
    %v3703 = vld [vmem:[%s3675 + $0xd8] sm:$0xff]
    %v3704 = vld [vmem:[%s3675 + $0xe0] sm:$0xff]
    %v3705 = vld [vmem:[%s3675 + $0xe8] sm:$0xff]
    %v3706 = vld [vmem:[%s3675 + $0xf0] sm:$0xff]
    %v3707 = vld [vmem:[%s3675 + $0xf8] sm:$0xff]
    %v3708 = vrot.slane %v3351, 3
    %v3709 = vrot.slane %v3352, 3
    %3712 = vmatprep.subr.mxu0 0.0
    %3713 = vmatpush1.msra.mxu0 %v3676
    %3714 = vmatprep.subr.mxu0 0.0
    %3715 = vmatpush1.msra.mxu0 %v3677
    %3716 = vmatprep.subr.mxu0 0.0
    %3717 = vmatpush1.msra.mxu0 %v3678
    %3718 = vmatprep.subr.mxu0 0.0
    %3719 = vmatpush1.msra.mxu0 %v3679
    %3720 = vmatprep.subr.mxu0 0.0
    %3721 = vmatpush1.msra.mxu0 %v3680
    %3722 = vmatprep.subr.mxu0 0.0
    %3723 = vmatpush1.msra.mxu0 %v3681
    %3724 = vmatprep.subr.mxu0 0.0
    %3725 = vmatpush1.msra.mxu0 %v3682
    %3726 = vmatprep.subr.mxu0 0.0
    %3727 = vmatpush1.msra.mxu0 %v3683
    %3728 = vmatprep.subr.mxu0 0.0
    %3729 = vmatpush1.msra.mxu0 %v3684
    %3730 = vmatprep.subr.mxu0 0.0
    %3731 = vmatpush1.msra.mxu0 %v3685
    %3732 = vmatprep.subr.mxu0 0.0
    %3733 = vmatpush1.msra.mxu0 %v3686
    %3734 = vmatprep.subr.mxu0 0.0
    %3735 = vmatpush1.msra.mxu0 %v3687
    %3736 = vmatprep.subr.mxu0 0.0
    %3737 = vmatpush1.msra.mxu0 %v3688
    %3738 = vmatprep.subr.mxu0 0.0
    %3739 = vmatpush1.msra.mxu0 %v3689
    %3740 = vmatprep.subr.mxu0 0.0
    %3741 = vmatpush1.msra.mxu0 %v3690
    %3742 = vmatprep.subr.mxu0 0.0
    %3743 = vmatpush1.msra.mxu0 %v3691
    %3744 = vmatprep.subr.mxu0 0.0
    %3745 = vmatpush1.msra.mxu0 %v3692
    %3746 = vmatprep.subr.mxu0 0.0
    %3747 = vmatpush1.msra.mxu0 %v3693
    %3748 = vmatprep.subr.mxu0 0.0
    %3749 = vmatpush1.msra.mxu0 %v3694
    %3750 = vmatprep.subr.mxu0 0.0
    %3751 = vmatpush1.msra.mxu0 %v3695
    %3752 = vmatprep.subr.mxu0 0.0
    %3753 = vmatpush1.msra.mxu0 %v3696
    %3754 = vmatprep.subr.mxu0 0.0
    %3755 = vmatpush1.msra.mxu0 %v3697
    %3756 = vmatprep.subr.mxu0 0.0
    %3757 = vmatpush1.msra.mxu0 %v3698
    %3758 = vmatprep.subr.mxu0 0.0
    %3759 = vmatpush1.msra.mxu0 %v3699
    %3760 = vmatprep.subr.mxu0 0.0
    %3761 = vmatpush1.msra.mxu0 %v3700
    %3762 = vmatprep.subr.mxu0 0.0
    %3763 = vmatpush1.msra.mxu0 %v3701
    %3764 = vmatprep.subr.mxu0 0.0
    %3765 = vmatpush1.msra.mxu0 %v3702
    %3766 = vmatprep.subr.mxu0 0.0
    %3767 = vmatpush1.msra.mxu0 %v3703
    %3768 = vmatprep.subr.mxu0 0.0
    %3769 = vmatpush1.msra.mxu0 %v3704
    %3770 = vmatprep.subr.mxu0 0.0
    %3771 = vmatpush1.msra.mxu0 %v3705
    %3772 = vmatprep.subr.mxu0 0.0
    %3773 = vmatpush1.msra.mxu0 %v3706
    %3774 = vmatprep.subr.mxu0 0.0
    %3775 = vmatpush1.msra.mxu0 %v3707
    %3776 = vmatprep.mubr.f32.mxu0 %v3709
    %3777 = vmatmul.mubr.f32.gmra.mrb[0].mxu0 %v3708
    %v3778 = vpop.f32.mrb[0].mxu0
    %v3779 = vadd.f32 0.0, %v3778
    %v3780 = vpop.f32.mrb[0].mxu0
    %3781 = vdwg.mxu0
    %v3782 = vadd.f32 %v3674, %v3779
    %v3783 = vmax.f32 %v3782, 0.0
    %v3784 = vld [vmem:[%s11] sm:$0xff]
    %v3785 = vld [vmem:[%s11 + $0x8] sm:$0xff]
    %v3786 = vld [vmem:[%s11 + $0x10] sm:$0xff]
    %v3787 = vld [vmem:[%s11 + $0x18] sm:$0xff]
    %v3788 = vld [vmem:[%s11 + $0x20] sm:$0xff]
    %v3789 = vld [vmem:[%s11 + $0x28] sm:$0xff]
    %v3790 = vld [vmem:[%s11 + $0x30] sm:$0xff]
    %v3791 = vld [vmem:[%s11 + $0x38] sm:$0xff]
    %v3792 = vld [vmem:[%s11 + $0x40] sm:$0xff]
    %v3793 = vld [vmem:[%s11 + $0x48] sm:$0xff]
    %v3794 = vld [vmem:[%s11 + $0x50] sm:$0xff]
    %v3795 = vld [vmem:[%s11 + $0x58] sm:$0xff]
    %v3796 = vld [vmem:[%s11 + $0x60] sm:$0xf]
    %v3797 = vld [vmem:[#allocation16] sm:$0x1]
    %vm3798 = vcmask 818176
    %v3800 = vsel %vm3798, %v3783, 0
    %v3803 = vsel %vm1057, %v3796, 0
    %3805 = vmatprep.subr.mxu0 0.0
    %3806 = vmatpush1.msra.mxu0 %v3784
    %3807 = vmatprep.subr.mxu0 0.0
    %3808 = vmatpush1.msra.mxu0 %v3785
    %3809 = vmatprep.subr.mxu0 0.0
    %3810 = vmatpush1.msra.mxu0 %v3786
    %3811 = vmatprep.subr.mxu0 0.0
    %3812 = vmatpush1.msra.mxu0 %v3787
    %3813 = vmatprep.subr.mxu0 0.0
    %3814 = vmatpush1.msra.mxu0 %v3788
    %3815 = vmatprep.subr.mxu0 0.0
    %3816 = vmatpush1.msra.mxu0 %v3789
    %3817 = vmatprep.subr.mxu0 0.0
    %3818 = vmatpush1.msra.mxu0 %v3790
    %3819 = vmatprep.subr.mxu0 0.0
    %3820 = vmatpush1.msra.mxu0 %v3791
    %3821 = vmatprep.subr.mxu0 0.0
    %3822 = vmatpush1.msra.mxu0 %v3792
    %3823 = vmatprep.subr.mxu0 0.0
    %3824 = vmatpush1.msra.mxu0 %v3793
    %3825 = vmatprep.subr.mxu0 0.0
    %3826 = vmatpush1.msra.mxu0 %v3794
    %3827 = vmatprep.subr.mxu0 0.0
    %3828 = vmatpush1.msra.mxu0 %v3795
    %3829 = vmatprep.subr.mxu0 0.0
    %3830 = vmatpush1.msra.mxu0 %v3803
    %3831 = vmatprep.subr.mxu0 0.0
    %3832 = vmatpush1.msra.mxu0 0.0
    %3833 = vmatprep.subr.mxu0 0.0
    %3834 = vmatpush1.msra.mxu0 0.0
    %3835 = vmatprep.subr.mxu0 0.0
    %3836 = vmatpush1.msra.mxu0 0.0
    %3837 = vmatprep.subr.mxu0 0.0
    %3838 = vmatpush1.msra.mxu0 0.0
    %3839 = vmatprep.subr.mxu0 0.0
    %3840 = vmatpush1.msra.mxu0 0.0
    %3841 = vmatprep.subr.mxu0 0.0
    %3842 = vmatpush1.msra.mxu0 0.0
    %3843 = vmatprep.subr.mxu0 0.0
    %3844 = vmatpush1.msra.mxu0 0.0
    %3845 = vmatprep.subr.mxu0 0.0
    %3846 = vmatpush1.msra.mxu0 0.0
    %3847 = vmatprep.subr.mxu0 0.0
    %3848 = vmatpush1.msra.mxu0 0.0
    %3849 = vmatprep.subr.mxu0 0.0
    %3850 = vmatpush1.msra.mxu0 0.0
    %3851 = vmatprep.subr.mxu0 0.0
    %3852 = vmatpush1.msra.mxu0 0.0
    %3853 = vmatprep.subr.mxu0 0.0
    %3854 = vmatpush1.msra.mxu0 0.0
    %3855 = vmatprep.subr.mxu0 0.0
    %3856 = vmatpush1.msra.mxu0 0.0
    %3857 = vmatprep.subr.mxu0 0.0
    %3858 = vmatpush1.msra.mxu0 0.0
    %3859 = vmatprep.subr.mxu0 0.0
    %3860 = vmatpush1.msra.mxu0 0.0
    %3861 = vmatprep.subr.mxu0 0.0
    %3862 = vmatpush1.msra.mxu0 0.0
    %3863 = vmatprep.subr.mxu0 0.0
    %3864 = vmatpush1.msra.mxu0 0.0
    %3865 = vmatprep.subr.mxu0 0.0
    %3866 = vmatpush1.msra.mxu0 0.0
    %3867 = vmatprep.subr.mxu0 0.0
    %3868 = vmatpush1.msra.mxu0 0.0
    %3869 = vmatprep.mubr.f32.mxu0 0.0
    %3870 = vmatmul.mubr.f32.gmra.mrb[0].mxu0 %v3800
    %v3871 = vpop.f32.mrb[0].mxu0
    %v3872 = vadd.f32 %v3797, %v3871
    %v3873 = vpop.f32.mrb[0].mxu0
    %3874 = vdwg.mxu0
    %vm3875 = vcmask 155648
    %3876 = vst.msk [vmem:[%s13] sm:$0x1] %vm3875, %v3872
    // Predicated region
    $region94: #{cnn_forward.1} parent=1 // pred_check
      _
    $region95: #{cnn_forward.1} parent=1 // pred_check_branch
      %3878 = sbr.rel (0) target = $region97
    $region96: #{cnn_forward.1} parent=1 // pred_region
      _
    $region97: #{cnn_forward.1} parent=1 // pred_fallthru
      _
    // Predicated region
    $region98: #{cnn_forward.1} parent=1 // pred_check
      _
    $region99: #{cnn_forward.1} parent=1 // pred_check_branch
      %3880 = sbr.rel (0) target = $region101
    $region100: #{cnn_forward.1} parent=1 // pred_region
      _
    $region101: #{cnn_forward.1} parent=1 // pred_fallthru
      _
    %3881 = vsyncpa [#allocation3], 1
    %3882 = vsyncpa [#allocation5], 1
    %3883 = vsyncpa [#allocation8], 1
    %3884 = vsyncpa [#allocation11], 1
    %3885 = vsyncpa [#allocation14], 1
    %3886 = vsyncpa [#allocation17], 1

</llo_original>
